<compile_context>
chip_gen: v5e
topology: v5e:2x2
jax: 0.10.0
libtpu: 0.0.40
codegen_flags: <defaults>
</compile_context>

<pallas_src>
import functools

import jax
import jax.numpy as jnp
from jax.experimental import pallas as pl
from jax.experimental.pallas import tpu as pltpu


def _round_up(x, m):
    return ((x + m - 1) // m) * m


def _leaky(v):
    return jnp.where(v >= 0.0, v, 0.01 * v)       # LeakyReLU(0.01)


# ---------------------------------------------------------------------------
# Static geometry shared by both stages (Python ints only)
# ---------------------------------------------------------------------------
def compute_dims(emb, c_eeg, t_len, sampling_rate):
    kws = [int(0.5 * sampling_rate), int(0.25 * sampling_rate),
           int(0.125 * sampling_rate)]
    kmax = max(kws)
    wos = [t_len - k + 1 for k in kws]
    wp = [w // 8 for w in wos]                    # AvgPool(1,8), floor mode
    assert min(wp) >= 1, "input too short for temporal pooling"
    assert c_eeg % 2 == 0, "spatial2 stride assumes even EEG channel count"
    wp_max = max(wp)
    nc = 8 * wp_max                               # conv positions per EEG row
    t_pad = _round_up(max(t_len, nc + kmax - 1), 128)
    off = [0, wp[0], wp[0] + wp[1]]               # branch offsets in concat
    wt = sum(wp)                                  # concatenated temporal width
    ws = wt // 2                                  # after spatial AvgPool(1,2)
    wf = ws // 4                                  # after fusion AvgPool(1,4)
    assert wf >= 1
    return dict(emb=emb, c_eeg=c_eeg, t_len=t_len, kws=kws, kmax=kmax,
                wp=tuple(wp), wp_max=wp_max, nc=nc, t_pad=t_pad,
                off=tuple(off), wt=wt, ws=ws, wf=wf)


# ---------------------------------------------------------------------------
# Kernel 1: temporal1+2+3  (conv -> LeakyReLU -> AvgPool(1,8) -> BN_t)
# ---------------------------------------------------------------------------
def temporal_kernel(x_ref, w_ref, pool_ref, bias_ref, scale_ref, shift_ref,
                    o_ref, p_scr, *, emb, c_eeg, kmax, nc, wp, off):
    """x_ref    : (1, c_eeg, T_pad)   bf16  one batch, zero-padded time
       w_ref    : (3*emb, kmax)       bf16  branch-stacked, K-zero-padded
       pool_ref : (nc, wp_max)        f32   0/1 pool-sum matrix
       bias_ref : (3*emb, 1)          f32
       scale_ref: (3*emb, 1)          f32   gamma/sqrt(var+eps)/8
       shift_ref: (3*emb, 1)          f32   beta - mean*gamma/sqrt(var+eps)
       o_ref    : (1, c_eeg*emb, Wt)  bf16  pre-concatenated (row = c*emb+e)
       p_scr    : (kmax, nc)          bf16  in-kernel im2col scratch
    """
    xb = x_ref[0]                                  # (c_eeg, T_pad)
    n_br = len(wp)
    for c in range(c_eeg):
        # in-kernel im2col: kmax shifted windows of this EEG row
        for j in range(kmax):
            p_scr[j:j + 1, :] = xb[c:c + 1, j:j + nc]
        # all three branches at all conv positions: one MXU matmul,
        # time on the lane / N axis (lane-dense downstream)
        y = jnp.dot(w_ref[...], p_scr[...],
                    preferred_element_type=jnp.float32)       # (3E, nc)
        y = _leaky(y + bias_ref[...])
        # AvgPool(1,8) as a matmul against a constant 0/1 matrix (MXU)
        yp = jnp.dot(y, pool_ref[...],
                     preferred_element_type=jnp.float32)      # (3E, wp_max)
        z = yp * scale_ref[...] + shift_ref[...]               # BN_t (eval)
        # write each branch straight into its slice of the concat output
        for br in range(n_br):
            o_ref[0, c * emb:(c + 1) * emb, off[br]:off[br] + wp[br]] = (
                z[br * emb:(br + 1) * emb, :wp[br]].astype(o_ref.dtype))


def temporal_stage(x_pad, prep, d):
    B = x_pad.shape[0]
    emb, c_eeg = d["emb"], d["c_eeg"]
    f3 = 3 * emb
    kern = functools.partial(temporal_kernel, emb=emb, c_eeg=c_eeg,
                             kmax=d["kmax"], nc=d["nc"], wp=d["wp"],
                             off=d["off"])
    return pl.pallas_call(
        kern,
        out_shape=jax.ShapeDtypeStruct((B, c_eeg * emb, d["wt"]), jnp.bfloat16),
        grid=(B,),
        in_specs=[
            pl.BlockSpec((1, c_eeg, d["t_pad"]), lambda b: (b, 0, 0)),
            pl.BlockSpec((f3, d["kmax"]), lambda b: (0, 0)),
            pl.BlockSpec((d["nc"], d["wp_max"]), lambda b: (0, 0)),
            pl.BlockSpec((f3, 1), lambda b: (0, 0)),
            pl.BlockSpec((f3, 1), lambda b: (0, 0)),
            pl.BlockSpec((f3, 1), lambda b: (0, 0)),
        ],
        out_specs=pl.BlockSpec((1, c_eeg * emb, d["wt"]), lambda b: (b, 0, 0)),
        scratch_shapes=[pltpu.VMEM((d["kmax"], d["nc"]), jnp.bfloat16)],
        compiler_params=pltpu.CompilerParams(
            dimension_semantics=("parallel",)),    # B>=2 -> both v7x TCs used
    )(x_pad, prep["w_all"], prep["pool8"], prep["bias_t"],
      prep["scale_t"], prep["shift_t"])


# ---------------------------------------------------------------------------
# Kernel 2: spatial1 + spatial2 -> BN_s -> fusion conv -> BN_f
# ---------------------------------------------------------------------------
def spatial_fusion_kernel(a_ref, w1_ref, w2_ref, wf_ref, b1_ref, b2_ref,
                          bf_ref, ss_ref, ts_ref, sf_ref, tf_ref,
                          pool2_ref, pool4_ref, o_ref, *, emb, c_eeg):
    A = a_ref[0]                                   # (c_eeg*emb, Wt) bf16
    half = (c_eeg // 2) * emb
    p2 = pool2_ref[...]
    # spatial1: kernel (C_eeg,1) spans full height -> one matmul;
    # spatial2: kernel (C_eeg/2,1) stride (C_eeg/2,1) -> two half-height matmuls
    y1 = jnp.dot(w1_ref[...], A,
                 preferred_element_type=jnp.float32) + b1_ref[...]
    y2a = jnp.dot(w2_ref[...], A[0:half, :],
                  preferred_element_type=jnp.float32) + b2_ref[...]
    y2b = jnp.dot(w2_ref[...], A[half:2 * half, :],
                  preferred_element_type=jnp.float32) + b2_ref[...]
    # LeakyReLU -> AvgPool(1,2) via 0/1 matmul -> BN_s (1/2 folded into ss)
    s0 = jnp.dot(_leaky(y1), p2,
                 preferred_element_type=jnp.float32) * ss_ref[...] + ts_ref[...]
    s1 = jnp.dot(_leaky(y2a), p2,
                 preferred_element_type=jnp.float32) * ss_ref[...] + ts_ref[...]
    s2 = jnp.dot(_leaky(y2b), p2,
                 preferred_element_type=jnp.float32) * ss_ref[...] + ts_ref[...]
    # fusion conv (3,1): contraction over the 3 concatenated heights
    wf = wf_ref[...]
    dt = wf.dtype
    f = (jnp.dot(wf[:, 0:emb], s0.astype(dt),
                 preferred_element_type=jnp.float32)
         + jnp.dot(wf[:, emb:2 * emb], s1.astype(dt),
                   preferred_element_type=jnp.float32)
         + jnp.dot(wf[:, 2 * emb:3 * emb], s2.astype(dt),
                   preferred_element_type=jnp.float32)
         + bf_ref[...])
    # LeakyReLU -> AvgPool(1,4) -> BN_f (1/4 folded into sf)
    out = (jnp.dot(_leaky(f), pool4_ref[...],
                   preferred_element_type=jnp.float32)
           * sf_ref[...] + tf_ref[...])
    o_ref[0] = out.astype(o_ref.dtype)


def spatial_fusion_stage(a1, prep, d):
    B = a1.shape[0]
    emb, c_eeg = d["emb"], d["c_eeg"]
    ce = c_eeg * emb
    half = (c_eeg // 2) * emb
    kern = functools.partial(spatial_fusion_kernel, emb=emb, c_eeg=c_eeg)
    return pl.pallas_call(
        kern,
        out_shape=jax.ShapeDtypeStruct((B, emb, d["wf"]), jnp.float32),
        grid=(B,),
        in_specs=[
            pl.BlockSpec((1, ce, d["wt"]), lambda b: (b, 0, 0)),
            pl.BlockSpec((emb, ce), lambda b: (0, 0)),
            pl.BlockSpec((emb, half), lambda b: (0, 0)),
            pl.BlockSpec((emb, 3 * emb), lambda b: (0, 0)),
            pl.BlockSpec((emb, 1), lambda b: (0, 0)),
            pl.BlockSpec((emb, 1), lambda b: (0, 0)),
            pl.BlockSpec((emb, 1), lambda b: (0, 0)),
            pl.BlockSpec((emb, 1), lambda b: (0, 0)),
            pl.BlockSpec((emb, 1), lambda b: (0, 0)),
            pl.BlockSpec((emb, 1), lambda b: (0, 0)),
            pl.BlockSpec((emb, 1), lambda b: (0, 0)),
            pl.BlockSpec((d["wt"], d["ws"]), lambda b: (0, 0)),
            pl.BlockSpec((d["ws"], d["wf"]), lambda b: (0, 0)),
        ],
        out_specs=pl.BlockSpec((1, emb, d["wf"]), lambda b: (b, 0, 0)),
        compiler_params=pltpu.CompilerParams(
            dimension_semantics=("parallel",)),
    )(a1, prep["w1"], prep["w2"], prep["wf"], prep["b1"], prep["b2"],
      prep["bf"], prep["ss"], prep["ts"], prep["sf"], prep["tf"],
      prep["pool2"], prep["pool4"])


# ---------------------------------------------------------------------------
# One-time parameter folding (hoisted out of the per-forward trace)
# ---------------------------------------------------------------------------
def _pool_matrix(n_in, p, n_out):
    t = jnp.arange(n_in)[:, None]
    q = jnp.arange(n_out)[None, :]
    return (t // p == q).astype(jnp.float32)      # floor AvgPool drops the tail


def _bn_affine(bn, eps=1e-5):
    gamma, beta, mean, var = bn
    s = gamma / jnp.sqrt(var + eps)
    return s, beta - mean * s


def prepare_params(params, d):
    emb, c_eeg = d["emb"], d["c_eeg"]
    kws, kmax = d["kws"], d["kmax"]
    f32, bf16 = jnp.float32, jnp.bfloat16

    # temporal: stack branches, zero-pad K to kmax
    w_all = jnp.zeros((3 * emb, kmax), f32)
    biases = []
    for br, kw in enumerate(kws):
        w_br = params[f"t{br + 1}_w"].reshape(emb, kw)
        w_all = w_all.at[br * emb:(br + 1) * emb, :kw].set(w_br)
        biases.append(params[f"t{br + 1}_b"])
    bias_t = jnp.concatenate(biases).reshape(3 * emb, 1)
    s_t, sh_t = _bn_affine(params["bn_t"])
    scale_t = jnp.tile(s_t / 8.0, 3).reshape(3 * emb, 1)   # 1/pool folded
    shift_t = jnp.tile(sh_t, 3).reshape(3 * emb, 1)

    # spatial / fusion: (E_out, E_in, H, 1) -> (E_out, H*E_in), col = h*E+e_in
    def hw_mat(w):
        w = jnp.transpose(w[..., 0], (0, 2, 1))
        return w.reshape(w.shape[0], -1)

    s_s, sh_s = _bn_affine(params["bn_s"])
    s_f, sh_f = _bn_affine(params["bn_f"])

    return {
        "w_all": w_all.astype(bf16),
        "bias_t": bias_t.astype(f32),
        "scale_t": scale_t.astype(f32),
        "shift_t": shift_t.astype(f32),
        "pool8": _pool_matrix(d["nc"], 8, d["wp_max"]),
        "w1": hw_mat(params["s1_w"]).astype(bf16),
        "w2": hw_mat(params["s2_w"]).astype(bf16),
        "wf": hw_mat(params["f_w"]).astype(bf16),
        "b1": params["s1_b"].reshape(emb, 1).astype(f32),
        "b2": params["s2_b"].reshape(emb, 1).astype(f32),
        "bf": params["f_b"].reshape(emb, 1).astype(f32),
        "ss": (s_s / 2.0).reshape(emb, 1).astype(f32),
        "ts": sh_s.reshape(emb, 1).astype(f32),
        "sf": (s_f / 4.0).reshape(emb, 1).astype(f32),
        "tf": sh_f.reshape(emb, 1).astype(f32),
        "pool2": _pool_matrix(d["wt"], 2, d["ws"]),
        "pool4": _pool_matrix(d["ws"], 4, d["wf"]),
    }


# ---------------------------------------------------------------------------
# Forward
# ---------------------------------------------------------------------------
def tsception_forward(x_nchw, prep, d):
    # (B, 1, C_eeg, T) -> (B, C_eeg, T), bf16, zero-pad time for in-kernel im2col
    x = x_nchw[:, 0, :, :].astype(jnp.bfloat16)
    x = jnp.pad(x, ((0, 0), (0, 0), (0, d["t_pad"] - d["t_len"])))
    a1 = temporal_stage(x, prep, d)            # (B, C_eeg*E, Wt) bf16
    out = spatial_fusion_stage(a1, prep, d)    # (B, E, Wf) f32
    # rearrange 'b c (h) (t) -> b (h t) c' with h == 1
    return jnp.transpose(out, (0, 2, 1))


# ---------------------------------------------------------------------------
# Deterministic parameter construction (PyTorch layouts)
# ---------------------------------------------------------------------------
def make_params(key, emb, c_eeg, sampling_rate):
    k_t = [int(0.5 * sampling_rate), int(0.25 * sampling_rate),
           int(0.125 * sampling_rate)]
    keys = jax.random.split(key, 16)

    def conv_w(k, shape):
        return (0.1 * jax.random.normal(k, shape)).astype(jnp.float32)

    def bn(k):
        k1, k2, k3, k4 = jax.random.split(k, 4)
        gamma = 1.0 + 0.1 * jax.random.normal(k1, (emb,))
        beta = 0.1 * jax.random.normal(k2, (emb,))
        mean = 0.1 * jax.random.normal(k3, (emb,))
        var = 1.0 + 0.1 * jax.random.uniform(k4, (emb,))
        return (gamma.astype(jnp.float32), beta.astype(jnp.float32),
                mean.astype(jnp.float32), var.astype(jnp.float32))

    return {
        "t1_w": conv_w(keys[0], (emb, 1, 1, k_t[0])),
        "t1_b": conv_w(keys[1], (emb,)),
        "t2_w": conv_w(keys[2], (emb, 1, 1, k_t[1])),
        "t2_b": conv_w(keys[3], (emb,)),
        "t3_w": conv_w(keys[4], (emb, 1, 1, k_t[2])),
        "t3_b": conv_w(keys[5], (emb,)),
        "s1_w": conv_w(keys[6], (emb, emb, c_eeg, 1)),
        "s1_b": conv_w(keys[7], (emb,)),
        "s2_w": conv_w(keys[8], (emb, emb, c_eeg // 2, 1)),
        "s2_b": conv_w(keys[9], (emb,)),
        "f_w": conv_w(keys[10], (emb, emb, 3, 1)),
        "f_b": conv_w(keys[11], (emb,)),
        "bn_t": bn(keys[12]),
        "bn_s": bn(keys[13]),
        "bn_f": bn(keys[14]),
    }


if __name__ == "__main__":
    # emb_size=8, input_size=(1, 4, 128), sampling_rate=32, batch=2
    emb_size, c_eeg, T, sampling_rate, B = 8, 4, 128, 32, 2

    key = jax.random.PRNGKey(0)
    key_x, key_p = jax.random.split(key)
    x = jax.random.normal(key_x, (B, 1, c_eeg, T), dtype=jnp.float32)

    params = make_params(key_p, emb_size, c_eeg, sampling_rate)
    dims = compute_dims(emb_size, c_eeg, T, sampling_rate)
    prep = prepare_params(params, dims)        # folded once, outside jit

    fwd = jax.jit(functools.partial(tsception_forward, d=dims))
    out = jax.block_until_ready(fwd(x, prep))

    # Expected: (B, h*t, emb) = (2, 5, 8) for this config.
    assert out.shape == (B, dims["wf"], emb_size), out.shape
    print("KERNEL_OK")
</pallas_src>

<mosaic_0001>
module attributes {stable_mosaic.version = 11 : i64} {
  func.func @spatial_fusion_kernel(%arg0: i32, %arg1: memref<1x32x44xbf16, #tpu.memory_space<vmem>>, %arg2: memref<8x32xbf16, #tpu.memory_space<vmem>>, %arg3: memref<8x16xbf16, #tpu.memory_space<vmem>>, %arg4: memref<8x24xbf16, #tpu.memory_space<vmem>>, %arg5: memref<8x1xf32, #tpu.memory_space<vmem>>, %arg6: memref<8x1xf32, #tpu.memory_space<vmem>>, %arg7: memref<8x1xf32, #tpu.memory_space<vmem>>, %arg8: memref<8x1xf32, #tpu.memory_space<vmem>>, %arg9: memref<8x1xf32, #tpu.memory_space<vmem>>, %arg10: memref<8x1xf32, #tpu.memory_space<vmem>>, %arg11: memref<8x1xf32, #tpu.memory_space<vmem>>, %arg12: memref<44x22xf32, #tpu.memory_space<vmem>>, %arg13: memref<22x5xf32, #tpu.memory_space<vmem>>, %arg14: memref<1x8x5xf32, #tpu.memory_space<vmem>>) attributes {dimension_semantics = [#tpu.dimension_semantics<parallel>], iteration_bounds = array<i64: 2>, scalar_prefetch = 0 : i64, scratch_operands = 0 : i64, tpu.core_type = #tpu.core_type<tc>, window_params = [{transform_indices = @transform_0, window_bounds = array<i64: 1, 32, 44>}, {pipeline_mode = #tpu.pipeline_mode<synchronous>, transform_indices = @transform_1, window_bounds = array<i64: 8, 32>}, {pipeline_mode = #tpu.pipeline_mode<synchronous>, transform_indices = @transform_2, window_bounds = array<i64: 8, 16>}, {pipeline_mode = #tpu.pipeline_mode<synchronous>, transform_indices = @transform_3, window_bounds = array<i64: 8, 24>}, {pipeline_mode = #tpu.pipeline_mode<synchronous>, transform_indices = @transform_4, window_bounds = array<i64: 8, 1>}, {pipeline_mode = #tpu.pipeline_mode<synchronous>, transform_indices = @transform_5, window_bounds = array<i64: 8, 1>}, {pipeline_mode = #tpu.pipeline_mode<synchronous>, transform_indices = @transform_6, window_bounds = array<i64: 8, 1>}, {pipeline_mode = #tpu.pipeline_mode<synchronous>, transform_indices = @transform_7, window_bounds = array<i64: 8, 1>}, {pipeline_mode = #tpu.pipeline_mode<synchronous>, transform_indices = @transform_8, window_bounds = array<i64: 8, 1>}, {pipeline_mode = #tpu.pipeline_mode<synchronous>, transform_indices = @transform_9, window_bounds = array<i64: 8, 1>}, {pipeline_mode = #tpu.pipeline_mode<synchronous>, transform_indices = @transform_10, window_bounds = array<i64: 8, 1>}, {pipeline_mode = #tpu.pipeline_mode<synchronous>, transform_indices = @transform_11, window_bounds = array<i64: 44, 22>}, {pipeline_mode = #tpu.pipeline_mode<synchronous>, transform_indices = @transform_12, window_bounds = array<i64: 22, 5>}, {transform_indices = @transform_13, window_bounds = array<i64: 1, 8, 5>}]} {
    %c0 = arith.constant 0 : index
    %c0_0 = arith.constant 0 : index
    %c0_1 = arith.constant 0 : index
    %0 = vector.load %arg1[%c0, %c0_0, %c0_1] : memref<1x32x44xbf16, #tpu.memory_space<vmem>>, vector<1x32x44xbf16>
    %1 = vector.shape_cast %0 : vector<1x32x44xbf16> to vector<32x44xbf16>
    %c0_2 = arith.constant 0 : index
    %c0_3 = arith.constant 0 : index
    %2 = vector.load %arg12[%c0_2, %c0_3] : memref<44x22xf32, #tpu.memory_space<vmem>>, vector<44x22xf32>
    %c0_4 = arith.constant 0 : index
    %c0_5 = arith.constant 0 : index
    %3 = vector.load %arg2[%c0_4, %c0_5] : memref<8x32xbf16, #tpu.memory_space<vmem>>, vector<8x32xbf16>
    %cst = arith.constant dense<0.000000e+00> : vector<8x44xf32>
    %4 = tpu.matmul %3, %1, %cst {dimension_numbers = #tpu.dot_dimension_numbers<[1], [0], [0], [1], [0, 0, 1, 1], [], []>} : vector<8x32xbf16>, vector<32x44xbf16>, vector<8x44xf32> -> vector<8x44xf32>
    %c0_6 = arith.constant 0 : index
    %c0_7 = arith.constant 0 : index
    %5 = vector.load %arg5[%c0_6, %c0_7] : memref<8x1xf32, #tpu.memory_space<vmem>>, vector<8x1xf32>
    %6 = vector.broadcast %5 : vector<8x1xf32> to vector<8x44xf32>
    %7 = arith.addf %4, %6 : vector<8x44xf32>
    %c0_8 = arith.constant 0 : index
    %c0_9 = arith.constant 0 : index
    %8 = vector.load %arg3[%c0_8, %c0_9] : memref<8x16xbf16, #tpu.memory_space<vmem>>, vector<8x16xbf16>
    %9 = vector.extract_strided_slice %1 {offsets = [0, 0], sizes = [16, 44], strides = [1, 1]} : vector<32x44xbf16> to vector<16x44xbf16>
    %cst_10 = arith.constant dense<0.000000e+00> : vector<8x44xf32>
    %10 = tpu.matmul %8, %9, %cst_10 {dimension_numbers = #tpu.dot_dimension_numbers<[1], [0], [0], [1], [0, 0, 1, 1], [], []>} : vector<8x16xbf16>, vector<16x44xbf16>, vector<8x44xf32> -> vector<8x44xf32>
    %c0_11 = arith.constant 0 : index
    %c0_12 = arith.constant 0 : index
    %11 = vector.load %arg6[%c0_11, %c0_12] : memref<8x1xf32, #tpu.memory_space<vmem>>, vector<8x1xf32>
    %12 = vector.broadcast %11 : vector<8x1xf32> to vector<8x44xf32>
    %13 = arith.addf %10, %12 : vector<8x44xf32>
    %c0_13 = arith.constant 0 : index
    %c0_14 = arith.constant 0 : index
    %14 = vector.load %arg3[%c0_13, %c0_14] : memref<8x16xbf16, #tpu.memory_space<vmem>>, vector<8x16xbf16>
    %15 = vector.extract_strided_slice %1 {offsets = [16, 0], sizes = [16, 44], strides = [1, 1]} : vector<32x44xbf16> to vector<16x44xbf16>
    %cst_15 = arith.constant dense<0.000000e+00> : vector<8x44xf32>
    %16 = tpu.matmul %14, %15, %cst_15 {dimension_numbers = #tpu.dot_dimension_numbers<[1], [0], [0], [1], [0, 0, 1, 1], [], []>} : vector<8x16xbf16>, vector<16x44xbf16>, vector<8x44xf32> -> vector<8x44xf32>
    %c0_16 = arith.constant 0 : index
    %c0_17 = arith.constant 0 : index
    %17 = vector.load %arg6[%c0_16, %c0_17] : memref<8x1xf32, #tpu.memory_space<vmem>>, vector<8x1xf32>
    %18 = vector.broadcast %17 : vector<8x1xf32> to vector<8x44xf32>
    %19 = arith.addf %16, %18 : vector<8x44xf32>
    %cst_18 = arith.constant 0.000000e+00 : f32
    %20 = vector.broadcast %cst_18 : f32 to vector<8x44xf32>
    %21 = arith.cmpf oge, %7, %20 : vector<8x44xf32>
    %cst_19 = arith.constant 0.00999999977 : f32
    %22 = vector.broadcast %cst_19 : f32 to vector<8x44xf32>
    %23 = arith.mulf %22, %7 : vector<8x44xf32>
    %24 = arith.select %21, %7, %23 : vector<8x44xi1>, vector<8x44xf32>
    %cst_20 = arith.constant dense<0.000000e+00> : vector<8x22xf32>
    %25 = tpu.matmul %24, %2, %cst_20 {dimension_numbers = #tpu.dot_dimension_numbers<[1], [0], [0], [1], [0, 0, 1, 1], [], []>} : vector<8x44xf32>, vector<44x22xf32>, vector<8x22xf32> -> vector<8x22xf32>
    %c0_21 = arith.constant 0 : index
    %c0_22 = arith.constant 0 : index
    %26 = vector.load %arg8[%c0_21, %c0_22] : memref<8x1xf32, #tpu.memory_space<vmem>>, vector<8x1xf32>
    %27 = vector.broadcast %26 : vector<8x1xf32> to vector<8x22xf32>
    %28 = arith.mulf %25, %27 : vector<8x22xf32>
    %c0_23 = arith.constant 0 : index
    %c0_24 = arith.constant 0 : index
    %29 = vector.load %arg9[%c0_23, %c0_24] : memref<8x1xf32, #tpu.memory_space<vmem>>, vector<8x1xf32>
    %30 = vector.broadcast %29 : vector<8x1xf32> to vector<8x22xf32>
    %31 = arith.addf %28, %30 : vector<8x22xf32>
    %cst_25 = arith.constant 0.000000e+00 : f32
    %32 = vector.broadcast %cst_25 : f32 to vector<8x44xf32>
    %33 = arith.cmpf oge, %13, %32 : vector<8x44xf32>
    %cst_26 = arith.constant 0.00999999977 : f32
    %34 = vector.broadcast %cst_26 : f32 to vector<8x44xf32>
    %35 = arith.mulf %34, %13 : vector<8x44xf32>
    %36 = arith.select %33, %13, %35 : vector<8x44xi1>, vector<8x44xf32>
    %cst_27 = arith.constant dense<0.000000e+00> : vector<8x22xf32>
    %37 = tpu.matmul %36, %2, %cst_27 {dimension_numbers = #tpu.dot_dimension_numbers<[1], [0], [0], [1], [0, 0, 1, 1], [], []>} : vector<8x44xf32>, vector<44x22xf32>, vector<8x22xf32> -> vector<8x22xf32>
    %c0_28 = arith.constant 0 : index
    %c0_29 = arith.constant 0 : index
    %38 = vector.load %arg8[%c0_28, %c0_29] : memref<8x1xf32, #tpu.memory_space<vmem>>, vector<8x1xf32>
    %39 = vector.broadcast %38 : vector<8x1xf32> to vector<8x22xf32>
    %40 = arith.mulf %37, %39 : vector<8x22xf32>
    %c0_30 = arith.constant 0 : index
    %c0_31 = arith.constant 0 : index
    %41 = vector.load %arg9[%c0_30, %c0_31] : memref<8x1xf32, #tpu.memory_space<vmem>>, vector<8x1xf32>
    %42 = vector.broadcast %41 : vector<8x1xf32> to vector<8x22xf32>
    %43 = arith.addf %40, %42 : vector<8x22xf32>
    %cst_32 = arith.constant 0.000000e+00 : f32
    %44 = vector.broadcast %cst_32 : f32 to vector<8x44xf32>
    %45 = arith.cmpf oge, %19, %44 : vector<8x44xf32>
    %cst_33 = arith.constant 0.00999999977 : f32
    %46 = vector.broadcast %cst_33 : f32 to vector<8x44xf32>
    %47 = arith.mulf %46, %19 : vector<8x44xf32>
    %48 = arith.select %45, %19, %47 : vector<8x44xi1>, vector<8x44xf32>
    %cst_34 = arith.constant dense<0.000000e+00> : vector<8x22xf32>
    %49 = tpu.matmul %48, %2, %cst_34 {dimension_numbers = #tpu.dot_dimension_numbers<[1], [0], [0], [1], [0, 0, 1, 1], [], []>} : vector<8x44xf32>, vector<44x22xf32>, vector<8x22xf32> -> vector<8x22xf32>
    %c0_35 = arith.constant 0 : index
    %c0_36 = arith.constant 0 : index
    %50 = vector.load %arg8[%c0_35, %c0_36] : memref<8x1xf32, #tpu.memory_space<vmem>>, vector<8x1xf32>
    %51 = vector.broadcast %50 : vector<8x1xf32> to vector<8x22xf32>
    %52 = arith.mulf %49, %51 : vector<8x22xf32>
    %c0_37 = arith.constant 0 : index
    %c0_38 = arith.constant 0 : index
    %53 = vector.load %arg9[%c0_37, %c0_38] : memref<8x1xf32, #tpu.memory_space<vmem>>, vector<8x1xf32>
    %54 = vector.broadcast %53 : vector<8x1xf32> to vector<8x22xf32>
    %55 = arith.addf %52, %54 : vector<8x22xf32>
    %c0_39 = arith.constant 0 : index
    %c0_40 = arith.constant 0 : index
    %56 = vector.load %arg4[%c0_39, %c0_40] : memref<8x24xbf16, #tpu.memory_space<vmem>>, vector<8x24xbf16>
    %57 = vector.extract_strided_slice %56 {offsets = [0, 0], sizes = [8, 8], strides = [1, 1]} : vector<8x24xbf16> to vector<8x8xbf16>
    %58 = arith.truncf %31 : vector<8x22xf32> to vector<8x22xbf16>
    %cst_41 = arith.constant dense<0.000000e+00> : vector<8x22xf32>
    %59 = tpu.matmul %57, %58, %cst_41 {dimension_numbers = #tpu.dot_dimension_numbers<[1], [0], [0], [1], [0, 0, 1, 1], [], []>} : vector<8x8xbf16>, vector<8x22xbf16>, vector<8x22xf32> -> vector<8x22xf32>
    %60 = vector.extract_strided_slice %56 {offsets = [0, 8], sizes = [8, 8], strides = [1, 1]} : vector<8x24xbf16> to vector<8x8xbf16>
    %61 = arith.truncf %43 : vector<8x22xf32> to vector<8x22xbf16>
    %cst_42 = arith.constant dense<0.000000e+00> : vector<8x22xf32>
    %62 = tpu.matmul %60, %61, %cst_42 {dimension_numbers = #tpu.dot_dimension_numbers<[1], [0], [0], [1], [0, 0, 1, 1], [], []>} : vector<8x8xbf16>, vector<8x22xbf16>, vector<8x22xf32> -> vector<8x22xf32>
    %63 = arith.addf %59, %62 : vector<8x22xf32>
    %64 = vector.extract_strided_slice %56 {offsets = [0, 16], sizes = [8, 8], strides = [1, 1]} : vector<8x24xbf16> to vector<8x8xbf16>
    %65 = arith.truncf %55 : vector<8x22xf32> to vector<8x22xbf16>
    %cst_43 = arith.constant dense<0.000000e+00> : vector<8x22xf32>
    %66 = tpu.matmul %64, %65, %cst_43 {dimension_numbers = #tpu.dot_dimension_numbers<[1], [0], [0], [1], [0, 0, 1, 1], [], []>} : vector<8x8xbf16>, vector<8x22xbf16>, vector<8x22xf32> -> vector<8x22xf32>
    %67 = arith.addf %63, %66 : vector<8x22xf32>
    %c0_44 = arith.constant 0 : index
    %c0_45 = arith.constant 0 : index
    %68 = vector.load %arg7[%c0_44, %c0_45] : memref<8x1xf32, #tpu.memory_space<vmem>>, vector<8x1xf32>
    %69 = vector.broadcast %68 : vector<8x1xf32> to vector<8x22xf32>
    %70 = arith.addf %67, %69 : vector<8x22xf32>
    %cst_46 = arith.constant 0.000000e+00 : f32
    %71 = vector.broadcast %cst_46 : f32 to vector<8x22xf32>
    %72 = arith.cmpf oge, %70, %71 : vector<8x22xf32>
    %cst_47 = arith.constant 0.00999999977 : f32
    %73 = vector.broadcast %cst_47 : f32 to vector<8x22xf32>
    %74 = arith.mulf %73, %70 : vector<8x22xf32>
    %75 = arith.select %72, %70, %74 : vector<8x22xi1>, vector<8x22xf32>
    %c0_48 = arith.constant 0 : index
    %c0_49 = arith.constant 0 : index
    %76 = vector.load %arg13[%c0_48, %c0_49] : memref<22x5xf32, #tpu.memory_space<vmem>>, vector<22x5xf32>
    %cst_50 = arith.constant dense<0.000000e+00> : vector<8x5xf32>
    %77 = tpu.matmul %75, %76, %cst_50 {dimension_numbers = #tpu.dot_dimension_numbers<[1], [0], [0], [1], [0, 0, 1, 1], [], []>} : vector<8x22xf32>, vector<22x5xf32>, vector<8x5xf32> -> vector<8x5xf32>
    %c0_51 = arith.constant 0 : index
    %c0_52 = arith.constant 0 : index
    %78 = vector.load %arg10[%c0_51, %c0_52] : memref<8x1xf32, #tpu.memory_space<vmem>>, vector<8x1xf32>
    %79 = vector.broadcast %78 : vector<8x1xf32> to vector<8x5xf32>
    %80 = arith.mulf %77, %79 : vector<8x5xf32>
    %c0_53 = arith.constant 0 : index
    %c0_54 = arith.constant 0 : index
    %81 = vector.load %arg11[%c0_53, %c0_54] : memref<8x1xf32, #tpu.memory_space<vmem>>, vector<8x1xf32>
    %82 = vector.broadcast %81 : vector<8x1xf32> to vector<8x5xf32>
    %83 = arith.addf %80, %82 : vector<8x5xf32>
    %c0_55 = arith.constant 0 : index
    %c0_56 = arith.constant 0 : index
    %c0_57 = arith.constant 0 : index
    %84 = vector.load %arg14[%c0_55, %c0_56, %c0_57] : memref<1x8x5xf32, #tpu.memory_space<vmem>>, vector<1x8x5xf32>
    %85 = vector.shape_cast %84 : vector<1x8x5xf32> to vector<8x5xf32>
    %86 = vector.shape_cast %83 : vector<8x5xf32> to vector<1x8x5xf32>
    tpu.vector_store %arg14[%c0_55, %c0_56, %c0_57], %86 {strides = array<i32>} : memref<1x8x5xf32, #tpu.memory_space<vmem>>, vector<1x8x5xf32>,
    return
  }
  func.func @transform_0(%arg0: i32) -> (i32, i32, i32) {
    %c0_i32 = arith.constant 0 : i32
    %c0_i32_0 = arith.constant 0 : i32
    %c0_i32_1 = arith.constant 0 : i32
    return %arg0, %c0_i32, %c0_i32_0 : i32, i32, i32
  }
  func.func @transform_1(%arg0: i32) -> (i32, i32) {
    %c0_i32 = arith.constant 0 : i32
    %c0_i32_0 = arith.constant 0 : i32
    %c0_i32_1 = arith.constant 0 : i32
    return %c0_i32, %c0_i32_0 : i32, i32
  }
  func.func @transform_2(%arg0: i32) -> (i32, i32) {
    %c0_i32 = arith.constant 0 : i32
    %c0_i32_0 = arith.constant 0 : i32
    %c0_i32_1 = arith.constant 0 : i32
    return %c0_i32, %c0_i32_0 : i32, i32
  }
  func.func @transform_3(%arg0: i32) -> (i32, i32) {
    %c0_i32 = arith.constant 0 : i32
    %c0_i32_0 = arith.constant 0 : i32
    %c0_i32_1 = arith.constant 0 : i32
    return %c0_i32, %c0_i32_0 : i32, i32
  }
  func.func @transform_4(%arg0: i32) -> (i32, i32) {
    %c0_i32 = arith.constant 0 : i32
    %c0_i32_0 = arith.constant 0 : i32
    %c0_i32_1 = arith.constant 0 : i32
    return %c0_i32, %c0_i32_0 : i32, i32
  }
  func.func @transform_5(%arg0: i32) -> (i32, i32) {
    %c0_i32 = arith.constant 0 : i32
    %c0_i32_0 = arith.constant 0 : i32
    %c0_i32_1 = arith.constant 0 : i32
    return %c0_i32, %c0_i32_0 : i32, i32
  }
  func.func @transform_6(%arg0: i32) -> (i32, i32) {
    %c0_i32 = arith.constant 0 : i32
    %c0_i32_0 = arith.constant 0 : i32
    %c0_i32_1 = arith.constant 0 : i32
    return %c0_i32, %c0_i32_0 : i32, i32
  }
  func.func @transform_7(%arg0: i32) -> (i32, i32) {
    %c0_i32 = arith.constant 0 : i32
    %c0_i32_0 = arith.constant 0 : i32
    %c0_i32_1 = arith.constant 0 : i32
    return %c0_i32, %c0_i32_0 : i32, i32
  }
  func.func @transform_8(%arg0: i32) -> (i32, i32) {
    %c0_i32 = arith.constant 0 : i32
    %c0_i32_0 = arith.constant 0 : i32
    %c0_i32_1 = arith.constant 0 : i32
    return %c0_i32, %c0_i32_0 : i32, i32
  }
  func.func @transform_9(%arg0: i32) -> (i32, i32) {
    %c0_i32 = arith.constant 0 : i32
    %c0_i32_0 = arith.constant 0 : i32
    %c0_i32_1 = arith.constant 0 : i32
    return %c0_i32, %c0_i32_0 : i32, i32
  }
  func.func @transform_10(%arg0: i32) -> (i32, i32) {
    %c0_i32 = arith.constant 0 : i32
    %c0_i32_0 = arith.constant 0 : i32
    %c0_i32_1 = arith.constant 0 : i32
    return %c0_i32, %c0_i32_0 : i32, i32
  }
  func.func @transform_11(%arg0: i32) -> (i32, i32) {
    %c0_i32 = arith.constant 0 : i32
    %c0_i32_0 = arith.constant 0 : i32
    %c0_i32_1 = arith.constant 0 : i32
    return %c0_i32, %c0_i32_0 : i32, i32
  }
  func.func @transform_12(%arg0: i32) -> (i32, i32) {
    %c0_i32 = arith.constant 0 : i32
    %c0_i32_0 = arith.constant 0 : i32
    %c0_i32_1 = arith.constant 0 : i32
    return %c0_i32, %c0_i32_0 : i32, i32
  }
  func.func @transform_13(%arg0: i32) -> (i32, i32, i32) {
    %c0_i32 = arith.constant 0 : i32
    %c0_i32_0 = arith.constant 0 : i32
    %c0_i32_1 = arith.constant 0 : i32
    return %arg0, %c0_i32, %c0_i32_0 : i32, i32, i32
  }
}

module attributes {stable_mosaic.version = 11 : i64} {
  func.func @temporal_kernel(%arg0: i32, %arg1: memref<1x4x256xbf16, #tpu.memory_space<vmem>>, %arg2: memref<24x16xbf16, #tpu.memory_space<vmem>>, %arg3: memref<120x15xf32, #tpu.memory_space<vmem>>, %arg4: memref<24x1xf32, #tpu.memory_space<vmem>>, %arg5: memref<24x1xf32, #tpu.memory_space<vmem>>, %arg6: memref<24x1xf32, #tpu.memory_space<vmem>>, %arg7: memref<1x32x44xbf16, #tpu.memory_space<vmem>>, %arg8: memref<16x120xbf16, #tpu.memory_space<vmem>>) attributes {dimension_semantics = [#tpu.dimension_semantics<parallel>], iteration_bounds = array<i64: 2>, scalar_prefetch = 0 : i64, scratch_operands = 1 : i64, tpu.core_type = #tpu.core_type<tc>, window_params = [{transform_indices = @transform_0, window_bounds = array<i64: 1, 4, 256>}, {pipeline_mode = #tpu.pipeline_mode<synchronous>, transform_indices = @transform_1, window_bounds = array<i64: 24, 16>}, {pipeline_mode = #tpu.pipeline_mode<synchronous>, transform_indices = @transform_2, window_bounds = array<i64: 120, 15>}, {pipeline_mode = #tpu.pipeline_mode<synchronous>, transform_indices = @transform_3, window_bounds = array<i64: 24, 1>}, {pipeline_mode = #tpu.pipeline_mode<synchronous>, transform_indices = @transform_4, window_bounds = array<i64: 24, 1>}, {pipeline_mode = #tpu.pipeline_mode<synchronous>, transform_indices = @transform_5, window_bounds = array<i64: 24, 1>}, {transform_indices = @transform_6, window_bounds = array<i64: 1, 32, 44>}]} {
    %c0 = arith.constant 0 : index
    %c0_0 = arith.constant 0 : index
    %c0_1 = arith.constant 0 : index
    %0 = vector.load %arg1[%c0, %c0_0, %c0_1] : memref<1x4x256xbf16, #tpu.memory_space<vmem>>, vector<1x4x256xbf16>
    %1 = vector.shape_cast %0 : vector<1x4x256xbf16> to vector<4x256xbf16>
    %2 = vector.extract_strided_slice %1 {offsets = [0, 0], sizes = [1, 120], strides = [1, 1]} : vector<4x256xbf16> to vector<1x120xbf16>
    %c0_2 = arith.constant 0 : index
    %c0_3 = arith.constant 0 : index
    %3 = vector.load %arg8[%c0_2, %c0_3] : memref<16x120xbf16, #tpu.memory_space<vmem>>, vector<1x120xbf16>
    tpu.vector_store %arg8[%c0_2, %c0_3], %2 {strides = array<i32>} : memref<16x120xbf16, #tpu.memory_space<vmem>>, vector<1x120xbf16>,
    %4 = vector.extract_strided_slice %1 {offsets = [0, 1], sizes = [1, 120], strides = [1, 1]} : vector<4x256xbf16> to vector<1x120xbf16>
    %c1 = arith.constant 1 : index
    %c0_4 = arith.constant 0 : index
    %5 = vector.load %arg8[%c1, %c0_4] : memref<16x120xbf16, #tpu.memory_space<vmem>>, vector<1x120xbf16>
    tpu.vector_store %arg8[%c1, %c0_4], %4 {strides = array<i32>} : memref<16x120xbf16, #tpu.memory_space<vmem>>, vector<1x120xbf16>,
    %6 = vector.extract_strided_slice %1 {offsets = [0, 2], sizes = [1, 120], strides = [1, 1]} : vector<4x256xbf16> to vector<1x120xbf16>
    %c2 = arith.constant 2 : index
    %c0_5 = arith.constant 0 : index
    %7 = vector.load %arg8[%c2, %c0_5] : memref<16x120xbf16, #tpu.memory_space<vmem>>, vector<1x120xbf16>
    tpu.vector_store %arg8[%c2, %c0_5], %6 {strides = array<i32>} : memref<16x120xbf16, #tpu.memory_space<vmem>>, vector<1x120xbf16>,
    %8 = vector.extract_strided_slice %1 {offsets = [0, 3], sizes = [1, 120], strides = [1, 1]} : vector<4x256xbf16> to vector<1x120xbf16>
    %c3 = arith.constant 3 : index
    %c0_6 = arith.constant 0 : index
    %9 = vector.load %arg8[%c3, %c0_6] : memref<16x120xbf16, #tpu.memory_space<vmem>>, vector<1x120xbf16>
    tpu.vector_store %arg8[%c3, %c0_6], %8 {strides = array<i32>} : memref<16x120xbf16, #tpu.memory_space<vmem>>, vector<1x120xbf16>,
    %10 = vector.extract_strided_slice %1 {offsets = [0, 4], sizes = [1, 120], strides = [1, 1]} : vector<4x256xbf16> to vector<1x120xbf16>
    %c4 = arith.constant 4 : index
    %c0_7 = arith.constant 0 : index
    %11 = vector.load %arg8[%c4, %c0_7] : memref<16x120xbf16, #tpu.memory_space<vmem>>, vector<1x120xbf16>
    tpu.vector_store %arg8[%c4, %c0_7], %10 {strides = array<i32>} : memref<16x120xbf16, #tpu.memory_space<vmem>>, vector<1x120xbf16>,
    %12 = vector.extract_strided_slice %1 {offsets = [0, 5], sizes = [1, 120], strides = [1, 1]} : vector<4x256xbf16> to vector<1x120xbf16>
    %c5 = arith.constant 5 : index
    %c0_8 = arith.constant 0 : index
    %13 = vector.load %arg8[%c5, %c0_8] : memref<16x120xbf16, #tpu.memory_space<vmem>>, vector<1x120xbf16>
    tpu.vector_store %arg8[%c5, %c0_8], %12 {strides = array<i32>} : memref<16x120xbf16, #tpu.memory_space<vmem>>, vector<1x120xbf16>,
    %14 = vector.extract_strided_slice %1 {offsets = [0, 6], sizes = [1, 120], strides = [1, 1]} : vector<4x256xbf16> to vector<1x120xbf16>
    %c6 = arith.constant 6 : index
    %c0_9 = arith.constant 0 : index
    %15 = vector.load %arg8[%c6, %c0_9] : memref<16x120xbf16, #tpu.memory_space<vmem>>, vector<1x120xbf16>
    tpu.vector_store %arg8[%c6, %c0_9], %14 {strides = array<i32>} : memref<16x120xbf16, #tpu.memory_space<vmem>>, vector<1x120xbf16>,
    %16 = vector.extract_strided_slice %1 {offsets = [0, 7], sizes = [1, 120], strides = [1, 1]} : vector<4x256xbf16> to vector<1x120xbf16>
    %c7 = arith.constant 7 : index
    %c0_10 = arith.constant 0 : index
    %17 = vector.load %arg8[%c7, %c0_10] : memref<16x120xbf16, #tpu.memory_space<vmem>>, vector<1x120xbf16>
    tpu.vector_store %arg8[%c7, %c0_10], %16 {strides = array<i32>} : memref<16x120xbf16, #tpu.memory_space<vmem>>, vector<1x120xbf16>,
    %18 = vector.extract_strided_slice %1 {offsets = [0, 8], sizes = [1, 120], strides = [1, 1]} : vector<4x256xbf16> to vector<1x120xbf16>
    %c8 = arith.constant 8 : index
    %c0_11 = arith.constant 0 : index
    %19 = vector.load %arg8[%c8, %c0_11] : memref<16x120xbf16, #tpu.memory_space<vmem>>, vector<1x120xbf16>
    tpu.vector_store %arg8[%c8, %c0_11], %18 {strides = array<i32>} : memref<16x120xbf16, #tpu.memory_space<vmem>>, vector<1x120xbf16>,
    %20 = vector.extract_strided_slice %1 {offsets = [0, 9], sizes = [1, 120], strides = [1, 1]} : vector<4x256xbf16> to vector<1x120xbf16>
    %c9 = arith.constant 9 : index
    %c0_12 = arith.constant 0 : index
    %21 = vector.load %arg8[%c9, %c0_12] : memref<16x120xbf16, #tpu.memory_space<vmem>>, vector<1x120xbf16>
    tpu.vector_store %arg8[%c9, %c0_12], %20 {strides = array<i32>} : memref<16x120xbf16, #tpu.memory_space<vmem>>, vector<1x120xbf16>,
    %22 = vector.extract_strided_slice %1 {offsets = [0, 10], sizes = [1, 120], strides = [1, 1]} : vector<4x256xbf16> to vector<1x120xbf16>
    %c10 = arith.constant 10 : index
    %c0_13 = arith.constant 0 : index
    %23 = vector.load %arg8[%c10, %c0_13] : memref<16x120xbf16, #tpu.memory_space<vmem>>, vector<1x120xbf16>
    tpu.vector_store %arg8[%c10, %c0_13], %22 {strides = array<i32>} : memref<16x120xbf16, #tpu.memory_space<vmem>>, vector<1x120xbf16>,
    %24 = vector.extract_strided_slice %1 {offsets = [0, 11], sizes = [1, 120], strides = [1, 1]} : vector<4x256xbf16> to vector<1x120xbf16>
    %c11 = arith.constant 11 : index
    %c0_14 = arith.constant 0 : index
    %25 = vector.load %arg8[%c11, %c0_14] : memref<16x120xbf16, #tpu.memory_space<vmem>>, vector<1x120xbf16>
    tpu.vector_store %arg8[%c11, %c0_14], %24 {strides = array<i32>} : memref<16x120xbf16, #tpu.memory_space<vmem>>, vector<1x120xbf16>,
    %26 = vector.extract_strided_slice %1 {offsets = [0, 12], sizes = [1, 120], strides = [1, 1]} : vector<4x256xbf16> to vector<1x120xbf16>
    %c12 = arith.constant 12 : index
    %c0_15 = arith.constant 0 : index
    %27 = vector.load %arg8[%c12, %c0_15] : memref<16x120xbf16, #tpu.memory_space<vmem>>, vector<1x120xbf16>
    tpu.vector_store %arg8[%c12, %c0_15], %26 {strides = array<i32>} : memref<16x120xbf16, #tpu.memory_space<vmem>>, vector<1x120xbf16>,
    %28 = vector.extract_strided_slice %1 {offsets = [0, 13], sizes = [1, 120], strides = [1, 1]} : vector<4x256xbf16> to vector<1x120xbf16>
    %c13 = arith.constant 13 : index
    %c0_16 = arith.constant 0 : index
    %29 = vector.load %arg8[%c13, %c0_16] : memref<16x120xbf16, #tpu.memory_space<vmem>>, vector<1x120xbf16>
    tpu.vector_store %arg8[%c13, %c0_16], %28 {strides = array<i32>} : memref<16x120xbf16, #tpu.memory_space<vmem>>, vector<1x120xbf16>,
    %30 = vector.extract_strided_slice %1 {offsets = [0, 14], sizes = [1, 120], strides = [1, 1]} : vector<4x256xbf16> to vector<1x120xbf16>
    %c14 = arith.constant 14 : index
    %c0_17 = arith.constant 0 : index
    %31 = vector.load %arg8[%c14, %c0_17] : memref<16x120xbf16, #tpu.memory_space<vmem>>, vector<1x120xbf16>
    tpu.vector_store %arg8[%c14, %c0_17], %30 {strides = array<i32>} : memref<16x120xbf16, #tpu.memory_space<vmem>>, vector<1x120xbf16>,
    %32 = vector.extract_strided_slice %1 {offsets = [0, 15], sizes = [1, 120], strides = [1, 1]} : vector<4x256xbf16> to vector<1x120xbf16>
    %c15 = arith.constant 15 : index
    %c0_18 = arith.constant 0 : index
    %33 = vector.load %arg8[%c15, %c0_18] : memref<16x120xbf16, #tpu.memory_space<vmem>>, vector<1x120xbf16>
    tpu.vector_store %arg8[%c15, %c0_18], %32 {strides = array<i32>} : memref<16x120xbf16, #tpu.memory_space<vmem>>, vector<1x120xbf16>,
    %c0_19 = arith.constant 0 : index
    %c0_20 = arith.constant 0 : index
    %34 = vector.load %arg2[%c0_19, %c0_20] : memref<24x16xbf16, #tpu.memory_space<vmem>>, vector<24x16xbf16>
    %c0_21 = arith.constant 0 : index
    %c0_22 = arith.constant 0 : index
    %35 = vector.load %arg8[%c0_21, %c0_22] : memref<16x120xbf16, #tpu.memory_space<vmem>>, vector<16x120xbf16>
    %cst = arith.constant dense<0.000000e+00> : vector<24x120xf32>
    %36 = tpu.matmul %34, %35, %cst {dimension_numbers = #tpu.dot_dimension_numbers<[1], [0], [0], [1], [0, 0, 1, 1], [], []>} : vector<24x16xbf16>, vector<16x120xbf16>, vector<24x120xf32> -> vector<24x120xf32>
    %c0_23 = arith.constant 0 : index
    %c0_24 = arith.constant 0 : index
    %37 = vector.load %arg4[%c0_23, %c0_24] : memref<24x1xf32, #tpu.memory_space<vmem>>, vector<24x1xf32>
    %38 = vector.broadcast %37 : vector<24x1xf32> to vector<24x120xf32>
    %39 = arith.addf %36, %38 : vector<24x120xf32>
    %cst_25 = arith.constant 0.000000e+00 : f32
    %40 = vector.broadcast %cst_25 : f32 to vector<24x120xf32>
    %41 = arith.cmpf oge, %39, %40 : vector<24x120xf32>
    %cst_26 = arith.constant 0.00999999977 : f32
    %42 = vector.broadcast %cst_26 : f32 to vector<24x120xf32>
    %43 = arith.mulf %42, %39 : vector<24x120xf32>
    %44 = arith.select %41, %39, %43 : vector<24x120xi1>, vector<24x120xf32>
    %c0_27 = arith.constant 0 : index
    %c0_28 = arith.constant 0 : index
    %45 = vector.load %arg3[%c0_27, %c0_28] : memref<120x15xf32, #tpu.memory_space<vmem>>, vector<120x15xf32>
    %cst_29 = arith.constant dense<0.000000e+00> : vector<24x15xf32>
    %46 = tpu.matmul %44, %45, %cst_29 {dimension_numbers = #tpu.dot_dimension_numbers<[1], [0], [0], [1], [0, 0, 1, 1], [], []>} : vector<24x120xf32>, vector<120x15xf32>, vector<24x15xf32> -> vector<24x15xf32>
    %c0_30 = arith.constant 0 : index
    %c0_31 = arith.constant 0 : index
    %47 = vector.load %arg5[%c0_30, %c0_31] : memref<24x1xf32, #tpu.memory_space<vmem>>, vector<24x1xf32>
    %48 = vector.broadcast %47 : vector<24x1xf32> to vector<24x15xf32>
    %49 = arith.mulf %46, %48 : vector<24x15xf32>
    %c0_32 = arith.constant 0 : index
    %c0_33 = arith.constant 0 : index
    %50 = vector.load %arg6[%c0_32, %c0_33] : memref<24x1xf32, #tpu.memory_space<vmem>>, vector<24x1xf32>
    %51 = vector.broadcast %50 : vector<24x1xf32> to vector<24x15xf32>
    %52 = arith.addf %49, %51 : vector<24x15xf32>
    %53 = vector.extract_strided_slice %52 {offsets = [0, 0], sizes = [8, 14], strides = [1, 1]} : vector<24x15xf32> to vector<8x14xf32>
    %54 = arith.truncf %53 : vector<8x14xf32> to vector<8x14xbf16>
    %c0_34 = arith.constant 0 : index
    %c0_35 = arith.constant 0 : index
    %c0_36 = arith.constant 0 : index
    %55 = vector.load %arg7[%c0_34, %c0_35, %c0_36] : memref<1x32x44xbf16, #tpu.memory_space<vmem>>, vector<1x8x14xbf16>
    %56 = vector.shape_cast %55 : vector<1x8x14xbf16> to vector<8x14xbf16>
    %57 = vector.shape_cast %54 : vector<8x14xbf16> to vector<1x8x14xbf16>
    tpu.vector_store %arg7[%c0_34, %c0_35, %c0_36], %57 {strides = array<i32>} : memref<1x32x44xbf16, #tpu.memory_space<vmem>>, vector<1x8x14xbf16>,
    %58 = vector.extract_strided_slice %52 {offsets = [8, 0], sizes = [8, 15], strides = [1, 1]} : vector<24x15xf32> to vector<8x15xf32>
    %59 = arith.truncf %58 : vector<8x15xf32> to vector<8x15xbf16>
    %c0_37 = arith.constant 0 : index
    %c0_38 = arith.constant 0 : index
    %c14_39 = arith.constant 14 : index
    %60 = vector.load %arg7[%c0_37, %c0_38, %c14_39] : memref<1x32x44xbf16, #tpu.memory_space<vmem>>, vector<1x8x15xbf16>
    %61 = vector.shape_cast %60 : vector<1x8x15xbf16> to vector<8x15xbf16>
    %62 = vector.shape_cast %59 : vector<8x15xbf16> to vector<1x8x15xbf16>
    tpu.vector_store %arg7[%c0_37, %c0_38, %c14_39], %62 {strides = array<i32>} : memref<1x32x44xbf16, #tpu.memory_space<vmem>>, vector<1x8x15xbf16>,
    %63 = vector.extract_strided_slice %52 {offsets = [16, 0], sizes = [8, 15], strides = [1, 1]} : vector<24x15xf32> to vector<8x15xf32>
    %64 = arith.truncf %63 : vector<8x15xf32> to vector<8x15xbf16>
    %c0_40 = arith.constant 0 : index
    %c0_41 = arith.constant 0 : index
    %c29 = arith.constant 29 : index
    %65 = vector.load %arg7[%c0_40, %c0_41, %c29] : memref<1x32x44xbf16, #tpu.memory_space<vmem>>, vector<1x8x15xbf16>
    %66 = vector.shape_cast %65 : vector<1x8x15xbf16> to vector<8x15xbf16>
    %67 = vector.shape_cast %64 : vector<8x15xbf16> to vector<1x8x15xbf16>
    tpu.vector_store %arg7[%c0_40, %c0_41, %c29], %67 {strides = array<i32>} : memref<1x32x44xbf16, #tpu.memory_space<vmem>>, vector<1x8x15xbf16>,
    %68 = vector.extract_strided_slice %1 {offsets = [1, 0], sizes = [1, 120], strides = [1, 1]} : vector<4x256xbf16> to vector<1x120xbf16>
    %c0_42 = arith.constant 0 : index
    %c0_43 = arith.constant 0 : index
    %69 = vector.load %arg8[%c0_42, %c0_43] : memref<16x120xbf16, #tpu.memory_space<vmem>>, vector<1x120xbf16>
    tpu.vector_store %arg8[%c0_42, %c0_43], %68 {strides = array<i32>} : memref<16x120xbf16, #tpu.memory_space<vmem>>, vector<1x120xbf16>,
    %70 = vector.extract_strided_slice %1 {offsets = [1, 1], sizes = [1, 120], strides = [1, 1]} : vector<4x256xbf16> to vector<1x120xbf16>
    %c1_44 = arith.constant 1 : index
    %c0_45 = arith.constant 0 : index
    %71 = vector.load %arg8[%c1_44, %c0_45] : memref<16x120xbf16, #tpu.memory_space<vmem>>, vector<1x120xbf16>
    tpu.vector_store %arg8[%c1_44, %c0_45], %70 {strides = array<i32>} : memref<16x120xbf16, #tpu.memory_space<vmem>>, vector<1x120xbf16>,
    %72 = vector.extract_strided_slice %1 {offsets = [1, 2], sizes = [1, 120], strides = [1, 1]} : vector<4x256xbf16> to vector<1x120xbf16>
    %c2_46 = arith.constant 2 : index
    %c0_47 = arith.constant 0 : index
    %73 = vector.load %arg8[%c2_46, %c0_47] : memref<16x120xbf16, #tpu.memory_space<vmem>>, vector<1x120xbf16>
    tpu.vector_store %arg8[%c2_46, %c0_47], %72 {strides = array<i32>} : memref<16x120xbf16, #tpu.memory_space<vmem>>, vector<1x120xbf16>,
    %74 = vector.extract_strided_slice %1 {offsets = [1, 3], sizes = [1, 120], strides = [1, 1]} : vector<4x256xbf16> to vector<1x120xbf16>
    %c3_48 = arith.constant 3 : index
    %c0_49 = arith.constant 0 : index
    %75 = vector.load %arg8[%c3_48, %c0_49] : memref<16x120xbf16, #tpu.memory_space<vmem>>, vector<1x120xbf16>
    tpu.vector_store %arg8[%c3_48, %c0_49], %74 {strides = array<i32>} : memref<16x120xbf16, #tpu.memory_space<vmem>>, vector<1x120xbf16>,
    %76 = vector.extract_strided_slice %1 {offsets = [1, 4], sizes = [1, 120], strides = [1, 1]} : vector<4x256xbf16> to vector<1x120xbf16>
    %c4_50 = arith.constant 4 : index
    %c0_51 = arith.constant 0 : index
    %77 = vector.load %arg8[%c4_50, %c0_51] : memref<16x120xbf16, #tpu.memory_space<vmem>>, vector<1x120xbf16>
    tpu.vector_store %arg8[%c4_50, %c0_51], %76 {strides = array<i32>} : memref<16x120xbf16, #tpu.memory_space<vmem>>, vector<1x120xbf16>,
    %78 = vector.extract_strided_slice %1 {offsets = [1, 5], sizes = [1, 120], strides = [1, 1]} : vector<4x256xbf16> to vector<1x120xbf16>
    %c5_52 = arith.constant 5 : index
    %c0_53 = arith.constant 0 : index
    %79 = vector.load %arg8[%c5_52, %c0_53] : memref<16x120xbf16, #tpu.memory_space<vmem>>, vector<1x120xbf16>
    tpu.vector_store %arg8[%c5_52, %c0_53], %78 {strides = array<i32>} : memref<16x120xbf16, #tpu.memory_space<vmem>>, vector<1x120xbf16>,
    %80 = vector.extract_strided_slice %1 {offsets = [1, 6], sizes = [1, 120], strides = [1, 1]} : vector<4x256xbf16> to vector<1x120xbf16>
    %c6_54 = arith.constant 6 : index
    %c0_55 = arith.constant 0 : index
    %81 = vector.load %arg8[%c6_54, %c0_55] : memref<16x120xbf16, #tpu.memory_space<vmem>>, vector<1x120xbf16>
    tpu.vector_store %arg8[%c6_54, %c0_55], %80 {strides = array<i32>} : memref<16x120xbf16, #tpu.memory_space<vmem>>, vector<1x120xbf16>,
    %82 = vector.extract_strided_slice %1 {offsets = [1, 7], sizes = [1, 120], strides = [1, 1]} : vector<4x256xbf16> to vector<1x120xbf16>
    %c7_56 = arith.constant 7 : index
    %c0_57 = arith.constant 0 : index
    %83 = vector.load %arg8[%c7_56, %c0_57] : memref<16x120xbf16, #tpu.memory_space<vmem>>, vector<1x120xbf16>
    tpu.vector_store %arg8[%c7_56, %c0_57], %82 {strides = array<i32>} : memref<16x120xbf16, #tpu.memory_space<vmem>>, vector<1x120xbf16>,
    %84 = vector.extract_strided_slice %1 {offsets = [1, 8], sizes = [1, 120], strides = [1, 1]} : vector<4x256xbf16> to vector<1x120xbf16>
    %c8_58 = arith.constant 8 : index
    %c0_59 = arith.constant 0 : index
    %85 = vector.load %arg8[%c8_58, %c0_59] : memref<16x120xbf16, #tpu.memory_space<vmem>>, vector<1x120xbf16>
    tpu.vector_store %arg8[%c8_58, %c0_59], %84 {strides = array<i32>} : memref<16x120xbf16, #tpu.memory_space<vmem>>, vector<1x120xbf16>,
    %86 = vector.extract_strided_slice %1 {offsets = [1, 9], sizes = [1, 120], strides = [1, 1]} : vector<4x256xbf16> to vector<1x120xbf16>
    %c9_60 = arith.constant 9 : index
    %c0_61 = arith.constant 0 : index
    %87 = vector.load %arg8[%c9_60, %c0_61] : memref<16x120xbf16, #tpu.memory_space<vmem>>, vector<1x120xbf16>
    tpu.vector_store %arg8[%c9_60, %c0_61], %86 {strides = array<i32>} : memref<16x120xbf16, #tpu.memory_space<vmem>>, vector<1x120xbf16>,
    %88 = vector.extract_strided_slice %1 {offsets = [1, 10], sizes = [1, 120], strides = [1, 1]} : vector<4x256xbf16> to vector<1x120xbf16>
    %c10_62 = arith.constant 10 : index
    %c0_63 = arith.constant 0 : index
    %89 = vector.load %arg8[%c10_62, %c0_63] : memref<16x120xbf16, #tpu.memory_space<vmem>>, vector<1x120xbf16>
    tpu.vector_store %arg8[%c10_62, %c0_63], %88 {strides = array<i32>} : memref<16x120xbf16, #tpu.memory_space<vmem>>, vector<1x120xbf16>,
    %90 = vector.extract_strided_slice %1 {offsets = [1, 11], sizes = [1, 120], strides = [1, 1]} : vector<4x256xbf16> to vector<1x120xbf16>
    %c11_64 = arith.constant 11 : index
    %c0_65 = arith.constant 0 : index
    %91 = vector.load %arg8[%c11_64, %c0_65] : memref<16x120xbf16, #tpu.memory_space<vmem>>, vector<1x120xbf16>
    tpu.vector_store %arg8[%c11_64, %c0_65], %90 {strides = array<i32>} : memref<16x120xbf16, #tpu.memory_space<vmem>>, vector<1x120xbf16>,
    %92 = vector.extract_strided_slice %1 {offsets = [1, 12], sizes = [1, 120], strides = [1, 1]} : vector<4x256xbf16> to vector<1x120xbf16>
    %c12_66 = arith.constant 12 : index
    %c0_67 = arith.constant 0 : index
    %93 = vector.load %arg8[%c12_66, %c0_67] : memref<16x120xbf16, #tpu.memory_space<vmem>>, vector<1x120xbf16>
    tpu.vector_store %arg8[%c12_66, %c0_67], %92 {strides = array<i32>} : memref<16x120xbf16, #tpu.memory_space<vmem>>, vector<1x120xbf16>,
    %94 = vector.extract_strided_slice %1 {offsets = [1, 13], sizes = [1, 120], strides = [1, 1]} : vector<4x256xbf16> to vector<1x120xbf16>
    %c13_68 = arith.constant 13 : index
    %c0_69 = arith.constant 0 : index
    %95 = vector.load %arg8[%c13_68, %c0_69] : memref<16x120xbf16, #tpu.memory_space<vmem>>, vector<1x120xbf16>
    tpu.vector_store %arg8[%c13_68, %c0_69], %94 {strides = array<i32>} : memref<16x120xbf16, #tpu.memory_space<vmem>>, vector<1x120xbf16>,
    %96 = vector.extract_strided_slice %1 {offsets = [1, 14], sizes = [1, 120], strides = [1, 1]} : vector<4x256xbf16> to vector<1x120xbf16>
    %c14_70 = arith.constant 14 : index
    %c0_71 = arith.constant 0 : index
    %97 = vector.load %arg8[%c14_70, %c0_71] : memref<16x120xbf16, #tpu.memory_space<vmem>>, vector<1x120xbf16>
    tpu.vector_store %arg8[%c14_70, %c0_71], %96 {strides = array<i32>} : memref<16x120xbf16, #tpu.memory_space<vmem>>, vector<1x120xbf16>,
    %98 = vector.extract_strided_slice %1 {offsets = [1, 15], sizes = [1, 120], strides = [1, 1]} : vector<4x256xbf16> to vector<1x120xbf16>
    %c15_72 = arith.constant 15 : index
    %c0_73 = arith.constant 0 : index
    %99 = vector.load %arg8[%c15_72, %c0_73] : memref<16x120xbf16, #tpu.memory_space<vmem>>, vector<1x120xbf16>
    tpu.vector_store %arg8[%c15_72, %c0_73], %98 {strides = array<i32>} : memref<16x120xbf16, #tpu.memory_space<vmem>>, vector<1x120xbf16>,
    %c0_74 = arith.constant 0 : index
    %c0_75 = arith.constant 0 : index
    %100 = vector.load %arg2[%c0_74, %c0_75] : memref<24x16xbf16, #tpu.memory_space<vmem>>, vector<24x16xbf16>
    %c0_76 = arith.constant 0 : index
    %c0_77 = arith.constant 0 : index
    %101 = vector.load %arg8[%c0_76, %c0_77] : memref<16x120xbf16, #tpu.memory_space<vmem>>, vector<16x120xbf16>
    %cst_78 = arith.constant dense<0.000000e+00> : vector<24x120xf32>
    %102 = tpu.matmul %100, %101, %cst_78 {dimension_numbers = #tpu.dot_dimension_numbers<[1], [0], [0], [1], [0, 0, 1, 1], [], []>} : vector<24x16xbf16>, vector<16x120xbf16>, vector<24x120xf32> -> vector<24x120xf32>
    %c0_79 = arith.constant 0 : index
    %c0_80 = arith.constant 0 : index
    %103 = vector.load %arg4[%c0_79, %c0_80] : memref<24x1xf32, #tpu.memory_space<vmem>>, vector<24x1xf32>
    %104 = vector.broadcast %103 : vector<24x1xf32> to vector<24x120xf32>
    %105 = arith.addf %102, %104 : vector<24x120xf32>
    %cst_81 = arith.constant 0.000000e+00 : f32
    %106 = vector.broadcast %cst_81 : f32 to vector<24x120xf32>
    %107 = arith.cmpf oge, %105, %106 : vector<24x120xf32>
    %cst_82 = arith.constant 0.00999999977 : f32
    %108 = vector.broadcast %cst_82 : f32 to vector<24x120xf32>
    %109 = arith.mulf %108, %105 : vector<24x120xf32>
    %110 = arith.select %107, %105, %109 : vector<24x120xi1>, vector<24x120xf32>
    %c0_83 = arith.constant 0 : index
    %c0_84 = arith.constant 0 : index
    %111 = vector.load %arg3[%c0_83, %c0_84] : memref<120x15xf32, #tpu.memory_space<vmem>>, vector<120x15xf32>
    %cst_85 = arith.constant dense<0.000000e+00> : vector<24x15xf32>
    %112 = tpu.matmul %110, %111, %cst_85 {dimension_numbers = #tpu.dot_dimension_numbers<[1], [0], [0], [1], [0, 0, 1, 1], [], []>} : vector<24x120xf32>, vector<120x15xf32>, vector<24x15xf32> -> vector<24x15xf32>
    %c0_86 = arith.constant 0 : index
    %c0_87 = arith.constant 0 : index
    %113 = vector.load %arg5[%c0_86, %c0_87] : memref<24x1xf32, #tpu.memory_space<vmem>>, vector<24x1xf32>
    %114 = vector.broadcast %113 : vector<24x1xf32> to vector<24x15xf32>
    %115 = arith.mulf %112, %114 : vector<24x15xf32>
    %c0_88 = arith.constant 0 : index
    %c0_89 = arith.constant 0 : index
    %116 = vector.load %arg6[%c0_88, %c0_89] : memref<24x1xf32, #tpu.memory_space<vmem>>, vector<24x1xf32>
    %117 = vector.broadcast %116 : vector<24x1xf32> to vector<24x15xf32>
    %118 = arith.addf %115, %117 : vector<24x15xf32>
    %119 = vector.extract_strided_slice %118 {offsets = [0, 0], sizes = [8, 14], strides = [1, 1]} : vector<24x15xf32> to vector<8x14xf32>
    %120 = arith.truncf %119 : vector<8x14xf32> to vector<8x14xbf16>
    %c0_90 = arith.constant 0 : index
    %c8_91 = arith.constant 8 : index
    %c0_92 = arith.constant 0 : index
    %121 = vector.load %arg7[%c0_90, %c8_91, %c0_92] : memref<1x32x44xbf16, #tpu.memory_space<vmem>>, vector<1x8x14xbf16>
    %122 = vector.shape_cast %121 : vector<1x8x14xbf16> to vector<8x14xbf16>
    %123 = vector.shape_cast %120 : vector<8x14xbf16> to vector<1x8x14xbf16>
    tpu.vector_store %arg7[%c0_90, %c8_91, %c0_92], %123 {strides = array<i32>} : memref<1x32x44xbf16, #tpu.memory_space<vmem>>, vector<1x8x14xbf16>,
    %124 = vector.extract_strided_slice %118 {offsets = [8, 0], sizes = [8, 15], strides = [1, 1]} : vector<24x15xf32> to vector<8x15xf32>
    %125 = arith.truncf %124 : vector<8x15xf32> to vector<8x15xbf16>
    %c0_93 = arith.constant 0 : index
    %c8_94 = arith.constant 8 : index
    %c14_95 = arith.constant 14 : index
    %126 = vector.load %arg7[%c0_93, %c8_94, %c14_95] : memref<1x32x44xbf16, #tpu.memory_space<vmem>>, vector<1x8x15xbf16>
    %127 = vector.shape_cast %126 : vector<1x8x15xbf16> to vector<8x15xbf16>
    %128 = vector.shape_cast %125 : vector<8x15xbf16> to vector<1x8x15xbf16>
    tpu.vector_store %arg7[%c0_93, %c8_94, %c14_95], %128 {strides = array<i32>} : memref<1x32x44xbf16, #tpu.memory_space<vmem>>, vector<1x8x15xbf16>,
    %129 = vector.extract_strided_slice %118 {offsets = [16, 0], sizes = [8, 15], strides = [1, 1]} : vector<24x15xf32> to vector<8x15xf32>
    %130 = arith.truncf %129 : vector<8x15xf32> to vector<8x15xbf16>
    %c0_96 = arith.constant 0 : index
    %c8_97 = arith.constant 8 : index
    %c29_98 = arith.constant 29 : index
    %131 = vector.load %arg7[%c0_96, %c8_97, %c29_98] : memref<1x32x44xbf16, #tpu.memory_space<vmem>>, vector<1x8x15xbf16>
    %132 = vector.shape_cast %131 : vector<1x8x15xbf16> to vector<8x15xbf16>
    %133 = vector.shape_cast %130 : vector<8x15xbf16> to vector<1x8x15xbf16>
    tpu.vector_store %arg7[%c0_96, %c8_97, %c29_98], %133 {strides = array<i32>} : memref<1x32x44xbf16, #tpu.memory_space<vmem>>, vector<1x8x15xbf16>,
    %134 = vector.extract_strided_slice %1 {offsets = [2, 0], sizes = [1, 120], strides = [1, 1]} : vector<4x256xbf16> to vector<1x120xbf16>
    %c0_99 = arith.constant 0 : index
    %c0_100 = arith.constant 0 : index
    %135 = vector.load %arg8[%c0_99, %c0_100] : memref<16x120xbf16, #tpu.memory_space<vmem>>, vector<1x120xbf16>
    tpu.vector_store %arg8[%c0_99, %c0_100], %134 {strides = array<i32>} : memref<16x120xbf16, #tpu.memory_space<vmem>>, vector<1x120xbf16>,
    %136 = vector.extract_strided_slice %1 {offsets = [2, 1], sizes = [1, 120], strides = [1, 1]} : vector<4x256xbf16> to vector<1x120xbf16>
    %c1_101 = arith.constant 1 : index
    %c0_102 = arith.constant 0 : index
    %137 = vector.load %arg8[%c1_101, %c0_102] : memref<16x120xbf16, #tpu.memory_space<vmem>>, vector<1x120xbf16>
    tpu.vector_store %arg8[%c1_101, %c0_102], %136 {strides = array<i32>} : memref<16x120xbf16, #tpu.memory_space<vmem>>, vector<1x120xbf16>,
    %138 = vector.extract_strided_slice %1 {offsets = [2, 2], sizes = [1, 120], strides = [1, 1]} : vector<4x256xbf16> to vector<1x120xbf16>
    %c2_103 = arith.constant 2 : index
    %c0_104 = arith.constant 0 : index
    %139 = vector.load %arg8[%c2_103, %c0_104] : memref<16x120xbf16, #tpu.memory_space<vmem>>, vector<1x120xbf16>
    tpu.vector_store %arg8[%c2_103, %c0_104], %138 {strides = array<i32>} : memref<16x120xbf16, #tpu.memory_space<vmem>>, vector<1x120xbf16>,
    %140 = vector.extract_strided_slice %1 {offsets = [2, 3], sizes = [1, 120], strides = [1, 1]} : vector<4x256xbf16> to vector<1x120xbf16>
    %c3_105 = arith.constant 3 : index
    %c0_106 = arith.constant 0 : index
    %141 = vector.load %arg8[%c3_105, %c0_106] : memref<16x120xbf16, #tpu.memory_space<vmem>>, vector<1x120xbf16>
    tpu.vector_store %arg8[%c3_105, %c0_106], %140 {strides = array<i32>} : memref<16x120xbf16, #tpu.memory_space<vmem>>, vector<1x120xbf16>,
    %142 = vector.extract_strided_slice %1 {offsets = [2, 4], sizes = [1, 120], strides = [1, 1]} : vector<4x256xbf16> to vector<1x120xbf16>
    %c4_107 = arith.constant 4 : index
    %c0_108 = arith.constant 0 : index
    %143 = vector.load %arg8[%c4_107, %c0_108] : memref<16x120xbf16, #tpu.memory_space<vmem>>, vector<1x120xbf16>
    tpu.vector_store %arg8[%c4_107, %c0_108], %142 {strides = array<i32>} : memref<16x120xbf16, #tpu.memory_space<vmem>>, vector<1x120xbf16>,
    %144 = vector.extract_strided_slice %1 {offsets = [2, 5], sizes = [1, 120], strides = [1, 1]} : vector<4x256xbf16> to vector<1x120xbf16>
    %c5_109 = arith.constant 5 : index
    %c0_110 = arith.constant 0 : index
    %145 = vector.load %arg8[%c5_109, %c0_110] : memref<16x120xbf16, #tpu.memory_space<vmem>>, vector<1x120xbf16>
    tpu.vector_store %arg8[%c5_109, %c0_110], %144 {strides = array<i32>} : memref<16x120xbf16, #tpu.memory_space<vmem>>, vector<1x120xbf16>,
    %146 = vector.extract_strided_slice %1 {offsets = [2, 6], sizes = [1, 120], strides = [1, 1]} : vector<4x256xbf16> to vector<1x120xbf16>
    %c6_111 = arith.constant 6 : index
    %c0_112 = arith.constant 0 : index
    %147 = vector.load %arg8[%c6_111, %c0_112] : memref<16x120xbf16, #tpu.memory_space<vmem>>, vector<1x120xbf16>
    tpu.vector_store %arg8[%c6_111, %c0_112], %146 {strides = array<i32>} : memref<16x120xbf16, #tpu.memory_space<vmem>>, vector<1x120xbf16>,
    %148 = vector.extract_strided_slice %1 {offsets = [2, 7], sizes = [1, 120], strides = [1, 1]} : vector<4x256xbf16> to vector<1x120xbf16>
    %c7_113 = arith.constant 7 : index
    %c0_114 = arith.constant 0 : index
    %149 = vector.load %arg8[%c7_113, %c0_114] : memref<16x120xbf16, #tpu.memory_space<vmem>>, vector<1x120xbf16>
    tpu.vector_store %arg8[%c7_113, %c0_114], %148 {strides = array<i32>} : memref<16x120xbf16, #tpu.memory_space<vmem>>, vector<1x120xbf16>,
    %150 = vector.extract_strided_slice %1 {offsets = [2, 8], sizes = [1, 120], strides = [1, 1]} : vector<4x256xbf16> to vector<1x120xbf16>
    %c8_115 = arith.constant 8 : index
    %c0_116 = arith.constant 0 : index
    %151 = vector.load %arg8[%c8_115, %c0_116] : memref<16x120xbf16, #tpu.memory_space<vmem>>, vector<1x120xbf16>
    tpu.vector_store %arg8[%c8_115, %c0_116], %150 {strides = array<i32>} : memref<16x120xbf16, #tpu.memory_space<vmem>>, vector<1x120xbf16>,
    %152 = vector.extract_strided_slice %1 {offsets = [2, 9], sizes = [1, 120], strides = [1, 1]} : vector<4x256xbf16> to vector<1x120xbf16>
    %c9_117 = arith.constant 9 : index
    %c0_118 = arith.constant 0 : index
    %153 = vector.load %arg8[%c9_117, %c0_118] : memref<16x120xbf16, #tpu.memory_space<vmem>>, vector<1x120xbf16>
    tpu.vector_store %arg8[%c9_117, %c0_118], %152 {strides = array<i32>} : memref<16x120xbf16, #tpu.memory_space<vmem>>, vector<1x120xbf16>,
    %154 = vector.extract_strided_slice %1 {offsets = [2, 10], sizes = [1, 120], strides = [1, 1]} : vector<4x256xbf16> to vector<1x120xbf16>
    %c10_119 = arith.constant 10 : index
    %c0_120 = arith.constant 0 : index
    %155 = vector.load %arg8[%c10_119, %c0_120] : memref<16x120xbf16, #tpu.memory_space<vmem>>, vector<1x120xbf16>
    tpu.vector_store %arg8[%c10_119, %c0_120], %154 {strides = array<i32>} : memref<16x120xbf16, #tpu.memory_space<vmem>>, vector<1x120xbf16>,
    %156 = vector.extract_strided_slice %1 {offsets = [2, 11], sizes = [1, 120], strides = [1, 1]} : vector<4x256xbf16> to vector<1x120xbf16>
    %c11_121 = arith.constant 11 : index
    %c0_122 = arith.constant 0 : index
    %157 = vector.load %arg8[%c11_121, %c0_122] : memref<16x120xbf16, #tpu.memory_space<vmem>>, vector<1x120xbf16>
    tpu.vector_store %arg8[%c11_121, %c0_122], %156 {strides = array<i32>} : memref<16x120xbf16, #tpu.memory_space<vmem>>, vector<1x120xbf16>,
    %158 = vector.extract_strided_slice %1 {offsets = [2, 12], sizes = [1, 120], strides = [1, 1]} : vector<4x256xbf16> to vector<1x120xbf16>
    %c12_123 = arith.constant 12 : index
    %c0_124 = arith.constant 0 : index
    %159 = vector.load %arg8[%c12_123, %c0_124] : memref<16x120xbf16, #tpu.memory_space<vmem>>, vector<1x120xbf16>
    tpu.vector_store %arg8[%c12_123, %c0_124], %158 {strides = array<i32>} : memref<16x120xbf16, #tpu.memory_space<vmem>>, vector<1x120xbf16>,
    %160 = vector.extract_strided_slice %1 {offsets = [2, 13], sizes = [1, 120], strides = [1, 1]} : vector<4x256xbf16> to vector<1x120xbf16>
    %c13_125 = arith.constant 13 : index
    %c0_126 = arith.constant 0 : index
    %161 = vector.load %arg8[%c13_125, %c0_126] : memref<16x120xbf16, #tpu.memory_space<vmem>>, vector<1x120xbf16>
    tpu.vector_store %arg8[%c13_125, %c0_126], %160 {strides = array<i32>} : memref<16x120xbf16, #tpu.memory_space<vmem>>, vector<1x120xbf16>,
    %162 = vector.extract_strided_slice %1 {offsets = [2, 14], sizes = [1, 120], strides = [1, 1]} : vector<4x256xbf16> to vector<1x120xbf16>
    %c14_127 = arith.constant 14 : index
    %c0_128 = arith.constant 0 : index
    %163 = vector.load %arg8[%c14_127, %c0_128] : memref<16x120xbf16, #tpu.memory_space<vmem>>, vector<1x120xbf16>
    tpu.vector_store %arg8[%c14_127, %c0_128], %162 {strides = array<i32>} : memref<16x120xbf16, #tpu.memory_space<vmem>>, vector<1x120xbf16>,
    %164 = vector.extract_strided_slice %1 {offsets = [2, 15], sizes = [1, 120], strides = [1, 1]} : vector<4x256xbf16> to vector<1x120xbf16>
    %c15_129 = arith.constant 15 : index
    %c0_130 = arith.constant 0 : index
    %165 = vector.load %arg8[%c15_129, %c0_130] : memref<16x120xbf16, #tpu.memory_space<vmem>>, vector<1x120xbf16>
    tpu.vector_store %arg8[%c15_129, %c0_130], %164 {strides = array<i32>} : memref<16x120xbf16, #tpu.memory_space<vmem>>, vector<1x120xbf16>,
    %c0_131 = arith.constant 0 : index
    %c0_132 = arith.constant 0 : index
    %166 = vector.load %arg2[%c0_131, %c0_132] : memref<24x16xbf16, #tpu.memory_space<vmem>>, vector<24x16xbf16>
    %c0_133 = arith.constant 0 : index
    %c0_134 = arith.constant 0 : index
    %167 = vector.load %arg8[%c0_133, %c0_134] : memref<16x120xbf16, #tpu.memory_space<vmem>>, vector<16x120xbf16>
    %cst_135 = arith.constant dense<0.000000e+00> : vector<24x120xf32>
    %168 = tpu.matmul %166, %167, %cst_135 {dimension_numbers = #tpu.dot_dimension_numbers<[1], [0], [0], [1], [0, 0, 1, 1], [], []>} : vector<24x16xbf16>, vector<16x120xbf16>, vector<24x120xf32> -> vector<24x120xf32>
    %c0_136 = arith.constant 0 : index
    %c0_137 = arith.constant 0 : index
    %169 = vector.load %arg4[%c0_136, %c0_137] : memref<24x1xf32, #tpu.memory_space<vmem>>, vector<24x1xf32>
    %170 = vector.broadcast %169 : vector<24x1xf32> to vector<24x120xf32>
    %171 = arith.addf %168, %170 : vector<24x120xf32>
    %cst_138 = arith.constant 0.000000e+00 : f32
    %172 = vector.broadcast %cst_138 : f32 to vector<24x120xf32>
    %173 = arith.cmpf oge, %171, %172 : vector<24x120xf32>
    %cst_139 = arith.constant 0.00999999977 : f32
    %174 = vector.broadcast %cst_139 : f32 to vector<24x120xf32>
    %175 = arith.mulf %174, %171 : vector<24x120xf32>
    %176 = arith.select %173, %171, %175 : vector<24x120xi1>, vector<24x120xf32>
    %c0_140 = arith.constant 0 : index
    %c0_141 = arith.constant 0 : index
    %177 = vector.load %arg3[%c0_140, %c0_141] : memref<120x15xf32, #tpu.memory_space<vmem>>, vector<120x15xf32>
    %cst_142 = arith.constant dense<0.000000e+00> : vector<24x15xf32>
    %178 = tpu.matmul %176, %177, %cst_142 {dimension_numbers = #tpu.dot_dimension_numbers<[1], [0], [0], [1], [0, 0, 1, 1], [], []>} : vector<24x120xf32>, vector<120x15xf32>, vector<24x15xf32> -> vector<24x15xf32>
    %c0_143 = arith.constant 0 : index
    %c0_144 = arith.constant 0 : index
    %179 = vector.load %arg5[%c0_143, %c0_144] : memref<24x1xf32, #tpu.memory_space<vmem>>, vector<24x1xf32>
    %180 = vector.broadcast %179 : vector<24x1xf32> to vector<24x15xf32>
    %181 = arith.mulf %178, %180 : vector<24x15xf32>
    %c0_145 = arith.constant 0 : index
    %c0_146 = arith.constant 0 : index
    %182 = vector.load %arg6[%c0_145, %c0_146] : memref<24x1xf32, #tpu.memory_space<vmem>>, vector<24x1xf32>
    %183 = vector.broadcast %182 : vector<24x1xf32> to vector<24x15xf32>
    %184 = arith.addf %181, %183 : vector<24x15xf32>
    %185 = vector.extract_strided_slice %184 {offsets = [0, 0], sizes = [8, 14], strides = [1, 1]} : vector<24x15xf32> to vector<8x14xf32>
    %186 = arith.truncf %185 : vector<8x14xf32> to vector<8x14xbf16>
    %c0_147 = arith.constant 0 : index
    %c16 = arith.constant 16 : index
    %c0_148 = arith.constant 0 : index
    %187 = vector.load %arg7[%c0_147, %c16, %c0_148] : memref<1x32x44xbf16, #tpu.memory_space<vmem>>, vector<1x8x14xbf16>
    %188 = vector.shape_cast %187 : vector<1x8x14xbf16> to vector<8x14xbf16>
    %189 = vector.shape_cast %186 : vector<8x14xbf16> to vector<1x8x14xbf16>
    tpu.vector_store %arg7[%c0_147, %c16, %c0_148], %189 {strides = array<i32>} : memref<1x32x44xbf16, #tpu.memory_space<vmem>>, vector<1x8x14xbf16>,
    %190 = vector.extract_strided_slice %184 {offsets = [8, 0], sizes = [8, 15], strides = [1, 1]} : vector<24x15xf32> to vector<8x15xf32>
    %191 = arith.truncf %190 : vector<8x15xf32> to vector<8x15xbf16>
    %c0_149 = arith.constant 0 : index
    %c16_150 = arith.constant 16 : index
    %c14_151 = arith.constant 14 : index
    %192 = vector.load %arg7[%c0_149, %c16_150, %c14_151] : memref<1x32x44xbf16, #tpu.memory_space<vmem>>, vector<1x8x15xbf16>
    %193 = vector.shape_cast %192 : vector<1x8x15xbf16> to vector<8x15xbf16>
    %194 = vector.shape_cast %191 : vector<8x15xbf16> to vector<1x8x15xbf16>
    tpu.vector_store %arg7[%c0_149, %c16_150, %c14_151], %194 {strides = array<i32>} : memref<1x32x44xbf16, #tpu.memory_space<vmem>>, vector<1x8x15xbf16>,
    %195 = vector.extract_strided_slice %184 {offsets = [16, 0], sizes = [8, 15], strides = [1, 1]} : vector<24x15xf32> to vector<8x15xf32>
    %196 = arith.truncf %195 : vector<8x15xf32> to vector<8x15xbf16>
    %c0_152 = arith.constant 0 : index
    %c16_153 = arith.constant 16 : index
    %c29_154 = arith.constant 29 : index
    %197 = vector.load %arg7[%c0_152, %c16_153, %c29_154] : memref<1x32x44xbf16, #tpu.memory_space<vmem>>, vector<1x8x15xbf16>
    %198 = vector.shape_cast %197 : vector<1x8x15xbf16> to vector<8x15xbf16>
    %199 = vector.shape_cast %196 : vector<8x15xbf16> to vector<1x8x15xbf16>
    tpu.vector_store %arg7[%c0_152, %c16_153, %c29_154], %199 {strides = array<i32>} : memref<1x32x44xbf16, #tpu.memory_space<vmem>>, vector<1x8x15xbf16>,
    %200 = vector.extract_strided_slice %1 {offsets = [3, 0], sizes = [1, 120], strides = [1, 1]} : vector<4x256xbf16> to vector<1x120xbf16>
    %c0_155 = arith.constant 0 : index
    %c0_156 = arith.constant 0 : index
    %201 = vector.load %arg8[%c0_155, %c0_156] : memref<16x120xbf16, #tpu.memory_space<vmem>>, vector<1x120xbf16>
    tpu.vector_store %arg8[%c0_155, %c0_156], %200 {strides = array<i32>} : memref<16x120xbf16, #tpu.memory_space<vmem>>, vector<1x120xbf16>,
    %202 = vector.extract_strided_slice %1 {offsets = [3, 1], sizes = [1, 120], strides = [1, 1]} : vector<4x256xbf16> to vector<1x120xbf16>
    %c1_157 = arith.constant 1 : index
    %c0_158 = arith.constant 0 : index
    %203 = vector.load %arg8[%c1_157, %c0_158] : memref<16x120xbf16, #tpu.memory_space<vmem>>, vector<1x120xbf16>
    tpu.vector_store %arg8[%c1_157, %c0_158], %202 {strides = array<i32>} : memref<16x120xbf16, #tpu.memory_space<vmem>>, vector<1x120xbf16>,
    %204 = vector.extract_strided_slice %1 {offsets = [3, 2], sizes = [1, 120], strides = [1, 1]} : vector<4x256xbf16> to vector<1x120xbf16>
    %c2_159 = arith.constant 2 : index
    %c0_160 = arith.constant 0 : index
    %205 = vector.load %arg8[%c2_159, %c0_160] : memref<16x120xbf16, #tpu.memory_space<vmem>>, vector<1x120xbf16>
    tpu.vector_store %arg8[%c2_159, %c0_160], %204 {strides = array<i32>} : memref<16x120xbf16, #tpu.memory_space<vmem>>, vector<1x120xbf16>,
    %206 = vector.extract_strided_slice %1 {offsets = [3, 3], sizes = [1, 120], strides = [1, 1]} : vector<4x256xbf16> to vector<1x120xbf16>
    %c3_161 = arith.constant 3 : index
    %c0_162 = arith.constant 0 : index
    %207 = vector.load %arg8[%c3_161, %c0_162] : memref<16x120xbf16, #tpu.memory_space<vmem>>, vector<1x120xbf16>
    tpu.vector_store %arg8[%c3_161, %c0_162], %206 {strides = array<i32>} : memref<16x120xbf16, #tpu.memory_space<vmem>>, vector<1x120xbf16>,
    %208 = vector.extract_strided_slice %1 {offsets = [3, 4], sizes = [1, 120], strides = [1, 1]} : vector<4x256xbf16> to vector<1x120xbf16>
    %c4_163 = arith.constant 4 : index
    %c0_164 = arith.constant 0 : index
    %209 = vector.load %arg8[%c4_163, %c0_164] : memref<16x120xbf16, #tpu.memory_space<vmem>>, vector<1x120xbf16>
    tpu.vector_store %arg8[%c4_163, %c0_164], %208 {strides = array<i32>} : memref<16x120xbf16, #tpu.memory_space<vmem>>, vector<1x120xbf16>,
    %210 = vector.extract_strided_slice %1 {offsets = [3, 5], sizes = [1, 120], strides = [1, 1]} : vector<4x256xbf16> to vector<1x120xbf16>
    %c5_165 = arith.constant 5 : index
    %c0_166 = arith.constant 0 : index
    %211 = vector.load %arg8[%c5_165, %c0_166] : memref<16x120xbf16, #tpu.memory_space<vmem>>, vector<1x120xbf16>
    tpu.vector_store %arg8[%c5_165, %c0_166], %210 {strides = array<i32>} : memref<16x120xbf16, #tpu.memory_space<vmem>>, vector<1x120xbf16>,
    %212 = vector.extract_strided_slice %1 {offsets = [3, 6], sizes = [1, 120], strides = [1, 1]} : vector<4x256xbf16> to vector<1x120xbf16>
    %c6_167 = arith.constant 6 : index
    %c0_168 = arith.constant 0 : index
    %213 = vector.load %arg8[%c6_167, %c0_168] : memref<16x120xbf16, #tpu.memory_space<vmem>>, vector<1x120xbf16>
    tpu.vector_store %arg8[%c6_167, %c0_168], %212 {strides = array<i32>} : memref<16x120xbf16, #tpu.memory_space<vmem>>, vector<1x120xbf16>,
    %214 = vector.extract_strided_slice %1 {offsets = [3, 7], sizes = [1, 120], strides = [1, 1]} : vector<4x256xbf16> to vector<1x120xbf16>
    %c7_169 = arith.constant 7 : index
    %c0_170 = arith.constant 0 : index
    %215 = vector.load %arg8[%c7_169, %c0_170] : memref<16x120xbf16, #tpu.memory_space<vmem>>, vector<1x120xbf16>
    tpu.vector_store %arg8[%c7_169, %c0_170], %214 {strides = array<i32>} : memref<16x120xbf16, #tpu.memory_space<vmem>>, vector<1x120xbf16>,
    %216 = vector.extract_strided_slice %1 {offsets = [3, 8], sizes = [1, 120], strides = [1, 1]} : vector<4x256xbf16> to vector<1x120xbf16>
    %c8_171 = arith.constant 8 : index
    %c0_172 = arith.constant 0 : index
    %217 = vector.load %arg8[%c8_171, %c0_172] : memref<16x120xbf16, #tpu.memory_space<vmem>>, vector<1x120xbf16>
    tpu.vector_store %arg8[%c8_171, %c0_172], %216 {strides = array<i32>} : memref<16x120xbf16, #tpu.memory_space<vmem>>, vector<1x120xbf16>,
    %218 = vector.extract_strided_slice %1 {offsets = [3, 9], sizes = [1, 120], strides = [1, 1]} : vector<4x256xbf16> to vector<1x120xbf16>
    %c9_173 = arith.constant 9 : index
    %c0_174 = arith.constant 0 : index
    %219 = vector.load %arg8[%c9_173, %c0_174] : memref<16x120xbf16, #tpu.memory_space<vmem>>, vector<1x120xbf16>
    tpu.vector_store %arg8[%c9_173, %c0_174], %218 {strides = array<i32>} : memref<16x120xbf16, #tpu.memory_space<vmem>>, vector<1x120xbf16>,
    %220 = vector.extract_strided_slice %1 {offsets = [3, 10], sizes = [1, 120], strides = [1, 1]} : vector<4x256xbf16> to vector<1x120xbf16>
    %c10_175 = arith.constant 10 : index
    %c0_176 = arith.constant 0 : index
    %221 = vector.load %arg8[%c10_175, %c0_176] : memref<16x120xbf16, #tpu.memory_space<vmem>>, vector<1x120xbf16>
    tpu.vector_store %arg8[%c10_175, %c0_176], %220 {strides = array<i32>} : memref<16x120xbf16, #tpu.memory_space<vmem>>, vector<1x120xbf16>,
    %222 = vector.extract_strided_slice %1 {offsets = [3, 11], sizes = [1, 120], strides = [1, 1]} : vector<4x256xbf16> to vector<1x120xbf16>
    %c11_177 = arith.constant 11 : index
    %c0_178 = arith.constant 0 : index
    %223 = vector.load %arg8[%c11_177, %c0_178] : memref<16x120xbf16, #tpu.memory_space<vmem>>, vector<1x120xbf16>
    tpu.vector_store %arg8[%c11_177, %c0_178], %222 {strides = array<i32>} : memref<16x120xbf16, #tpu.memory_space<vmem>>, vector<1x120xbf16>,
    %224 = vector.extract_strided_slice %1 {offsets = [3, 12], sizes = [1, 120], strides = [1, 1]} : vector<4x256xbf16> to vector<1x120xbf16>
    %c12_179 = arith.constant 12 : index
    %c0_180 = arith.constant 0 : index
    %225 = vector.load %arg8[%c12_179, %c0_180] : memref<16x120xbf16, #tpu.memory_space<vmem>>, vector<1x120xbf16>
    tpu.vector_store %arg8[%c12_179, %c0_180], %224 {strides = array<i32>} : memref<16x120xbf16, #tpu.memory_space<vmem>>, vector<1x120xbf16>,
    %226 = vector.extract_strided_slice %1 {offsets = [3, 13], sizes = [1, 120], strides = [1, 1]} : vector<4x256xbf16> to vector<1x120xbf16>
    %c13_181 = arith.constant 13 : index
    %c0_182 = arith.constant 0 : index
    %227 = vector.load %arg8[%c13_181, %c0_182] : memref<16x120xbf16, #tpu.memory_space<vmem>>, vector<1x120xbf16>
    tpu.vector_store %arg8[%c13_181, %c0_182], %226 {strides = array<i32>} : memref<16x120xbf16, #tpu.memory_space<vmem>>, vector<1x120xbf16>,
    %228 = vector.extract_strided_slice %1 {offsets = [3, 14], sizes = [1, 120], strides = [1, 1]} : vector<4x256xbf16> to vector<1x120xbf16>
    %c14_183 = arith.constant 14 : index
    %c0_184 = arith.constant 0 : index
    %229 = vector.load %arg8[%c14_183, %c0_184] : memref<16x120xbf16, #tpu.memory_space<vmem>>, vector<1x120xbf16>
    tpu.vector_store %arg8[%c14_183, %c0_184], %228 {strides = array<i32>} : memref<16x120xbf16, #tpu.memory_space<vmem>>, vector<1x120xbf16>,
    %230 = vector.extract_strided_slice %1 {offsets = [3, 15], sizes = [1, 120], strides = [1, 1]} : vector<4x256xbf16> to vector<1x120xbf16>
    %c15_185 = arith.constant 15 : index
    %c0_186 = arith.constant 0 : index
    %231 = vector.load %arg8[%c15_185, %c0_186] : memref<16x120xbf16, #tpu.memory_space<vmem>>, vector<1x120xbf16>
    tpu.vector_store %arg8[%c15_185, %c0_186], %230 {strides = array<i32>} : memref<16x120xbf16, #tpu.memory_space<vmem>>, vector<1x120xbf16>,
    %c0_187 = arith.constant 0 : index
    %c0_188 = arith.constant 0 : index
    %232 = vector.load %arg2[%c0_187, %c0_188] : memref<24x16xbf16, #tpu.memory_space<vmem>>, vector<24x16xbf16>
    %c0_189 = arith.constant 0 : index
    %c0_190 = arith.constant 0 : index
    %233 = vector.load %arg8[%c0_189, %c0_190] : memref<16x120xbf16, #tpu.memory_space<vmem>>, vector<16x120xbf16>
    %cst_191 = arith.constant dense<0.000000e+00> : vector<24x120xf32>
    %234 = tpu.matmul %232, %233, %cst_191 {dimension_numbers = #tpu.dot_dimension_numbers<[1], [0], [0], [1], [0, 0, 1, 1], [], []>} : vector<24x16xbf16>, vector<16x120xbf16>, vector<24x120xf32> -> vector<24x120xf32>
    %c0_192 = arith.constant 0 : index
    %c0_193 = arith.constant 0 : index
    %235 = vector.load %arg4[%c0_192, %c0_193] : memref<24x1xf32, #tpu.memory_space<vmem>>, vector<24x1xf32>
    %236 = vector.broadcast %235 : vector<24x1xf32> to vector<24x120xf32>
    %237 = arith.addf %234, %236 : vector<24x120xf32>
    %cst_194 = arith.constant 0.000000e+00 : f32
    %238 = vector.broadcast %cst_194 : f32 to vector<24x120xf32>
    %239 = arith.cmpf oge, %237, %238 : vector<24x120xf32>
    %cst_195 = arith.constant 0.00999999977 : f32
    %240 = vector.broadcast %cst_195 : f32 to vector<24x120xf32>
    %241 = arith.mulf %240, %237 : vector<24x120xf32>
    %242 = arith.select %239, %237, %241 : vector<24x120xi1>, vector<24x120xf32>
    %c0_196 = arith.constant 0 : index
    %c0_197 = arith.constant 0 : index
    %243 = vector.load %arg3[%c0_196, %c0_197] : memref<120x15xf32, #tpu.memory_space<vmem>>, vector<120x15xf32>
    %cst_198 = arith.constant dense<0.000000e+00> : vector<24x15xf32>
    %244 = tpu.matmul %242, %243, %cst_198 {dimension_numbers = #tpu.dot_dimension_numbers<[1], [0], [0], [1], [0, 0, 1, 1], [], []>} : vector<24x120xf32>, vector<120x15xf32>, vector<24x15xf32> -> vector<24x15xf32>
    %c0_199 = arith.constant 0 : index
    %c0_200 = arith.constant 0 : index
    %245 = vector.load %arg5[%c0_199, %c0_200] : memref<24x1xf32, #tpu.memory_space<vmem>>, vector<24x1xf32>
    %246 = vector.broadcast %245 : vector<24x1xf32> to vector<24x15xf32>
    %247 = arith.mulf %244, %246 : vector<24x15xf32>
    %c0_201 = arith.constant 0 : index
    %c0_202 = arith.constant 0 : index
    %248 = vector.load %arg6[%c0_201, %c0_202] : memref<24x1xf32, #tpu.memory_space<vmem>>, vector<24x1xf32>
    %249 = vector.broadcast %248 : vector<24x1xf32> to vector<24x15xf32>
    %250 = arith.addf %247, %249 : vector<24x15xf32>
    %251 = vector.extract_strided_slice %250 {offsets = [0, 0], sizes = [8, 14], strides = [1, 1]} : vector<24x15xf32> to vector<8x14xf32>
    %252 = arith.truncf %251 : vector<8x14xf32> to vector<8x14xbf16>
    %c0_203 = arith.constant 0 : index
    %c24 = arith.constant 24 : index
    %c0_204 = arith.constant 0 : index
    %253 = vector.load %arg7[%c0_203, %c24, %c0_204] : memref<1x32x44xbf16, #tpu.memory_space<vmem>>, vector<1x8x14xbf16>
    %254 = vector.shape_cast %253 : vector<1x8x14xbf16> to vector<8x14xbf16>
    %255 = vector.shape_cast %252 : vector<8x14xbf16> to vector<1x8x14xbf16>
    tpu.vector_store %arg7[%c0_203, %c24, %c0_204], %255 {strides = array<i32>} : memref<1x32x44xbf16, #tpu.memory_space<vmem>>, vector<1x8x14xbf16>,
    %256 = vector.extract_strided_slice %250 {offsets = [8, 0], sizes = [8, 15], strides = [1, 1]} : vector<24x15xf32> to vector<8x15xf32>
    %257 = arith.truncf %256 : vector<8x15xf32> to vector<8x15xbf16>
    %c0_205 = arith.constant 0 : index
    %c24_206 = arith.constant 24 : index
    %c14_207 = arith.constant 14 : index
    %258 = vector.load %arg7[%c0_205, %c24_206, %c14_207] : memref<1x32x44xbf16, #tpu.memory_space<vmem>>, vector<1x8x15xbf16>
    %259 = vector.shape_cast %258 : vector<1x8x15xbf16> to vector<8x15xbf16>
    %260 = vector.shape_cast %257 : vector<8x15xbf16> to vector<1x8x15xbf16>
    tpu.vector_store %arg7[%c0_205, %c24_206, %c14_207], %260 {strides = array<i32>} : memref<1x32x44xbf16, #tpu.memory_space<vmem>>, vector<1x8x15xbf16>,
    %261 = vector.extract_strided_slice %250 {offsets = [16, 0], sizes = [8, 15], strides = [1, 1]} : vector<24x15xf32> to vector<8x15xf32>
    %262 = arith.truncf %261 : vector<8x15xf32> to vector<8x15xbf16>
    %c0_208 = arith.constant 0 : index
    %c24_209 = arith.constant 24 : index
    %c29_210 = arith.constant 29 : index
    %263 = vector.load %arg7[%c0_208, %c24_209, %c29_210] : memref<1x32x44xbf16, #tpu.memory_space<vmem>>, vector<1x8x15xbf16>
    %264 = vector.shape_cast %263 : vector<1x8x15xbf16> to vector<8x15xbf16>
    %265 = vector.shape_cast %262 : vector<8x15xbf16> to vector<1x8x15xbf16>
    tpu.vector_store %arg7[%c0_208, %c24_209, %c29_210], %265 {strides = array<i32>} : memref<1x32x44xbf16, #tpu.memory_space<vmem>>, vector<1x8x15xbf16>,
    return
  }
  func.func @transform_0(%arg0: i32) -> (i32, i32, i32) {
    %c0_i32 = arith.constant 0 : i32
    %c0_i32_0 = arith.constant 0 : i32
    %c0_i32_1 = arith.constant 0 : i32
    return %arg0, %c0_i32, %c0_i32_0 : i32, i32, i32
  }
  func.func @transform_1(%arg0: i32) -> (i32, i32) {
    %c0_i32 = arith.constant 0 : i32
    %c0_i32_0 = arith.constant 0 : i32
    %c0_i32_1 = arith.constant 0 : i32
    return %c0_i32, %c0_i32_0 : i32, i32
  }
  func.func @transform_2(%arg0: i32) -> (i32, i32) {
    %c0_i32 = arith.constant 0 : i32
    %c0_i32_0 = arith.constant 0 : i32
    %c0_i32_1 = arith.constant 0 : i32
    return %c0_i32, %c0_i32_0 : i32, i32
  }
  func.func @transform_3(%arg0: i32) -> (i32, i32) {
    %c0_i32 = arith.constant 0 : i32
    %c0_i32_0 = arith.constant 0 : i32
    %c0_i32_1 = arith.constant 0 : i32
    return %c0_i32, %c0_i32_0 : i32, i32
  }
  func.func @transform_4(%arg0: i32) -> (i32, i32) {
    %c0_i32 = arith.constant 0 : i32
    %c0_i32_0 = arith.constant 0 : i32
    %c0_i32_1 = arith.constant 0 : i32
    return %c0_i32, %c0_i32_0 : i32, i32
  }
  func.func @transform_5(%arg0: i32) -> (i32, i32) {
    %c0_i32 = arith.constant 0 : i32
    %c0_i32_0 = arith.constant 0 : i32
    %c0_i32_1 = arith.constant 0 : i32
    return %c0_i32, %c0_i32_0 : i32, i32
  }
  func.func @transform_6(%arg0: i32) -> (i32, i32, i32) {
    %c0_i32 = arith.constant 0 : i32
    %c0_i32_0 = arith.constant 0 : i32
    %c0_i32_1 = arith.constant 0 : i32
    return %arg0, %c0_i32, %c0_i32_0 : i32, i32, i32
  }
}

</mosaic_0001>

<llo_original>
// kernel: tsception_forward.3
$region0: #{tsception_forward.3}
  #allocation0 [shape = 'u32[]', space=smem, size = 0x4, offset = 0x4, fixed_abs, tag = 'smem constant byte address 0x4 - core index']
  #allocation1 [shape = 'u32[72,128]{1,0:T(1,128)}', space=vmem, size = 0x9000, scoped, tag = 'internal scratch']
  %s0 = inlined_call_operand.vmem [shape: bf16[2,32,44], index: 0, kind: input, shape index: {}]
  %s1 = inlined_call_operand.vmem [shape: bf16[8,32], index: 1, kind: input, shape index: {}]
  %s2 = inlined_call_operand.vmem [shape: bf16[8,16], index: 2, kind: input, shape index: {}]
  %s3 = inlined_call_operand.vmem [shape: bf16[8,24], index: 3, kind: input, shape index: {}]
  %s4 = inlined_call_operand.vmem [shape: f32[8,1], index: 4, kind: input, shape index: {}]
  %s5 = inlined_call_operand.vmem [shape: f32[8,1], index: 5, kind: input, shape index: {}]
  %s6 = inlined_call_operand.vmem [shape: f32[8,1], index: 6, kind: input, shape index: {}]
  %s7 = inlined_call_operand.vmem [shape: f32[8,1], index: 7, kind: input, shape index: {}]
  %s8 = inlined_call_operand.vmem [shape: f32[8,1], index: 8, kind: input, shape index: {}]
  %s9 = inlined_call_operand.vmem [shape: f32[8,1], index: 9, kind: input, shape index: {}]
  %s10 = inlined_call_operand.vmem [shape: f32[8,1], index: 10, kind: input, shape index: {}]
  %s11 = inlined_call_operand.vmem [shape: f32[44,22], index: 11, kind: input, shape index: {}]
  %s12 = inlined_call_operand.vmem [shape: f32[22,5], index: 12, kind: input, shape index: {}]
  %s13 = inlined_call_operand.vmem [shape: f32[2,8,5], index: 13, kind: output, shape index: {}]
  %s14 = sld [smem:[#allocation0]]
  $region85: #{tsception_forward.3} parent=0
    _
  %s16 = ssub.s32 1, %s14
  %s17 = scalar_select 0, %s16, %s14
  loop: start=0, step=1, limit=4
  $region2: #{tsception_forward.3} parent=0 // loop_pre_header
    _
  $region3: #{tsception_forward.3} parent=0 // loop_header
    %s19 = sphi 0, %s23
    %p20 = scmp.ge.s32.totalorder %s19, 4
    %s29 = sphi 0, %s31
    %s32 = sphi 0, %s29
    %s33 = sphi 0, %s32
    %s49 = sphi 0, %s33
    %s53 = sphi 0, %s53
    %s55 = sphi 0, %s53
    %s56 = sphi 0, %s55
    %s70 = sphi 0, %s56
    %s74 = sphi 0, %s74
    %s76 = sphi 0, %s74
    %s77 = sphi 0, %s76
    %s91 = sphi 0, %s77
    %s95 = sphi 0, %s95
    %s97 = sphi 0, %s95
    %s98 = sphi 0, %s97
    %s112 = sphi 0, %s98
    %s116 = sphi 0, %s116
    %s118 = sphi 0, %s116
    %s119 = sphi 0, %s118
    %s133 = sphi 0, %s119
    %s137 = sphi 0, %s137
    %s139 = sphi 0, %s137
    %s140 = sphi 0, %s139
    %s154 = sphi 0, %s140
    %s158 = sphi 0, %s158
    %s160 = sphi 0, %s158
    %s161 = sphi 0, %s160
    %s175 = sphi 0, %s161
    %s179 = sphi 0, %s179
    %s181 = sphi 0, %s179
    %s182 = sphi 0, %s181
    %s196 = sphi 0, %s182
    %s200 = sphi 0, %s200
    %s202 = sphi 0, %s200
    %s203 = sphi 0, %s202
    %s217 = sphi 0, %s203
    %s221 = sphi 0, %s221
    %s223 = sphi 0, %s221
    %s224 = sphi 0, %s223
    %s238 = sphi 0, %s224
    %s242 = sphi 0, %s242
    %s244 = sphi 0, %s242
    %s245 = sphi 0, %s244
    %s259 = sphi 0, %s245
    %s263 = sphi 0, %s263
    %s265 = sphi 0, %s263
    %s266 = sphi 0, %s265
    %s280 = sphi 0, %s266
    %s284 = sphi 0, %s284
    %s286 = sphi 0, %s284
    %s287 = sphi 0, %s286
    %s301 = sphi 0, %s287
    %s307 = sphi 0, %s309
    %s310 = sphi 0, %s307
    %s311 = sphi 0, %s310
    %s327 = sphi 0, %s311
  $region4: #{tsception_forward.3} parent=0 // loop_header_branch
    %22 = sbr.rel (%p20) target = $region8
  $region5: #{tsception_forward.3} parent=0 // loop_body
    %s24 = ssub.s32 %s19, 1
    %s25 = ssub.s32 %s19, 2
    %s26 = sadd.s32 %s19, 1
    %s27 = ssub.s32 %s19, %s26
    %p28 = scmp.eq.s32.totalorder %s27, 0
    %s30 = sadd.s32 %s29, 1
    %s31 = scalar_select %p28, %s29, %s30
    %p34 = pneg %p28
    %p35 = scmp.eq.s32.totalorder %s19, 1
    %p36 = por %p34, %p35
    %p37 = scmp.ne.s32.totalorder %s29, %s32
    %p38 = scmp.eq.s32.totalorder %s19, 0
    %p39 = por %p37, %p38
    %p40 = scmp.ne.s32.totalorder %s29, %s32
    %p41 = scmp.eq.s32.totalorder %s24, 1
    %p42 = por %p40, %p41
    %p43 = scmp.ne.s32.totalorder %s32, %s33
    %p44 = scmp.eq.s32.totalorder %s24, 0
    %p45 = por %p43, %p44
    %p46 = scmp.ne.s32.totalorder %s32, %s33
    %p47 = scmp.eq.s32.totalorder %s25, 1
    %p48 = por %p46, %p47
    %p50 = scmp.ne.s32.totalorder %s33, %s49
    %p51 = scmp.eq.s32.totalorder %s25, 0
    %p52 = por %p50, %p51
    %s54 = sadd.s32 %s53, 1
    %p57 = scmp.eq.s32.totalorder %s19, 1
    %p58 = scmp.ne.s32.totalorder %s53, %s55
    %p59 = scmp.eq.s32.totalorder %s19, 0
    %p60 = por %p58, %p59
    %p61 = scmp.ne.s32.totalorder %s53, %s55
    %p62 = scmp.eq.s32.totalorder %s24, 1
    %p63 = por %p61, %p62
    %p64 = scmp.ne.s32.totalorder %s55, %s56
    %p65 = scmp.eq.s32.totalorder %s24, 0
    %p66 = por %p64, %p65
    %p67 = scmp.ne.s32.totalorder %s55, %s56
    %p68 = scmp.eq.s32.totalorder %s25, 1
    %p69 = por %p67, %p68
    %p71 = scmp.ne.s32.totalorder %s56, %s70
    %p72 = scmp.eq.s32.totalorder %s25, 0
    %p73 = por %p71, %p72
    %s75 = sadd.s32 %s74, 1
    %p78 = scmp.eq.s32.totalorder %s19, 1
    %p79 = scmp.ne.s32.totalorder %s74, %s76
    %p80 = scmp.eq.s32.totalorder %s19, 0
    %p81 = por %p79, %p80
    %p82 = scmp.ne.s32.totalorder %s74, %s76
    %p83 = scmp.eq.s32.totalorder %s24, 1
    %p84 = por %p82, %p83
    %p85 = scmp.ne.s32.totalorder %s76, %s77
    %p86 = scmp.eq.s32.totalorder %s24, 0
    %p87 = por %p85, %p86
    %p88 = scmp.ne.s32.totalorder %s76, %s77
    %p89 = scmp.eq.s32.totalorder %s25, 1
    %p90 = por %p88, %p89
    %p92 = scmp.ne.s32.totalorder %s77, %s91
    %p93 = scmp.eq.s32.totalorder %s25, 0
    %p94 = por %p92, %p93
    %s96 = sadd.s32 %s95, 1
    %p99 = scmp.eq.s32.totalorder %s19, 1
    %p100 = scmp.ne.s32.totalorder %s95, %s97
    %p101 = scmp.eq.s32.totalorder %s19, 0
    %p102 = por %p100, %p101
    %p103 = scmp.ne.s32.totalorder %s95, %s97
    %p104 = scmp.eq.s32.totalorder %s24, 1
    %p105 = por %p103, %p104
    %p106 = scmp.ne.s32.totalorder %s97, %s98
    %p107 = scmp.eq.s32.totalorder %s24, 0
    %p108 = por %p106, %p107
    %p109 = scmp.ne.s32.totalorder %s97, %s98
    %p110 = scmp.eq.s32.totalorder %s25, 1
    %p111 = por %p109, %p110
    %p113 = scmp.ne.s32.totalorder %s98, %s112
    %p114 = scmp.eq.s32.totalorder %s25, 0
    %p115 = por %p113, %p114
    %s117 = sadd.s32 %s116, 1
    %p120 = scmp.eq.s32.totalorder %s19, 1
    %p121 = scmp.ne.s32.totalorder %s116, %s118
    %p122 = scmp.eq.s32.totalorder %s19, 0
    %p123 = por %p121, %p122
    %p124 = scmp.ne.s32.totalorder %s116, %s118
    %p125 = scmp.eq.s32.totalorder %s24, 1
    %p126 = por %p124, %p125
    %p127 = scmp.ne.s32.totalorder %s118, %s119
    %p128 = scmp.eq.s32.totalorder %s24, 0
    %p129 = por %p127, %p128
    %p130 = scmp.ne.s32.totalorder %s118, %s119
    %p131 = scmp.eq.s32.totalorder %s25, 1
    %p132 = por %p130, %p131
    %p134 = scmp.ne.s32.totalorder %s119, %s133
    %p135 = scmp.eq.s32.totalorder %s25, 0
    %p136 = por %p134, %p135
    %s138 = sadd.s32 %s137, 1
    %p141 = scmp.eq.s32.totalorder %s19, 1
    %p142 = scmp.ne.s32.totalorder %s137, %s139
    %p143 = scmp.eq.s32.totalorder %s19, 0
    %p144 = por %p142, %p143
    %p145 = scmp.ne.s32.totalorder %s137, %s139
    %p146 = scmp.eq.s32.totalorder %s24, 1
    %p147 = por %p145, %p146
    %p148 = scmp.ne.s32.totalorder %s139, %s140
    %p149 = scmp.eq.s32.totalorder %s24, 0
    %p150 = por %p148, %p149
    %p151 = scmp.ne.s32.totalorder %s139, %s140
    %p152 = scmp.eq.s32.totalorder %s25, 1
    %p153 = por %p151, %p152
    %p155 = scmp.ne.s32.totalorder %s140, %s154
    %p156 = scmp.eq.s32.totalorder %s25, 0
    %p157 = por %p155, %p156
    %s159 = sadd.s32 %s158, 1
    %p162 = scmp.eq.s32.totalorder %s19, 1
    %p163 = scmp.ne.s32.totalorder %s158, %s160
    %p164 = scmp.eq.s32.totalorder %s19, 0
    %p165 = por %p163, %p164
    %p166 = scmp.ne.s32.totalorder %s158, %s160
    %p167 = scmp.eq.s32.totalorder %s24, 1
    %p168 = por %p166, %p167
    %p169 = scmp.ne.s32.totalorder %s160, %s161
    %p170 = scmp.eq.s32.totalorder %s24, 0
    %p171 = por %p169, %p170
    %p172 = scmp.ne.s32.totalorder %s160, %s161
    %p173 = scmp.eq.s32.totalorder %s25, 1
    %p174 = por %p172, %p173
    %p176 = scmp.ne.s32.totalorder %s161, %s175
    %p177 = scmp.eq.s32.totalorder %s25, 0
    %p178 = por %p176, %p177
    %s180 = sadd.s32 %s179, 1
    %p183 = scmp.eq.s32.totalorder %s19, 1
    %p184 = scmp.ne.s32.totalorder %s179, %s181
    %p185 = scmp.eq.s32.totalorder %s19, 0
    %p186 = por %p184, %p185
    %p187 = scmp.ne.s32.totalorder %s179, %s181
    %p188 = scmp.eq.s32.totalorder %s24, 1
    %p189 = por %p187, %p188
    %p190 = scmp.ne.s32.totalorder %s181, %s182
    %p191 = scmp.eq.s32.totalorder %s24, 0
    %p192 = por %p190, %p191
    %p193 = scmp.ne.s32.totalorder %s181, %s182
    %p194 = scmp.eq.s32.totalorder %s25, 1
    %p195 = por %p193, %p194
    %p197 = scmp.ne.s32.totalorder %s182, %s196
    %p198 = scmp.eq.s32.totalorder %s25, 0
    %p199 = por %p197, %p198
    %s201 = sadd.s32 %s200, 1
    %p204 = scmp.eq.s32.totalorder %s19, 1
    %p205 = scmp.ne.s32.totalorder %s200, %s202
    %p206 = scmp.eq.s32.totalorder %s19, 0
    %p207 = por %p205, %p206
    %p208 = scmp.ne.s32.totalorder %s200, %s202
    %p209 = scmp.eq.s32.totalorder %s24, 1
    %p210 = por %p208, %p209
    %p211 = scmp.ne.s32.totalorder %s202, %s203
    %p212 = scmp.eq.s32.totalorder %s24, 0
    %p213 = por %p211, %p212
    %p214 = scmp.ne.s32.totalorder %s202, %s203
    %p215 = scmp.eq.s32.totalorder %s25, 1
    %p216 = por %p214, %p215
    %p218 = scmp.ne.s32.totalorder %s203, %s217
    %p219 = scmp.eq.s32.totalorder %s25, 0
    %p220 = por %p218, %p219
    %s222 = sadd.s32 %s221, 1
    %p225 = scmp.eq.s32.totalorder %s19, 1
    %p226 = scmp.ne.s32.totalorder %s221, %s223
    %p227 = scmp.eq.s32.totalorder %s19, 0
    %p228 = por %p226, %p227
    %p229 = scmp.ne.s32.totalorder %s221, %s223
    %p230 = scmp.eq.s32.totalorder %s24, 1
    %p231 = por %p229, %p230
    %p232 = scmp.ne.s32.totalorder %s223, %s224
    %p233 = scmp.eq.s32.totalorder %s24, 0
    %p234 = por %p232, %p233
    %p235 = scmp.ne.s32.totalorder %s223, %s224
    %p236 = scmp.eq.s32.totalorder %s25, 1
    %p237 = por %p235, %p236
    %p239 = scmp.ne.s32.totalorder %s224, %s238
    %p240 = scmp.eq.s32.totalorder %s25, 0
    %p241 = por %p239, %p240
    %s243 = sadd.s32 %s242, 1
    %p246 = scmp.eq.s32.totalorder %s19, 1
    %p247 = scmp.ne.s32.totalorder %s242, %s244
    %p248 = scmp.eq.s32.totalorder %s19, 0
    %p249 = por %p247, %p248
    %p250 = scmp.ne.s32.totalorder %s242, %s244
    %p251 = scmp.eq.s32.totalorder %s24, 1
    %p252 = por %p250, %p251
    %p253 = scmp.ne.s32.totalorder %s244, %s245
    %p254 = scmp.eq.s32.totalorder %s24, 0
    %p255 = por %p253, %p254
    %p256 = scmp.ne.s32.totalorder %s244, %s245
    %p257 = scmp.eq.s32.totalorder %s25, 1
    %p258 = por %p256, %p257
    %p260 = scmp.ne.s32.totalorder %s245, %s259
    %p261 = scmp.eq.s32.totalorder %s25, 0
    %p262 = por %p260, %p261
    %s264 = sadd.s32 %s263, 1
    %p267 = scmp.eq.s32.totalorder %s19, 1
    %p268 = scmp.ne.s32.totalorder %s263, %s265
    %p269 = scmp.eq.s32.totalorder %s19, 0
    %p270 = por %p268, %p269
    %p271 = scmp.ne.s32.totalorder %s263, %s265
    %p272 = scmp.eq.s32.totalorder %s24, 1
    %p273 = por %p271, %p272
    %p274 = scmp.ne.s32.totalorder %s265, %s266
    %p275 = scmp.eq.s32.totalorder %s24, 0
    %p276 = por %p274, %p275
    %p277 = scmp.ne.s32.totalorder %s265, %s266
    %p278 = scmp.eq.s32.totalorder %s25, 1
    %p279 = por %p277, %p278
    %p281 = scmp.ne.s32.totalorder %s266, %s280
    %p282 = scmp.eq.s32.totalorder %s25, 0
    %p283 = por %p281, %p282
    %s285 = sadd.s32 %s284, 1
    %p288 = scmp.eq.s32.totalorder %s19, 1
    %p289 = scmp.ne.s32.totalorder %s284, %s286
    %p290 = scmp.eq.s32.totalorder %s19, 0
    %p291 = por %p289, %p290
    %p292 = scmp.ne.s32.totalorder %s284, %s286
    %p293 = scmp.eq.s32.totalorder %s24, 1
    %p294 = por %p292, %p293
    %p295 = scmp.ne.s32.totalorder %s286, %s287
    %p296 = scmp.eq.s32.totalorder %s24, 0
    %p297 = por %p295, %p296
    %p298 = scmp.ne.s32.totalorder %s286, %s287
    %p299 = scmp.eq.s32.totalorder %s25, 1
    %p300 = por %p298, %p299
    %p302 = scmp.ne.s32.totalorder %s287, %s301
    %p303 = scmp.eq.s32.totalorder %s25, 0
    %p304 = por %p302, %p303
    %s305 = ssub.s32 %s19, %s26
    %p306 = scmp.eq.s32.totalorder %s305, 0
    %s308 = sadd.s32 %s307, 1
    %s309 = scalar_select %p306, %s307, %s308
    %p312 = pneg %p306
    %p313 = scmp.eq.s32.totalorder %s19, 1
    %p314 = por %p312, %p313
    %p315 = scmp.ne.s32.totalorder %s307, %s310
    %p316 = scmp.eq.s32.totalorder %s19, 0
    %p317 = por %p315, %p316
    %p318 = scmp.ne.s32.totalorder %s307, %s310
    %p319 = scmp.eq.s32.totalorder %s24, 1
    %p320 = por %p318, %p319
    %p321 = scmp.ne.s32.totalorder %s310, %s311
    %p322 = scmp.eq.s32.totalorder %s24, 0
    %p323 = por %p321, %p322
    %p324 = scmp.ne.s32.totalorder %s310, %s311
    %p325 = scmp.eq.s32.totalorder %s25, 1
    %p326 = por %p324, %p325
    %p328 = scmp.ne.s32.totalorder %s311, %s327
    %p329 = scmp.eq.s32.totalorder %s25, 0
    %p330 = por %p328, %p329
    %p331 = scmp.le.s32.totalorder 1, %s19
    %p332 = scmp.lt.s32.totalorder %s19, 3
    %p333 = pnand %p331, %p332
    %p334 = pneg %p333
    // Predicated region
    $region9: #{tsception_forward.3} parent=5 // pred_check
      _
    $region10: #{tsception_forward.3} parent=5 // pred_check_branch
      %336 = sbr.rel (%p333) target = $region12
    $region11: #{tsception_forward.3} parent=5 // pred_region
      %s337 = ssub.s32 %s19, 1
      // Predicated region
      $region13: #{tsception_forward.3} parent=11 // pred_check
        %p338 = pneg %p66
      $region14: #{tsception_forward.3} parent=11 // pred_check_branch
        %340 = sbr.rel (%p338) target = $region16
      $region15: #{tsception_forward.3} parent=11 // pred_region
        _
      $region16: #{tsception_forward.3} parent=11 // pred_fallthru
        _
      // Predicated region
      $region17: #{tsception_forward.3} parent=11 // pred_check
        %p341 = pneg %p87
      $region18: #{tsception_forward.3} parent=11 // pred_check_branch
        %343 = sbr.rel (%p341) target = $region20
      $region19: #{tsception_forward.3} parent=11 // pred_region
        _
      $region20: #{tsception_forward.3} parent=11 // pred_fallthru
        _
      // Predicated region
      $region21: #{tsception_forward.3} parent=11 // pred_check
        %p344 = pneg %p108
      $region22: #{tsception_forward.3} parent=11 // pred_check_branch
        %346 = sbr.rel (%p344) target = $region24
      $region23: #{tsception_forward.3} parent=11 // pred_region
        _
      $region24: #{tsception_forward.3} parent=11 // pred_fallthru
        _
      // Predicated region
      $region25: #{tsception_forward.3} parent=11 // pred_check
        %p347 = pneg %p129
      $region26: #{tsception_forward.3} parent=11 // pred_check_branch
        %349 = sbr.rel (%p347) target = $region28
      $region27: #{tsception_forward.3} parent=11 // pred_region
        _
      $region28: #{tsception_forward.3} parent=11 // pred_fallthru
        _
      // Predicated region
      $region29: #{tsception_forward.3} parent=11 // pred_check
        %p350 = pneg %p150
      $region30: #{tsception_forward.3} parent=11 // pred_check_branch
        %352 = sbr.rel (%p350) target = $region32
      $region31: #{tsception_forward.3} parent=11 // pred_region
        _
      $region32: #{tsception_forward.3} parent=11 // pred_fallthru
        _
      // Predicated region
      $region33: #{tsception_forward.3} parent=11 // pred_check
        %p353 = pneg %p171
      $region34: #{tsception_forward.3} parent=11 // pred_check_branch
        %355 = sbr.rel (%p353) target = $region36
      $region35: #{tsception_forward.3} parent=11 // pred_region
        _
      $region36: #{tsception_forward.3} parent=11 // pred_fallthru
        _
      // Predicated region
      $region37: #{tsception_forward.3} parent=11 // pred_check
        %p356 = pneg %p192
      $region38: #{tsception_forward.3} parent=11 // pred_check_branch
        %358 = sbr.rel (%p356) target = $region40
      $region39: #{tsception_forward.3} parent=11 // pred_region
        _
      $region40: #{tsception_forward.3} parent=11 // pred_fallthru
        _
      // Predicated region
      $region41: #{tsception_forward.3} parent=11 // pred_check
        %p359 = pneg %p213
      $region42: #{tsception_forward.3} parent=11 // pred_check_branch
        %361 = sbr.rel (%p359) target = $region44
      $region43: #{tsception_forward.3} parent=11 // pred_region
        _
      $region44: #{tsception_forward.3} parent=11 // pred_fallthru
        _
      // Predicated region
      $region45: #{tsception_forward.3} parent=11 // pred_check
        %p362 = pneg %p234
      $region46: #{tsception_forward.3} parent=11 // pred_check_branch
        %364 = sbr.rel (%p362) target = $region48
      $region47: #{tsception_forward.3} parent=11 // pred_region
        _
      $region48: #{tsception_forward.3} parent=11 // pred_fallthru
        _
      // Predicated region
      $region49: #{tsception_forward.3} parent=11 // pred_check
        %p365 = pneg %p255
      $region50: #{tsception_forward.3} parent=11 // pred_check_branch
        %367 = sbr.rel (%p365) target = $region52
      $region51: #{tsception_forward.3} parent=11 // pred_region
        _
      $region52: #{tsception_forward.3} parent=11 // pred_fallthru
        _
      // Predicated region
      $region53: #{tsception_forward.3} parent=11 // pred_check
        %p368 = pneg %p276
      $region54: #{tsception_forward.3} parent=11 // pred_check_branch
        %370 = sbr.rel (%p368) target = $region56
      $region55: #{tsception_forward.3} parent=11 // pred_region
        _
      $region56: #{tsception_forward.3} parent=11 // pred_fallthru
        _
      // Predicated region
      $region57: #{tsception_forward.3} parent=11 // pred_check
        %p371 = pneg %p297
      $region58: #{tsception_forward.3} parent=11 // pred_check_branch
        %373 = sbr.rel (%p371) target = $region60
      $region59: #{tsception_forward.3} parent=11 // pred_region
        _
      $region60: #{tsception_forward.3} parent=11 // pred_fallthru
        _
    $region12: #{tsception_forward.3} parent=5 // pred_fallthru
      _
    %p374 = scmp.lt.s32.totalorder %s19, 2
    // Predicated region
    $region61: #{tsception_forward.3} parent=5 // pred_check
      %p375 = pneg %p374
    $region62: #{tsception_forward.3} parent=5 // pred_check_branch
      %377 = sbr.rel (%p375) target = $region64
    $region63: #{tsception_forward.3} parent=5 // pred_region
      // Predicated region
      $region65: #{tsception_forward.3} parent=63 // pred_check
        %p378 = pneg %p39
      $region66: #{tsception_forward.3} parent=63 // pred_check_branch
        %380 = sbr.rel (%p378) target = $region68
      $region67: #{tsception_forward.3} parent=63 // pred_region
        %p381 = scmp.lt.s32.totalorder %s19, 1
        %s382 = scalar_select %p381, %s19, 1
        %s383 = smul.addr %s382, 4
        %s384 = smul.addr %s383, 4
        %s385 = scalar_lea.vmem %s0, %s384
      $region68: #{tsception_forward.3} parent=63 // pred_fallthru
        _
    $region64: #{tsception_forward.3} parent=5 // pred_fallthru
      _
    %p386 = scmp.le.s32.totalorder 1, %s19
    %p387 = scmp.lt.s32.totalorder %s19, 3
    %p388 = pnand %p386, %p387
    %p389 = pneg %p388
    // Predicated region
    $region69: #{tsception_forward.3} parent=5 // pred_check
      _
    $region70: #{tsception_forward.3} parent=5 // pred_check_branch
      %391 = sbr.rel (%p388) target = $region72
    $region71: #{tsception_forward.3} parent=5 // pred_region
      %s392 = ssub.s32 %s19, 1
      %p393 = scmp.lt.s32.totalorder %s24, 1
      %s394 = scalar_select %p393, %s24, 1
      %s395 = smul.addr %s394, 4
      %s396 = smul.addr %s395, 4
      %s397 = scalar_lea.vmem %s0, %s396
      %p398 = pneg %p45
      %p399 = pneg %p42
      %p400 = pneg %p66
      %p401 = pneg %p63
      %p402 = pneg %p87
      %p403 = pneg %p84
      %p404 = pneg %p108
      %p405 = pneg %p105
      %p406 = pneg %p129
      %p407 = pneg %p126
      %p408 = pneg %p150
      %p409 = pneg %p147
      %p410 = pneg %p171
      %p411 = pneg %p168
      %p412 = pneg %p192
      %p413 = pneg %p189
      %p414 = pneg %p213
      %p415 = pneg %p210
      %p416 = pneg %p234
      %p417 = pneg %p231
      %p418 = pneg %p255
      %p419 = pneg %p252
      %p420 = pneg %p276
      %p421 = pneg %p273
      %p422 = pneg %p297
      %p423 = pneg %p294
      %p424 = pneg %p323
      %p425 = pneg %p320
      %p426 = scmp.lt.s32.totalorder %s24, 1
      %s427 = scalar_select %p426, %s24, 1
      %s428 = smul.addr %s427, 8
      %s429 = scalar_lea.vmem %s13, %s428
      %p430 = scmp.lt.s32.totalorder %s24, 1
      %s431 = scalar_select %p430, %s24, 1
      %s432 = smul.addr %s431, 4
      %s433 = smul.addr %s432, 4
      %s434 = scalar_lea.vmem %s0, %s433
      %p435 = scmp.lt.s32.totalorder %s24, 1
      %s436 = scalar_select %p435, %s24, 1
      %s437 = smul.addr %s436, 8
      %s438 = scalar_lea.vmem %s13, %s437
      %v440 = vld [vmem:[%s434] sm:$0xf]
      %v441 = vld [vmem:[%s434 + $0x4] sm:$0xf]
      %v442 = vld [vmem:[%s434 + $0x8] sm:$0xf]
      %v443 = vld [vmem:[%s434 + $0xc] sm:$0xf]
      %v444 = vld [vmem:[%s11] sm:$0xff]
      %v445 = vld [vmem:[%s11 + $0x8] sm:$0xff]
      %v446 = vld [vmem:[%s11 + $0x10] sm:$0xff]
      %v447 = vld [vmem:[%s11 + $0x18] sm:$0xff]
      %v448 = vld [vmem:[%s11 + $0x20] sm:$0xff]
      %v449 = vld [vmem:[%s11 + $0x28] sm:$0xf]
      %v450 = vld [vmem:[%s1] sm:$0xf]
      %v451 = vld [vmem:[%s4] sm:$0xff]
      %453 = vset.pattern.permute.xlu0 0
      %454 = vperm.xlu0 %453, %v451
      %v455 = vpop.permute.xlu0 %454
      %v461 = vunpack.c.l.b16 %v440
      %v462 = vunpack.c.l.b16 %v441
      %v463 = vunpack.c.l.b16 %v442
      %v464 = vunpack.c.l.b16 %v443
      %v465 = vpack.c.b16 %v462, %v461
      %v466 = vpack.c.b16 %v464, %v463
      %vm469 = vcmask 261120
      %v471 = vsel %vm469, %v450, 0
      %473 = vmatpush.bf16.msra.mxu0 0
      %474 = vmatpush.bf16.msra.mxu0 0
      %475 = vmatpush.bf16.msra.mxu0 0
      %476 = vmatpush.bf16.msra.mxu0 0
      %477 = vmatpush.bf16.msra.mxu0 0
      %478 = vmatpush.bf16.msra.mxu0 0
      %479 = vmatpush.bf16.msra.mxu0 %v466
      %480 = vmatpush.bf16.msra.mxu0 %v465
      %481 = vmatmul.bf16.gmra.mxu0 %v471
      %v482 = vpop.f32.mrf.mxu0
      %v483 = vadd.f32 %v455, %v482
      %v484 = vpop.f32.mrf.mxu0
      %485 = vdwg.mxu0
      %v486 = vld [vmem:[%s2] sm:$0xf]
      %v487 = vld [vmem:[%s5] sm:$0xff]
      %489 = vset.pattern.permute.xlu0 0
      %490 = vperm.xlu0 %489, %v487
      %v491 = vpop.permute.xlu0 %490
      %vm493 = vcmask 130048
      %v495 = vsel %vm493, %v486, 0
      %497 = vmatpush.bf16.msra.mxu0 0
      %498 = vmatpush.bf16.msra.mxu0 0
      %499 = vmatpush.bf16.msra.mxu0 0
      %500 = vmatpush.bf16.msra.mxu0 0
      %501 = vmatpush.bf16.msra.mxu0 0
      %502 = vmatpush.bf16.msra.mxu0 0
      %503 = vmatpush.bf16.msra.mxu0 0
      %504 = vmatpush.bf16.msra.mxu0 %v465
      %505 = vmatmul.bf16.gmra.mxu0 %v495
      %v506 = vpop.f32.mrf.mxu0
      %v507 = vadd.f32 %v491, %v506
      %v508 = vpop.f32.mrf.mxu0
      %509 = vdwg.mxu0
      %510 = vmatpush.bf16.msra.mxu0 0
      %511 = vmatpush.bf16.msra.mxu0 0
      %512 = vmatpush.bf16.msra.mxu0 0
      %513 = vmatpush.bf16.msra.mxu0 0
      %514 = vmatpush.bf16.msra.mxu0 0
      %515 = vmatpush.bf16.msra.mxu0 0
      %516 = vmatpush.bf16.msra.mxu0 0
      %517 = vmatpush.bf16.msra.mxu0 %v466
      %518 = vmatmul.bf16.gmra.mxu0 %v495
      %v519 = vpop.f32.mrf.mxu0
      %v520 = vadd.f32 %v491, %v519
      %v521 = vpop.f32.mrf.mxu0
      %522 = vdwg.mxu0
      %vm523 = vcmp.ge.f32.partialorder %v483, 0.0
      %v524 = vmul.f32 %v483, 0.01
      %v525 = vsel %vm523, %v483, %v524
      %vm526 = vcmask 359424
      %v528 = vsel %vm526, %v525, 0
      %vm530 = vcmask 1043456
      %v532 = vsel %vm530, %v449, 0
      %534 = vmatpush.msra.mxu0 0.0
      %535 = vmatpush.msra.mxu0 0.0
      %536 = vmatpush.msra.mxu0 0.0
      %537 = vmatpush.msra.mxu0 0.0
      %538 = vmatpush.msra.mxu0 0.0
      %539 = vmatpush.msra.mxu0 0.0
      %540 = vmatpush.msra.mxu0 0.0
      %541 = vmatpush.msra.mxu0 0.0
      %542 = vmatpush.msra.mxu0 0.0
      %543 = vmatpush.msra.mxu0 0.0
      %544 = vmatpush.msra.mxu0 %v532
      %545 = vmatpush.msra.mxu0 %v448
      %546 = vmatpush.msra.mxu0 %v447
      %547 = vmatpush.msra.mxu0 %v446
      %548 = vmatpush.msra.mxu0 %v445
      %549 = vmatpush.msra.mxu0 %v444
      %550 = vmatmul.f32.gmra.mxu0 %v528
      %v551 = vpop.f32.mrf.mxu0
      %v552 = vadd.f32 0.0, %v551
      %553 = vdwg.mxu0
      %v554 = vld [vmem:[%s7] sm:$0xff]
      %556 = vset.pattern.permute.xlu0 0
      %557 = vperm.xlu0 %556, %v554
      %v558 = vpop.permute.xlu0 %557
      %v560 = vmul.f32 %v552, %v558
      %v561 = vld [vmem:[%s8] sm:$0xff]
      %563 = vset.pattern.permute.xlu0 0
      %564 = vperm.xlu0 %563, %v561
      %v565 = vpop.permute.xlu0 %564
      %v567 = vadd.f32 %v560, %v565
      %vm568 = vcmp.ge.f32.partialorder %v507, 0.0
      %v569 = vmul.f32 %v507, 0.01
      %v570 = vsel %vm568, %v507, %v569
      %v572 = vsel %vm526, %v570, 0
      %574 = vmatpush.msra.mxu0 0.0
      %575 = vmatpush.msra.mxu0 0.0
      %576 = vmatpush.msra.mxu0 0.0
      %577 = vmatpush.msra.mxu0 0.0
      %578 = vmatpush.msra.mxu0 0.0
      %579 = vmatpush.msra.mxu0 0.0
      %580 = vmatpush.msra.mxu0 0.0
      %581 = vmatpush.msra.mxu0 0.0
      %582 = vmatpush.msra.mxu0 0.0
      %583 = vmatpush.msra.mxu0 0.0
      %584 = vmatpush.msra.mxu0 %v532
      %585 = vmatpush.msra.mxu0 %v448
      %586 = vmatpush.msra.mxu0 %v447
      %587 = vmatpush.msra.mxu0 %v446
      %588 = vmatpush.msra.mxu0 %v445
      %589 = vmatpush.msra.mxu0 %v444
      %590 = vmatmul.f32.gmra.mxu0 %v572
      %v591 = vpop.f32.mrf.mxu0
      %v592 = vadd.f32 0.0, %v591
      %593 = vdwg.mxu0
      %v594 = vmul.f32 %v592, %v558
      %v595 = vadd.f32 %v594, %v565
      %vm596 = vcmp.ge.f32.partialorder %v520, 0.0
      %v597 = vmul.f32 %v520, 0.01
      %v598 = vsel %vm596, %v520, %v597
      %v600 = vsel %vm526, %v598, 0
      %602 = vmatpush.msra.mxu0 0.0
      %603 = vmatpush.msra.mxu0 0.0
      %604 = vmatpush.msra.mxu0 0.0
      %605 = vmatpush.msra.mxu0 0.0
      %606 = vmatpush.msra.mxu0 0.0
      %607 = vmatpush.msra.mxu0 0.0
      %608 = vmatpush.msra.mxu0 0.0
      %609 = vmatpush.msra.mxu0 0.0
      %610 = vmatpush.msra.mxu0 0.0
      %611 = vmatpush.msra.mxu0 0.0
      %612 = vmatpush.msra.mxu0 %v532
      %613 = vmatpush.msra.mxu0 %v448
      %614 = vmatpush.msra.mxu0 %v447
      %615 = vmatpush.msra.mxu0 %v446
      %616 = vmatpush.msra.mxu0 %v445
      %617 = vmatpush.msra.mxu0 %v444
      %618 = vmatmul.f32.gmra.mxu0 %v600
      %v619 = vpop.f32.mrf.mxu0
      %v620 = vadd.f32 0.0, %v619
      %621 = vdwg.mxu0
      %v622 = vmul.f32 %v620, %v558
      %v623 = vadd.f32 %v622, %v565
      %v624 = vld [vmem:[%s3] sm:$0xf]
      %v625 = vpack.c.bf16 %v567, %v567
      %v626 = vpack.c.bf16 %v595, %v595
      %v628 = vunpack.c.l.b16 %v624
      %v629 = vpack.c.b16 %v628, %v628
      %630 = vrot.lane.b32.xlu0 %v629, 120
      %v631 = vpop.permute.xlu0 %630
      %vm632 = vcmask 64512
      %v634 = vsel %vm632, %v631, 0
      %v637 = vsel %vm530, %v626, 0
      %639 = vmatpush.bf16.msra.mxu0 0
      %640 = vmatpush.bf16.msra.mxu0 0
      %641 = vmatpush.bf16.msra.mxu0 0
      %642 = vmatpush.bf16.msra.mxu0 0
      %643 = vmatpush.bf16.msra.mxu0 0
      %644 = vmatpush.bf16.msra.mxu0 0
      %645 = vmatpush.bf16.msra.mxu0 0
      %646 = vmatpush.bf16.msra.mxu0 %v637
      %647 = vmatmul.bf16.gmra.mxu0 %v634
      %v648 = vpop.f32.mrf.mxu0
      %v649 = vadd.f32 0.0, %v648
      %v650 = vpop.f32.mrf.mxu0
      %651 = vdwg.mxu0
      %v653 = vsel %vm632, %v624, 0
      %v656 = vsel %vm530, %v625, 0
      %658 = vmatpush.bf16.msra.mxu0 0
      %659 = vmatpush.bf16.msra.mxu0 0
      %660 = vmatpush.bf16.msra.mxu0 0
      %661 = vmatpush.bf16.msra.mxu0 0
      %662 = vmatpush.bf16.msra.mxu0 0
      %663 = vmatpush.bf16.msra.mxu0 0
      %664 = vmatpush.bf16.msra.mxu0 0
      %665 = vmatpush.bf16.msra.mxu0 %v656
      %666 = vmatmul.bf16.gmra.mxu0 %v653
      %v667 = vpop.f32.mrf.mxu0
      %v668 = vadd.f32 %v649, %v667
      %v669 = vpop.f32.mrf.mxu0
      %670 = vdwg.mxu0
      %v671 = vpack.c.bf16 %v623, %v623
      %672 = vrot.lane.b32.xlu0 %v629, 112
      %v673 = vpop.permute.xlu0 %672
      %v675 = vsel %vm632, %v673, 0
      %v678 = vsel %vm530, %v671, 0
      %680 = vmatpush.bf16.msra.mxu0 0
      %681 = vmatpush.bf16.msra.mxu0 0
      %682 = vmatpush.bf16.msra.mxu0 0
      %683 = vmatpush.bf16.msra.mxu0 0
      %684 = vmatpush.bf16.msra.mxu0 0
      %685 = vmatpush.bf16.msra.mxu0 0
      %686 = vmatpush.bf16.msra.mxu0 0
      %687 = vmatpush.bf16.msra.mxu0 %v678
      %688 = vmatmul.bf16.gmra.mxu0 %v675
      %v689 = vpop.f32.mrf.mxu0
      %v690 = vadd.f32 0.0, %v689
      %v691 = vpop.f32.mrf.mxu0
      %692 = vdwg.mxu0
      %v693 = vadd.f32 %v668, %v690
      %v694 = vld [vmem:[%s6] sm:$0xff]
      %696 = vset.pattern.permute.xlu0 0
      %697 = vperm.xlu0 %696, %v694
      %v698 = vpop.permute.xlu0 %697
      %v700 = vadd.f32 %v693, %v698
      %vm701 = vcmp.ge.f32.partialorder %v700, 0.0
      %v702 = vmul.f32 %v700, 0.01
      %v703 = vsel %vm701, %v700, %v702
      %v704 = vld [vmem:[%s12] sm:$0xff]
      %v705 = vld [vmem:[%s12 + $0x8] sm:$0xff]
      %v706 = vld [vmem:[%s12 + $0x10] sm:$0x3f]
      %vm707 = vcmask 179200
      %v709 = vsel %vm707, %v703, 0
      %vm711 = vcmask 1045504
      %v713 = vsel %vm711, %v706, 0
      %715 = vmatpush.msra.mxu0 0.0
      %716 = vmatpush.msra.mxu0 0.0
      %717 = vmatpush.msra.mxu0 0.0
      %718 = vmatpush.msra.mxu0 0.0
      %719 = vmatpush.msra.mxu0 0.0
      %720 = vmatpush.msra.mxu0 0.0
      %721 = vmatpush.msra.mxu0 0.0
      %722 = vmatpush.msra.mxu0 0.0
      %723 = vmatpush.msra.mxu0 0.0
      %724 = vmatpush.msra.mxu0 0.0
      %725 = vmatpush.msra.mxu0 0.0
      %726 = vmatpush.msra.mxu0 0.0
      %727 = vmatpush.msra.mxu0 0.0
      %728 = vmatpush.msra.mxu0 %v713
      %729 = vmatpush.msra.mxu0 %v705
      %730 = vmatpush.msra.mxu0 %v704
      %731 = vmatmul.f32.gmra.mxu0 %v709
      %v732 = vpop.f32.mrf.mxu0
      %v733 = vadd.f32 0.0, %v732
      %734 = vdwg.mxu0
      %v735 = vld [vmem:[%s9] sm:$0xff]
      %737 = vset.pattern.permute.xlu0 0
      %738 = vperm.xlu0 %737, %v735
      %v739 = vpop.permute.xlu0 %738
      %v741 = vmul.f32 %v733, %v739
      %v742 = vld [vmem:[%s10] sm:$0xff]
      %744 = vset.pattern.permute.xlu0 0
      %745 = vperm.xlu0 %744, %v742
      %v746 = vpop.permute.xlu0 %745
      %v748 = vadd.f32 %v741, %v746
      %vm749 = vcmask 39936
      %750 = vst.msk [vmem:[%s438] sm:$0xff] %vm749, %v748
      %p751 = scmp.lt.s32.totalorder %s24, 1
      %s752 = scalar_select %p751, %s24, 1
      %s753 = smul.addr %s752, 8
      %s754 = scalar_lea.vmem %s13, %s753
      // Predicated region
      $region73: #{tsception_forward.3} parent=71 // pred_check
        %p755 = pneg %p320
      $region74: #{tsception_forward.3} parent=71 // pred_check_branch
        %757 = sbr.rel (%p755) target = $region76
      $region75: #{tsception_forward.3} parent=71 // pred_region
        _
      $region76: #{tsception_forward.3} parent=71 // pred_fallthru
        _
    $region72: #{tsception_forward.3} parent=5 // pred_fallthru
      _
    %p758 = scmp.le.s32.totalorder 2, %s19
    // Predicated region
    $region77: #{tsception_forward.3} parent=5 // pred_check
      %p759 = pneg %p758
    $region78: #{tsception_forward.3} parent=5 // pred_check_branch
      %761 = sbr.rel (%p759) target = $region80
    $region79: #{tsception_forward.3} parent=5 // pred_region
      %s762 = ssub.s32 %s19, 2
      // Predicated region
      $region81: #{tsception_forward.3} parent=79 // pred_check
        %p763 = pneg %p326
      $region82: #{tsception_forward.3} parent=79 // pred_check_branch
        %765 = sbr.rel (%p763) target = $region84
      $region83: #{tsception_forward.3} parent=79 // pred_region
        %p766 = scmp.lt.s32.totalorder %s25, 1
        %s767 = scalar_select %p766, %s25, 1
        %s768 = smul.addr %s767, 8
        %s769 = scalar_lea.vmem %s13, %s768
      $region84: #{tsception_forward.3} parent=79 // pred_fallthru
        _
    $region80: #{tsception_forward.3} parent=5 // pred_fallthru
      _
  $region6: #{tsception_forward.3} parent=0 // loop_footer
    %s23 = sadd.s32 1, %s19
  $region7: #{tsception_forward.3} parent=0 // loop_footer_branch
    %18 = sbr.rel target = $region3
  $region8: #{tsception_forward.3} parent=0 // loop_exit
    _

// kernel: tsception_forward.2
$region0: #{tsception_forward.2}
  #allocation0 [shape = 'u32[]', space=smem, size = 0x4, offset = 0x4, fixed_abs, tag = 'smem constant byte address 0x4 - core index']
  #allocation1 [shape = 'u32[72,128]{1,0:T(1,128)}', space=vmem, size = 0x9000, scoped, tag = 'internal scratch']
  #allocation2 [shape = 'bf16[16,120]{1,0:T(8,128)(2,1)}', space=vmem, size = 0x1000, scoped, tag = 'scratch operand']
  %s0 = inlined_call_operand.vmem [shape: bf16[2,4,256], index: 0, kind: input, shape index: {}]
  %s1 = inlined_call_operand.vmem [shape: bf16[24,16], index: 1, kind: input, shape index: {}]
  %s2 = inlined_call_operand.vmem [shape: f32[120,15], index: 2, kind: input, shape index: {}]
  %s3 = inlined_call_operand.vmem [shape: f32[24,1], index: 3, kind: input, shape index: {}]
  %s4 = inlined_call_operand.vmem [shape: f32[24,1], index: 4, kind: input, shape index: {}]
  %s5 = inlined_call_operand.vmem [shape: f32[24,1], index: 5, kind: input, shape index: {}]
  %s6 = inlined_call_operand.vmem [shape: bf16[2,32,44], index: 6, kind: output, shape index: {}]
  %s7 = sld [smem:[#allocation0]]
  $region57: #{tsception_forward.2} parent=0
    _
  %s9 = ssub.s32 1, %s7
  %s10 = scalar_select 0, %s9, %s7
  loop: start=0, step=1, limit=4
  $region2: #{tsception_forward.2} parent=0 // loop_pre_header
    _
  $region3: #{tsception_forward.2} parent=0 // loop_header
    %s12 = sphi 0, %s16
    %p13 = scmp.ge.s32.totalorder %s12, 4
    %s22 = sphi 0, %s24
    %s25 = sphi 0, %s22
    %s26 = sphi 0, %s25
    %s42 = sphi 0, %s26
    %s46 = sphi 0, %s46
    %s48 = sphi 0, %s46
    %s49 = sphi 0, %s48
    %s63 = sphi 0, %s49
    %s67 = sphi 0, %s67
    %s69 = sphi 0, %s67
    %s70 = sphi 0, %s69
    %s84 = sphi 0, %s70
    %s88 = sphi 0, %s88
    %s90 = sphi 0, %s88
    %s91 = sphi 0, %s90
    %s105 = sphi 0, %s91
    %s109 = sphi 0, %s109
    %s111 = sphi 0, %s109
    %s112 = sphi 0, %s111
    %s126 = sphi 0, %s112
    %s130 = sphi 0, %s130
    %s132 = sphi 0, %s130
    %s133 = sphi 0, %s132
    %s147 = sphi 0, %s133
    %s153 = sphi 0, %s155
    %s156 = sphi 0, %s153
    %s157 = sphi 0, %s156
    %s173 = sphi 0, %s157
  $region4: #{tsception_forward.2} parent=0 // loop_header_branch
    %15 = sbr.rel (%p13) target = $region8
  $region5: #{tsception_forward.2} parent=0 // loop_body
    %s17 = ssub.s32 %s12, 1
    %s18 = ssub.s32 %s12, 2
    %s19 = sadd.s32 %s12, 1
    %s20 = ssub.s32 %s12, %s19
    %p21 = scmp.eq.s32.totalorder %s20, 0
    %s23 = sadd.s32 %s22, 1
    %s24 = scalar_select %p21, %s22, %s23
    %p27 = pneg %p21
    %p28 = scmp.eq.s32.totalorder %s12, 1
    %p29 = por %p27, %p28
    %p30 = scmp.ne.s32.totalorder %s22, %s25
    %p31 = scmp.eq.s32.totalorder %s12, 0
    %p32 = por %p30, %p31
    %p33 = scmp.ne.s32.totalorder %s22, %s25
    %p34 = scmp.eq.s32.totalorder %s17, 1
    %p35 = por %p33, %p34
    %p36 = scmp.ne.s32.totalorder %s25, %s26
    %p37 = scmp.eq.s32.totalorder %s17, 0
    %p38 = por %p36, %p37
    %p39 = scmp.ne.s32.totalorder %s25, %s26
    %p40 = scmp.eq.s32.totalorder %s18, 1
    %p41 = por %p39, %p40
    %p43 = scmp.ne.s32.totalorder %s26, %s42
    %p44 = scmp.eq.s32.totalorder %s18, 0
    %p45 = por %p43, %p44
    %s47 = sadd.s32 %s46, 1
    %p50 = scmp.eq.s32.totalorder %s12, 1
    %p51 = scmp.ne.s32.totalorder %s46, %s48
    %p52 = scmp.eq.s32.totalorder %s12, 0
    %p53 = por %p51, %p52
    %p54 = scmp.ne.s32.totalorder %s46, %s48
    %p55 = scmp.eq.s32.totalorder %s17, 1
    %p56 = por %p54, %p55
    %p57 = scmp.ne.s32.totalorder %s48, %s49
    %p58 = scmp.eq.s32.totalorder %s17, 0
    %p59 = por %p57, %p58
    %p60 = scmp.ne.s32.totalorder %s48, %s49
    %p61 = scmp.eq.s32.totalorder %s18, 1
    %p62 = por %p60, %p61
    %p64 = scmp.ne.s32.totalorder %s49, %s63
    %p65 = scmp.eq.s32.totalorder %s18, 0
    %p66 = por %p64, %p65
    %s68 = sadd.s32 %s67, 1
    %p71 = scmp.eq.s32.totalorder %s12, 1
    %p72 = scmp.ne.s32.totalorder %s67, %s69
    %p73 = scmp.eq.s32.totalorder %s12, 0
    %p74 = por %p72, %p73
    %p75 = scmp.ne.s32.totalorder %s67, %s69
    %p76 = scmp.eq.s32.totalorder %s17, 1
    %p77 = por %p75, %p76
    %p78 = scmp.ne.s32.totalorder %s69, %s70
    %p79 = scmp.eq.s32.totalorder %s17, 0
    %p80 = por %p78, %p79
    %p81 = scmp.ne.s32.totalorder %s69, %s70
    %p82 = scmp.eq.s32.totalorder %s18, 1
    %p83 = por %p81, %p82
    %p85 = scmp.ne.s32.totalorder %s70, %s84
    %p86 = scmp.eq.s32.totalorder %s18, 0
    %p87 = por %p85, %p86
    %s89 = sadd.s32 %s88, 1
    %p92 = scmp.eq.s32.totalorder %s12, 1
    %p93 = scmp.ne.s32.totalorder %s88, %s90
    %p94 = scmp.eq.s32.totalorder %s12, 0
    %p95 = por %p93, %p94
    %p96 = scmp.ne.s32.totalorder %s88, %s90
    %p97 = scmp.eq.s32.totalorder %s17, 1
    %p98 = por %p96, %p97
    %p99 = scmp.ne.s32.totalorder %s90, %s91
    %p100 = scmp.eq.s32.totalorder %s17, 0
    %p101 = por %p99, %p100
    %p102 = scmp.ne.s32.totalorder %s90, %s91
    %p103 = scmp.eq.s32.totalorder %s18, 1
    %p104 = por %p102, %p103
    %p106 = scmp.ne.s32.totalorder %s91, %s105
    %p107 = scmp.eq.s32.totalorder %s18, 0
    %p108 = por %p106, %p107
    %s110 = sadd.s32 %s109, 1
    %p113 = scmp.eq.s32.totalorder %s12, 1
    %p114 = scmp.ne.s32.totalorder %s109, %s111
    %p115 = scmp.eq.s32.totalorder %s12, 0
    %p116 = por %p114, %p115
    %p117 = scmp.ne.s32.totalorder %s109, %s111
    %p118 = scmp.eq.s32.totalorder %s17, 1
    %p119 = por %p117, %p118
    %p120 = scmp.ne.s32.totalorder %s111, %s112
    %p121 = scmp.eq.s32.totalorder %s17, 0
    %p122 = por %p120, %p121
    %p123 = scmp.ne.s32.totalorder %s111, %s112
    %p124 = scmp.eq.s32.totalorder %s18, 1
    %p125 = por %p123, %p124
    %p127 = scmp.ne.s32.totalorder %s112, %s126
    %p128 = scmp.eq.s32.totalorder %s18, 0
    %p129 = por %p127, %p128
    %s131 = sadd.s32 %s130, 1
    %p134 = scmp.eq.s32.totalorder %s12, 1
    %p135 = scmp.ne.s32.totalorder %s130, %s132
    %p136 = scmp.eq.s32.totalorder %s12, 0
    %p137 = por %p135, %p136
    %p138 = scmp.ne.s32.totalorder %s130, %s132
    %p139 = scmp.eq.s32.totalorder %s17, 1
    %p140 = por %p138, %p139
    %p141 = scmp.ne.s32.totalorder %s132, %s133
    %p142 = scmp.eq.s32.totalorder %s17, 0
    %p143 = por %p141, %p142
    %p144 = scmp.ne.s32.totalorder %s132, %s133
    %p145 = scmp.eq.s32.totalorder %s18, 1
    %p146 = por %p144, %p145
    %p148 = scmp.ne.s32.totalorder %s133, %s147
    %p149 = scmp.eq.s32.totalorder %s18, 0
    %p150 = por %p148, %p149
    %s151 = ssub.s32 %s12, %s19
    %p152 = scmp.eq.s32.totalorder %s151, 0
    %s154 = sadd.s32 %s153, 1
    %s155 = scalar_select %p152, %s153, %s154
    %p158 = pneg %p152
    %p159 = scmp.eq.s32.totalorder %s12, 1
    %p160 = por %p158, %p159
    %p161 = scmp.ne.s32.totalorder %s153, %s156
    %p162 = scmp.eq.s32.totalorder %s12, 0
    %p163 = por %p161, %p162
    %p164 = scmp.ne.s32.totalorder %s153, %s156
    %p165 = scmp.eq.s32.totalorder %s17, 1
    %p166 = por %p164, %p165
    %p167 = scmp.ne.s32.totalorder %s156, %s157
    %p168 = scmp.eq.s32.totalorder %s17, 0
    %p169 = por %p167, %p168
    %p170 = scmp.ne.s32.totalorder %s156, %s157
    %p171 = scmp.eq.s32.totalorder %s18, 1
    %p172 = por %p170, %p171
    %p174 = scmp.ne.s32.totalorder %s157, %s173
    %p175 = scmp.eq.s32.totalorder %s18, 0
    %p176 = por %p174, %p175
    %p177 = scmp.le.s32.totalorder 1, %s12
    %p178 = scmp.lt.s32.totalorder %s12, 3
    %p179 = pnand %p177, %p178
    %p180 = pneg %p179
    // Predicated region
    $region9: #{tsception_forward.2} parent=5 // pred_check
      _
    $region10: #{tsception_forward.2} parent=5 // pred_check_branch
      %182 = sbr.rel (%p179) target = $region12
    $region11: #{tsception_forward.2} parent=5 // pred_region
      %s183 = ssub.s32 %s12, 1
      // Predicated region
      $region13: #{tsception_forward.2} parent=11 // pred_check
        %p184 = pneg %p59
      $region14: #{tsception_forward.2} parent=11 // pred_check_branch
        %186 = sbr.rel (%p184) target = $region16
      $region15: #{tsception_forward.2} parent=11 // pred_region
        _
      $region16: #{tsception_forward.2} parent=11 // pred_fallthru
        _
      // Predicated region
      $region17: #{tsception_forward.2} parent=11 // pred_check
        %p187 = pneg %p80
      $region18: #{tsception_forward.2} parent=11 // pred_check_branch
        %189 = sbr.rel (%p187) target = $region20
      $region19: #{tsception_forward.2} parent=11 // pred_region
        _
      $region20: #{tsception_forward.2} parent=11 // pred_fallthru
        _
      // Predicated region
      $region21: #{tsception_forward.2} parent=11 // pred_check
        %p190 = pneg %p101
      $region22: #{tsception_forward.2} parent=11 // pred_check_branch
        %192 = sbr.rel (%p190) target = $region24
      $region23: #{tsception_forward.2} parent=11 // pred_region
        _
      $region24: #{tsception_forward.2} parent=11 // pred_fallthru
        _
      // Predicated region
      $region25: #{tsception_forward.2} parent=11 // pred_check
        %p193 = pneg %p122
      $region26: #{tsception_forward.2} parent=11 // pred_check_branch
        %195 = sbr.rel (%p193) target = $region28
      $region27: #{tsception_forward.2} parent=11 // pred_region
        _
      $region28: #{tsception_forward.2} parent=11 // pred_fallthru
        _
      // Predicated region
      $region29: #{tsception_forward.2} parent=11 // pred_check
        %p196 = pneg %p143
      $region30: #{tsception_forward.2} parent=11 // pred_check_branch
        %198 = sbr.rel (%p196) target = $region32
      $region31: #{tsception_forward.2} parent=11 // pred_region
        _
      $region32: #{tsception_forward.2} parent=11 // pred_fallthru
        _
    $region12: #{tsception_forward.2} parent=5 // pred_fallthru
      _
    %p199 = scmp.lt.s32.totalorder %s12, 2
    // Predicated region
    $region33: #{tsception_forward.2} parent=5 // pred_check
      %p200 = pneg %p199
    $region34: #{tsception_forward.2} parent=5 // pred_check_branch
      %202 = sbr.rel (%p200) target = $region36
    $region35: #{tsception_forward.2} parent=5 // pred_region
      // Predicated region
      $region37: #{tsception_forward.2} parent=35 // pred_check
        %p203 = pneg %p32
      $region38: #{tsception_forward.2} parent=35 // pred_check_branch
        %205 = sbr.rel (%p203) target = $region40
      $region39: #{tsception_forward.2} parent=35 // pred_region
        %p206 = scmp.lt.s32.totalorder %s12, 1
        %s207 = scalar_select %p206, %s12, 1
        %s208 = smul.addr %s207, 2
        %s209 = smul.addr %s208, 2
        %s210 = scalar_lea.vmem %s0, %s209
      $region40: #{tsception_forward.2} parent=35 // pred_fallthru
        _
    $region36: #{tsception_forward.2} parent=5 // pred_fallthru
      _
    %p211 = scmp.le.s32.totalorder 1, %s12
    %p212 = scmp.lt.s32.totalorder %s12, 3
    %p213 = pnand %p211, %p212
    %p214 = pneg %p213
    // Predicated region
    $region41: #{tsception_forward.2} parent=5 // pred_check
      _
    $region42: #{tsception_forward.2} parent=5 // pred_check_branch
      %216 = sbr.rel (%p213) target = $region44
    $region43: #{tsception_forward.2} parent=5 // pred_region
      %s217 = ssub.s32 %s12, 1
      %p218 = scmp.lt.s32.totalorder %s17, 1
      %s219 = scalar_select %p218, %s17, 1
      %s220 = smul.addr %s219, 2
      %s221 = smul.addr %s220, 2
      %s222 = scalar_lea.vmem %s0, %s221
      %p223 = pneg %p38
      %p224 = pneg %p35
      %p225 = pneg %p59
      %p226 = pneg %p56
      %p227 = pneg %p80
      %p228 = pneg %p77
      %p229 = pneg %p101
      %p230 = pneg %p98
      %p231 = pneg %p122
      %p232 = pneg %p119
      %p233 = pneg %p143
      %p234 = pneg %p140
      %p235 = pneg %p169
      %p236 = pneg %p166
      %p237 = scmp.lt.s32.totalorder %s17, 1
      %s238 = scalar_select %p237, %s17, 1
      %s239 = smul.addr %s238, 4
      %s240 = smul.addr %s239, 4
      %s241 = scalar_lea.vmem %s6, %s240
      %p242 = scmp.lt.s32.totalorder %s17, 1
      %s243 = scalar_select %p242, %s17, 1
      %s244 = smul.addr %s243, 2
      %s245 = smul.addr %s244, 2
      %s246 = scalar_lea.vmem %s0, %s245
      %p247 = scmp.lt.s32.totalorder %s17, 1
      %s248 = scalar_select %p247, %s17, 1
      %s249 = smul.addr %s248, 4
      %s250 = smul.addr %s249, 4
      %s251 = scalar_lea.vmem %s6, %s250
      %v253 = vld [vmem:[%s246] sm:$0xf]
      %vm254 = vcmask 974848
      %vm255 = vsmask.f32 256
      %vm256 = vmand %vm254, %vm255
      %v257 = vld [vmem:[#allocation2] sm:$0x1]
      %v258 = vsel %vm256, %v253, %v257
      %259 = vst [vmem:[#allocation2] sm:$0x1] %v258
      %261 = vst [vmem:[#allocation1] ss:$2 sm:$0xff] %v253
      %v262 = vld.sshfl [vmem:[#allocation1] sm:$0xff pattern:$0x75643120]
      %v263 = vshll.u32 %v262, 16
      %265 = vrot.lane.b32.xlu0 %v263, 127
      %v266 = vpop.permute.xlu0 %265
      %vm268 = vsmask.f32 7938
      %vm269 = vmand %vm254, %vm268
      %v270 = vld [vmem:[#allocation2] sm:$0x1]
      %v271 = vsel %vm269, %v266, %v270
      %272 = vst [vmem:[#allocation2] sm:$0x1] %v271
      %273 = vst [vmem:[#allocation1] ss:$2 sm:$0xff] %v253
      %v274 = vld.sshfl [vmem:[#allocation1] sm:$0xff pattern:$0x75643120]
      %v276 = vrot.slane %v274, 7
      %277 = vrot.lane.b32.xlu0 %v276, 126
      %v278 = vpop.permute.xlu0 %277
      %vm280 = vcmask 975873
      %vm281 = vsmask.f32 1280
      %vm282 = vmand %vm280, %vm281
      %v283 = vld [vmem:[#allocation2] sm:$0x2]
      %v284 = vsel %vm282, %v278, %v283
      %285 = vst [vmem:[#allocation2] sm:$0x2] %v284
      %286 = vst [vmem:[#allocation1] ss:$2 sm:$0xff] %v253
      %v287 = vld.sshfl [vmem:[#allocation1] sm:$0xff pattern:$0x75643120]
      %v288 = vshll.u32 %v287, 16
      %v290 = vrot.slane %v288, 7
      %291 = vrot.lane.b32.xlu0 %v290, 125
      %v292 = vpop.permute.xlu0 %291
      %vm294 = vsmask.f32 7942
      %vm295 = vmand %vm280, %vm294
      %v296 = vld [vmem:[#allocation2] sm:$0x2]
      %v297 = vsel %vm295, %v292, %v296
      %298 = vst [vmem:[#allocation2] sm:$0x2] %v297
      %s299 = scalar_lea.vmem [#allocation1], 1
      %300 = vst [vmem:[%s299] ss:$2 sm:$0xff] %v253
      %v301 = vld.sshfl [vmem:[#allocation1] sm:$0xff pattern:$0x75643120]
      %303 = vrot.lane.b32.xlu0 %v301, 124
      %v304 = vpop.permute.xlu0 %303
      %vm306 = vcmask 976898
      %vm307 = vsmask.f32 2304
      %vm308 = vmand %vm306, %vm307
      %v309 = vld [vmem:[#allocation2] sm:$0x4]
      %v310 = vsel %vm308, %v304, %v309
      %311 = vst [vmem:[#allocation2] sm:$0x4] %v310
      %312 = vst [vmem:[#allocation1] ss:$2 sm:$0xff] %v253
      %v313 = vld.sshfl [vmem:[#allocation1] sm:$0xff pattern:$0x75643120]
      %v314 = vshll.u32 %v313, 16
      %v316 = vrot.slane %v314, 6
      %317 = vrot.lane.b32.xlu0 %v316, 123
      %v318 = vpop.permute.xlu0 %317
      %vm320 = vsmask.f32 7946
      %vm321 = vmand %vm306, %vm320
      %v322 = vld [vmem:[#allocation2] sm:$0x4]
      %v323 = vsel %vm321, %v318, %v322
      %324 = vst [vmem:[#allocation2] sm:$0x4] %v323
      %325 = vst [vmem:[#allocation1] ss:$2 sm:$0xff] %v253
      %v326 = vld.sshfl [vmem:[#allocation1] sm:$0xff pattern:$0x75643120]
      %v328 = vrot.slane %v326, 5
      %329 = vrot.lane.b32.xlu0 %v328, 122
      %v330 = vpop.permute.xlu0 %329
      %vm332 = vcmask 977923
      %vm333 = vsmask.f32 3328
      %vm334 = vmand %vm332, %vm333
      %v335 = vld [vmem:[#allocation2] sm:$0x8]
      %v336 = vsel %vm334, %v330, %v335
      %337 = vst [vmem:[#allocation2] sm:$0x8] %v336
      %338 = vst [vmem:[#allocation1] ss:$2 sm:$0xff] %v253
      %v339 = vld.sshfl [vmem:[#allocation1] sm:$0xff pattern:$0x75643120]
      %v340 = vshll.u32 %v339, 16
      %v342 = vrot.slane %v340, 5
      %343 = vrot.lane.b32.xlu0 %v342, 121
      %v344 = vpop.permute.xlu0 %343
      %vm346 = vsmask.f32 7950
      %vm347 = vmand %vm332, %vm346
      %v348 = vld [vmem:[#allocation2] sm:$0x8]
      %v349 = vsel %vm347, %v344, %v348
      %350 = vst [vmem:[#allocation2] sm:$0x8] %v349
      %351 = vst [vmem:[#allocation1] ss:$2 sm:$0xff] %v253
      %v352 = vld.sshfl [vmem:[#allocation1] sm:$0xff pattern:$0x75643120]
      %354 = vrot.lane.b32.xlu0 %v352, 120
      %v355 = vpop.permute.xlu0 %354
      %v357 = vld [vmem:[#allocation2 + $0x4] sm:$0x1]
      %v358 = vsel %vm256, %v355, %v357
      %359 = vst [vmem:[#allocation2 + $0x4] sm:$0x1] %v358
      %360 = vst [vmem:[#allocation1] ss:$2 sm:$0xff] %v253
      %v361 = vld.sshfl [vmem:[#allocation1] sm:$0xff pattern:$0x75643120]
      %v362 = vshll.u32 %v361, 16
      %364 = vrot.lane.b32.xlu0 %v362, 119
      %v365 = vpop.permute.xlu0 %364
      %v366 = vrot.slane %v365, 4
      %vm367 = vcmask 973824
      %v368 = vsel %vm367, %v365, %v366
      %v370 = vld [vmem:[#allocation2 + $0x4] sm:$0x1]
      %v371 = vsel %vm269, %v368, %v370
      %372 = vst [vmem:[#allocation2 + $0x4] sm:$0x1] %v371
      %373 = vst [vmem:[#allocation1] ss:$2 sm:$0xff] %v253
      %v374 = vld.sshfl [vmem:[#allocation1] sm:$0xff pattern:$0x75643120]
      %v376 = vrot.slane %v374, 7
      %377 = vrot.lane.b32.xlu0 %v376, 118
      %v378 = vpop.permute.xlu0 %377
      %v379 = vrot.slane %v378, 4
      %vm380 = vcmask 965632
      %v381 = vsel %vm380, %v378, %v379
      %v383 = vld [vmem:[#allocation2 + $0x4] sm:$0x2]
      %v384 = vsel %vm282, %v381, %v383
      %385 = vst [vmem:[#allocation2 + $0x4] sm:$0x2] %v384
      %386 = vst [vmem:[#allocation1] ss:$2 sm:$0xff] %v253
      %v387 = vld.sshfl [vmem:[#allocation1] sm:$0xff pattern:$0x75643120]
      %v388 = vshll.u32 %v387, 16
      %v390 = vrot.slane %v388, 7
      %391 = vrot.lane.b32.xlu0 %v390, 117
      %v392 = vpop.permute.xlu0 %391
      %v393 = vrot.slane %v392, 4
      %vm394 = vcmask 957440
      %v395 = vsel %vm394, %v392, %v393
      %v397 = vld [vmem:[#allocation2 + $0x4] sm:$0x2]
      %v398 = vsel %vm295, %v395, %v397
      %399 = vst [vmem:[#allocation2 + $0x4] sm:$0x2] %v398
      %s400 = scalar_lea.vmem [#allocation1], 1
      %401 = vst [vmem:[%s400] ss:$2 sm:$0xff] %v253
      %v402 = vld.sshfl [vmem:[#allocation1] sm:$0xff pattern:$0x75643120]
      %404 = vrot.lane.b32.xlu0 %v402, 116
      %v405 = vpop.permute.xlu0 %404
      %v406 = vrot.slane %v405, 4
      %vm407 = vcmask 949248
      %v408 = vsel %vm407, %v405, %v406
      %v410 = vld [vmem:[#allocation2 + $0x4] sm:$0x4]
      %v411 = vsel %vm308, %v408, %v410
      %412 = vst [vmem:[#allocation2 + $0x4] sm:$0x4] %v411
      %413 = vst [vmem:[#allocation1] ss:$2 sm:$0xff] %v253
      %v414 = vld.sshfl [vmem:[#allocation1] sm:$0xff pattern:$0x75643120]
      %v415 = vshll.u32 %v414, 16
      %v417 = vrot.slane %v415, 6
      %418 = vrot.lane.b32.xlu0 %v417, 115
      %v419 = vpop.permute.xlu0 %418
      %v420 = vrot.slane %v419, 4
      %vm421 = vcmask 941056
      %v422 = vsel %vm421, %v419, %v420
      %v424 = vld [vmem:[#allocation2 + $0x4] sm:$0x4]
      %v425 = vsel %vm321, %v422, %v424
      %426 = vst [vmem:[#allocation2 + $0x4] sm:$0x4] %v425
      %427 = vst [vmem:[#allocation1] ss:$2 sm:$0xff] %v253
      %v428 = vld.sshfl [vmem:[#allocation1] sm:$0xff pattern:$0x75643120]
      %v430 = vrot.slane %v428, 5
      %431 = vrot.lane.b32.xlu0 %v430, 114
      %v432 = vpop.permute.xlu0 %431
      %v433 = vrot.slane %v432, 4
      %vm434 = vcmask 932864
      %v435 = vsel %vm434, %v432, %v433
      %v437 = vld [vmem:[#allocation2 + $0x4] sm:$0x8]
      %v438 = vsel %vm334, %v435, %v437
      %439 = vst [vmem:[#allocation2 + $0x4] sm:$0x8] %v438
      %440 = vst [vmem:[#allocation1] ss:$2 sm:$0xff] %v253
      %v441 = vld.sshfl [vmem:[#allocation1] sm:$0xff pattern:$0x75643120]
      %v442 = vshll.u32 %v441, 16
      %v444 = vrot.slane %v442, 5
      %445 = vrot.lane.b32.xlu0 %v444, 113
      %v446 = vpop.permute.xlu0 %445
      %v447 = vrot.slane %v446, 4
      %vm448 = vcmask 924672
      %v449 = vsel %vm448, %v446, %v447
      %v451 = vld [vmem:[#allocation2 + $0x4] sm:$0x8]
      %v452 = vsel %vm347, %v449, %v451
      %453 = vst [vmem:[#allocation2 + $0x4] sm:$0x8] %v452
      %v454 = vld [vmem:[%s1] sm:$0xf]
      %v455 = vld [vmem:[%s1 + $0x4] sm:$0xf]
      %v456 = vld [vmem:[%s1 + $0x8] sm:$0xf]
      %v457 = vld [vmem:[#allocation2] sm:$0xf]
      %v458 = vld [vmem:[#allocation2 + $0x4] sm:$0xf]
      %v459 = vld [vmem:[%s3] sm:$0xff]
      %v460 = vld [vmem:[%s3 + $0x8] sm:$0xff]
      %v461 = vld [vmem:[%s3 + $0x10] sm:$0xff]
      %463 = vset.pattern.permute.xlu0 0
      %464 = vperm.xlu0 %463, %v459
      %v465 = vpop.permute.xlu0 %464
      %468 = vset.pattern.permute.xlu0 0
      %469 = vperm.xlu0 %468, %v460
      %v470 = vpop.permute.xlu0 %469
      %473 = vset.pattern.permute.xlu0 0
      %474 = vperm.xlu0 %473, %v461
      %v475 = vpop.permute.xlu0 %474
      %v480 = vunpack.c.l.b16 %v454
      %v481 = vunpack.c.l.b16 %v455
      %v482 = vunpack.c.l.b16 %v456
      %v483 = vpack.c.b16 %v481, %v480
      %v484 = vpack.c.b16 %v482, %v482
      %v487 = vunpack.c.l.b16 %v457
      %v488 = vunpack.c.l.b16 %v458
      %v489 = vpack.c.b16 %v488, %v487
      %vm491 = vcmask 130048
      %v493 = vsel %vm491, %v483, 0
      %v496 = vsel %vm491, %v484, 0
      %498 = vmatpush.bf16.msra.mxu0 0
      %499 = vmatpush.bf16.msra.mxu0 0
      %500 = vmatpush.bf16.msra.mxu0 0
      %501 = vmatpush.bf16.msra.mxu0 0
      %502 = vmatpush.bf16.msra.mxu0 0
      %503 = vmatpush.bf16.msra.mxu0 0
      %504 = vmatpush.bf16.msra.mxu0 0
      %505 = vmatpush.bf16.msra.mxu0 %v489
      %506 = vmatmul.bf16.gmra.mxu0 %v493
      %v507 = vpop.f32.mrf.mxu0
      %v508 = vadd.f32 %v465, %v507
      %v509 = vpop.f32.mrf.mxu0
      %v510 = vadd.f32 %v470, %v509
      %511 = vmatmul.bf16.gmra.mxu0 %v496
      %v512 = vpop.f32.mrf.mxu0
      %v513 = vadd.f32 %v475, %v512
      %v514 = vpop.f32.mrf.mxu0
      %515 = vdwg.mxu0
      %vm516 = vcmp.ge.f32.partialorder %v508, 0.0
      %vm517 = vcmp.ge.f32.partialorder %v510, 0.0
      %vm518 = vcmp.ge.f32.partialorder %v513, 0.0
      %v519 = vmul.f32 %v508, 0.01
      %v520 = vmul.f32 %v510, 0.01
      %v521 = vmul.f32 %v513, 0.01
      %v522 = vsel %vm516, %v508, %v519
      %v523 = vsel %vm517, %v510, %v520
      %v524 = vsel %vm518, %v513, %v521
      %v525 = vld [vmem:[%s2] sm:$0xff]
      %v526 = vld [vmem:[%s2 + $0x8] sm:$0xff]
      %v527 = vld [vmem:[%s2 + $0x10] sm:$0xff]
      %v528 = vld [vmem:[%s2 + $0x18] sm:$0xff]
      %v529 = vld [vmem:[%s2 + $0x20] sm:$0xff]
      %v530 = vld [vmem:[%s2 + $0x28] sm:$0xff]
      %v531 = vld [vmem:[%s2 + $0x30] sm:$0xff]
      %v532 = vld [vmem:[%s2 + $0x38] sm:$0xff]
      %v533 = vld [vmem:[%s2 + $0x40] sm:$0xff]
      %v534 = vld [vmem:[%s2 + $0x48] sm:$0xff]
      %v535 = vld [vmem:[%s2 + $0x50] sm:$0xff]
      %v536 = vld [vmem:[%s2 + $0x58] sm:$0xff]
      %v537 = vld [vmem:[%s2 + $0x60] sm:$0xff]
      %v538 = vld [vmem:[%s2 + $0x68] sm:$0xff]
      %v539 = vld [vmem:[%s2 + $0x70] sm:$0xff]
      %vm540 = vcmask 982016
      %v542 = vsel %vm540, %v522, 0
      %v545 = vsel %vm540, %v523, 0
      %v548 = vsel %vm540, %v524, 0
      %550 = vmatpush.msra.mxu0 0.0
      %551 = vmatpush.msra.mxu0 %v539
      %552 = vmatpush.msra.mxu0 %v538
      %553 = vmatpush.msra.mxu0 %v537
      %554 = vmatpush.msra.mxu0 %v536
      %555 = vmatpush.msra.mxu0 %v535
      %556 = vmatpush.msra.mxu0 %v534
      %557 = vmatpush.msra.mxu0 %v533
      %558 = vmatpush.msra.mxu0 %v532
      %559 = vmatpush.msra.mxu0 %v531
      %560 = vmatpush.msra.mxu0 %v530
      %561 = vmatpush.msra.mxu0 %v529
      %562 = vmatpush.msra.mxu0 %v528
      %563 = vmatpush.msra.mxu0 %v527
      %564 = vmatpush.msra.mxu0 %v526
      %565 = vmatpush.msra.mxu0 %v525
      %566 = vmatmul.f32.gmra.mxu0 %v542
      %v567 = vpop.f32.mrf.mxu0
      %v568 = vadd.f32 0.0, %v567
      %569 = vmatmul.f32.gmra.mxu0 %v545
      %v570 = vpop.f32.mrf.mxu0
      %v571 = vadd.f32 0.0, %v570
      %572 = vmatmul.f32.gmra.mxu0 %v548
      %v573 = vpop.f32.mrf.mxu0
      %v574 = vadd.f32 0.0, %v573
      %575 = vdwg.mxu0
      %v576 = vld [vmem:[%s4] sm:$0xff]
      %v577 = vld [vmem:[%s4 + $0x8] sm:$0xff]
      %v578 = vld [vmem:[%s4 + $0x10] sm:$0xff]
      %580 = vset.pattern.permute.xlu0 0
      %581 = vperm.xlu0 %580, %v576
      %v582 = vpop.permute.xlu0 %581
      %585 = vset.pattern.permute.xlu0 0
      %586 = vperm.xlu0 %585, %v577
      %v587 = vpop.permute.xlu0 %586
      %590 = vset.pattern.permute.xlu0 0
      %591 = vperm.xlu0 %590, %v578
      %v592 = vpop.permute.xlu0 %591
      %v594 = vmul.f32 %v568, %v582
      %v595 = vmul.f32 %v571, %v587
      %v596 = vmul.f32 %v574, %v592
      %v597 = vld [vmem:[%s5] sm:$0xff]
      %v598 = vld [vmem:[%s5 + $0x8] sm:$0xff]
      %v599 = vld [vmem:[%s5 + $0x10] sm:$0xff]
      %601 = vset.pattern.permute.xlu0 0
      %602 = vperm.xlu0 %601, %v597
      %v603 = vpop.permute.xlu0 %602
      %606 = vset.pattern.permute.xlu0 0
      %607 = vperm.xlu0 %606, %v598
      %v608 = vpop.permute.xlu0 %607
      %611 = vset.pattern.permute.xlu0 0
      %612 = vperm.xlu0 %611, %v599
      %v613 = vpop.permute.xlu0 %612
      %v615 = vadd.f32 %v594, %v603
      %v616 = vadd.f32 %v595, %v608
      %v617 = vadd.f32 %v596, %v613
      %v618 = vpack.c.bf16 %v615, %v615
      %vm619 = vcmask 109568
      %620 = vst.msk [vmem:[%s251] sm:$0xf] %vm619, %v618
      %v621 = vpack.c.bf16 %v616, %v616
      %623 = vrot.lane.b32.xlu0 %v621, 14
      %v624 = vpop.permute.xlu0 %623
      %vm626 = vcmask 232560
      %627 = vst.msk [vmem:[%s251] sm:$0xf] %vm626, %v624
      %v628 = vpack.c.bf16 %v617, %v617
      %630 = vrot.lane.b32.xlu0 %v628, 29
      %v631 = vpop.permute.xlu0 %630
      %vm633 = vcmask 355560
      %634 = vst.msk [vmem:[%s251] sm:$0xf] %vm633, %v631
      %635 = vst [vmem:[#allocation1] ss:$2 sm:$0xff] %v253
      %v636 = vld.sshfl [vmem:[#allocation1] sm:$0xff pattern:$0x75643120]
      %v637 = vshrl.u32 %v636, 16
      %v639 = vrot.slane %v637, 4
      %v640 = vrot.slane %v639, 4
      %v642 = vld [vmem:[#allocation2] sm:$0x1]
      %v643 = vsel %vm256, %v640, %v642
      %644 = vst [vmem:[#allocation2] sm:$0x1] %v643
      %645 = vst [vmem:[#allocation1] ss:$2 sm:$0xff] %v253
      %v646 = vld.sshfl [vmem:[#allocation1] sm:$0xff pattern:$0x75643120]
      %648 = vrot.lane.b32.xlu0 %v646, 127
      %v649 = vpop.permute.xlu0 %648
      %v651 = vld [vmem:[#allocation2] sm:$0x1]
      %v652 = vsel %vm269, %v649, %v651
      %653 = vst [vmem:[#allocation2] sm:$0x1] %v652
      %654 = vst [vmem:[#allocation1] ss:$2 sm:$0xff] %v253
      %v655 = vld.sshfl [vmem:[#allocation1] sm:$0xff pattern:$0x75643120]
      %v656 = vshrl.u32 %v655, 16
      %v658 = vrot.slane %v656, 7
      %659 = vrot.lane.b32.xlu0 %v658, 126
      %v660 = vpop.permute.xlu0 %659
      %v662 = vld [vmem:[#allocation2] sm:$0x2]
      %v663 = vsel %vm282, %v660, %v662
      %664 = vst [vmem:[#allocation2] sm:$0x2] %v663
      %665 = vst [vmem:[#allocation1] ss:$2 sm:$0xff] %v253
      %v666 = vld.sshfl [vmem:[#allocation1] sm:$0xff pattern:$0x75643120]
      %v668 = vrot.slane %v666, 7
      %669 = vrot.lane.b32.xlu0 %v668, 125
      %v670 = vpop.permute.xlu0 %669
      %v672 = vld [vmem:[#allocation2] sm:$0x2]
      %v673 = vsel %vm295, %v670, %v672
      %674 = vst [vmem:[#allocation2] sm:$0x2] %v673
      %675 = vst [vmem:[#allocation1] ss:$2 sm:$0xff] %v253
      %v676 = vld.sshfl [vmem:[#allocation1] sm:$0xff pattern:$0x75643120]
      %v677 = vshrl.u32 %v676, 16
      %v679 = vrot.slane %v677, 6
      %680 = vrot.lane.b32.xlu0 %v679, 124
      %v681 = vpop.permute.xlu0 %680
      %v683 = vld [vmem:[#allocation2] sm:$0x4]
      %v684 = vsel %vm308, %v681, %v683
      %685 = vst [vmem:[#allocation2] sm:$0x4] %v684
      %s686 = scalar_lea.vmem [#allocation1], 1
      %687 = vst [vmem:[%s686] ss:$2 sm:$0xff] %v253
      %v688 = vld.sshfl [vmem:[#allocation1] sm:$0xff pattern:$0x75643120]
      %690 = vrot.lane.b32.xlu0 %v688, 123
      %v691 = vpop.permute.xlu0 %690
      %v693 = vld [vmem:[#allocation2] sm:$0x4]
      %v694 = vsel %vm321, %v691, %v693
      %695 = vst [vmem:[#allocation2] sm:$0x4] %v694
      %696 = vst [vmem:[#allocation1] ss:$2 sm:$0xff] %v253
      %v697 = vld.sshfl [vmem:[#allocation1] sm:$0xff pattern:$0x75643120]
      %v698 = vshrl.u32 %v697, 16
      %v700 = vrot.slane %v698, 5
      %701 = vrot.lane.b32.xlu0 %v700, 122
      %v702 = vpop.permute.xlu0 %701
      %v704 = vld [vmem:[#allocation2] sm:$0x8]
      %v705 = vsel %vm334, %v702, %v704
      %706 = vst [vmem:[#allocation2] sm:$0x8] %v705
      %707 = vst [vmem:[#allocation1] ss:$2 sm:$0xff] %v253
      %v708 = vld.sshfl [vmem:[#allocation1] sm:$0xff pattern:$0x75643120]
      %v710 = vrot.slane %v708, 5
      %711 = vrot.lane.b32.xlu0 %v710, 121
      %v712 = vpop.permute.xlu0 %711
      %v714 = vld [vmem:[#allocation2] sm:$0x8]
      %v715 = vsel %vm347, %v712, %v714
      %716 = vst [vmem:[#allocation2] sm:$0x8] %v715
      %717 = vst [vmem:[#allocation1] ss:$2 sm:$0xff] %v253
      %v718 = vld.sshfl [vmem:[#allocation1] sm:$0xff pattern:$0x75643120]
      %v719 = vshrl.u32 %v718, 16
      %v721 = vrot.slane %v719, 4
      %v722 = vrot.slane %v721, 4
      %723 = vrot.lane.b32.xlu0 %v722, 120
      %v724 = vpop.permute.xlu0 %723
      %v726 = vld [vmem:[#allocation2 + $0x4] sm:$0x1]
      %v727 = vsel %vm256, %v724, %v726
      %728 = vst [vmem:[#allocation2 + $0x4] sm:$0x1] %v727
      %729 = vst [vmem:[#allocation1] ss:$2 sm:$0xff] %v253
      %v730 = vld.sshfl [vmem:[#allocation1] sm:$0xff pattern:$0x75643120]
      %732 = vrot.lane.b32.xlu0 %v730, 119
      %v733 = vpop.permute.xlu0 %732
      %v734 = vrot.slane %v733, 4
      %v735 = vsel %vm367, %v733, %v734
      %v737 = vld [vmem:[#allocation2 + $0x4] sm:$0x1]
      %v738 = vsel %vm269, %v735, %v737
      %739 = vst [vmem:[#allocation2 + $0x4] sm:$0x1] %v738
      %740 = vst [vmem:[#allocation1] ss:$2 sm:$0xff] %v253
      %v741 = vld.sshfl [vmem:[#allocation1] sm:$0xff pattern:$0x75643120]
      %v742 = vshrl.u32 %v741, 16
      %v744 = vrot.slane %v742, 7
      %745 = vrot.lane.b32.xlu0 %v744, 118
      %v746 = vpop.permute.xlu0 %745
      %v747 = vrot.slane %v746, 4
      %v748 = vsel %vm380, %v746, %v747
      %v750 = vld [vmem:[#allocation2 + $0x4] sm:$0x2]
      %v751 = vsel %vm282, %v748, %v750
      %752 = vst [vmem:[#allocation2 + $0x4] sm:$0x2] %v751
      %753 = vst [vmem:[#allocation1] ss:$2 sm:$0xff] %v253
      %v754 = vld.sshfl [vmem:[#allocation1] sm:$0xff pattern:$0x75643120]
      %v756 = vrot.slane %v754, 7
      %757 = vrot.lane.b32.xlu0 %v756, 117
      %v758 = vpop.permute.xlu0 %757
      %v759 = vrot.slane %v758, 4
      %v760 = vsel %vm394, %v758, %v759
      %v762 = vld [vmem:[#allocation2 + $0x4] sm:$0x2]
      %v763 = vsel %vm295, %v760, %v762
      %764 = vst [vmem:[#allocation2 + $0x4] sm:$0x2] %v763
      %765 = vst [vmem:[#allocation1] ss:$2 sm:$0xff] %v253
      %v766 = vld.sshfl [vmem:[#allocation1] sm:$0xff pattern:$0x75643120]
      %v767 = vshrl.u32 %v766, 16
      %v769 = vrot.slane %v767, 6
      %770 = vrot.lane.b32.xlu0 %v769, 116
      %v771 = vpop.permute.xlu0 %770
      %v772 = vrot.slane %v771, 4
      %v773 = vsel %vm407, %v771, %v772
      %v775 = vld [vmem:[#allocation2 + $0x4] sm:$0x4]
      %v776 = vsel %vm308, %v773, %v775
      %777 = vst [vmem:[#allocation2 + $0x4] sm:$0x4] %v776
      %s778 = scalar_lea.vmem [#allocation1], 1
      %779 = vst [vmem:[%s778] ss:$2 sm:$0xff] %v253
      %v780 = vld.sshfl [vmem:[#allocation1] sm:$0xff pattern:$0x75643120]
      %782 = vrot.lane.b32.xlu0 %v780, 115
      %v783 = vpop.permute.xlu0 %782
      %v784 = vrot.slane %v783, 4
      %v785 = vsel %vm421, %v783, %v784
      %v787 = vld [vmem:[#allocation2 + $0x4] sm:$0x4]
      %v788 = vsel %vm321, %v785, %v787
      %789 = vst [vmem:[#allocation2 + $0x4] sm:$0x4] %v788
      %790 = vst [vmem:[#allocation1] ss:$2 sm:$0xff] %v253
      %v791 = vld.sshfl [vmem:[#allocation1] sm:$0xff pattern:$0x75643120]
      %v792 = vshrl.u32 %v791, 16
      %v794 = vrot.slane %v792, 5
      %795 = vrot.lane.b32.xlu0 %v794, 114
      %v796 = vpop.permute.xlu0 %795
      %v797 = vrot.slane %v796, 4
      %v798 = vsel %vm434, %v796, %v797
      %v800 = vld [vmem:[#allocation2 + $0x4] sm:$0x8]
      %v801 = vsel %vm334, %v798, %v800
      %802 = vst [vmem:[#allocation2 + $0x4] sm:$0x8] %v801
      %803 = vst [vmem:[#allocation1] ss:$2 sm:$0xff] %v253
      %v804 = vld.sshfl [vmem:[#allocation1] sm:$0xff pattern:$0x75643120]
      %v806 = vrot.slane %v804, 5
      %807 = vrot.lane.b32.xlu0 %v806, 113
      %v808 = vpop.permute.xlu0 %807
      %v809 = vrot.slane %v808, 4
      %v810 = vsel %vm448, %v808, %v809
      %v812 = vld [vmem:[#allocation2 + $0x4] sm:$0x8]
      %v813 = vsel %vm347, %v810, %v812
      %814 = vst [vmem:[#allocation2 + $0x4] sm:$0x8] %v813
      %v815 = vld [vmem:[%s1] sm:$0xf]
      %v816 = vld [vmem:[%s1 + $0x4] sm:$0xf]
      %v817 = vld [vmem:[%s1 + $0x8] sm:$0xf]
      %v818 = vld [vmem:[#allocation2] sm:$0xf]
      %v819 = vld [vmem:[#allocation2 + $0x4] sm:$0xf]
      %v820 = vld [vmem:[%s3] sm:$0xff]
      %v821 = vld [vmem:[%s3 + $0x8] sm:$0xff]
      %v822 = vld [vmem:[%s3 + $0x10] sm:$0xff]
      %824 = vset.pattern.permute.xlu0 0
      %825 = vperm.xlu0 %824, %v820
      %v826 = vpop.permute.xlu0 %825
      %829 = vset.pattern.permute.xlu0 0
      %830 = vperm.xlu0 %829, %v821
      %v831 = vpop.permute.xlu0 %830
      %834 = vset.pattern.permute.xlu0 0
      %835 = vperm.xlu0 %834, %v822
      %v836 = vpop.permute.xlu0 %835
      %v841 = vunpack.c.l.b16 %v815
      %v842 = vunpack.c.l.b16 %v816
      %v843 = vunpack.c.l.b16 %v817
      %v844 = vpack.c.b16 %v842, %v841
      %v845 = vpack.c.b16 %v843, %v843
      %v848 = vunpack.c.l.b16 %v818
      %v849 = vunpack.c.l.b16 %v819
      %v850 = vpack.c.b16 %v849, %v848
      %v853 = vsel %vm491, %v844, 0
      %v856 = vsel %vm491, %v845, 0
      %858 = vmatpush.bf16.msra.mxu0 0
      %859 = vmatpush.bf16.msra.mxu0 0
      %860 = vmatpush.bf16.msra.mxu0 0
      %861 = vmatpush.bf16.msra.mxu0 0
      %862 = vmatpush.bf16.msra.mxu0 0
      %863 = vmatpush.bf16.msra.mxu0 0
      %864 = vmatpush.bf16.msra.mxu0 0
      %865 = vmatpush.bf16.msra.mxu0 %v850
      %866 = vmatmul.bf16.gmra.mxu0 %v853
      %v867 = vpop.f32.mrf.mxu0
      %v868 = vadd.f32 %v826, %v867
      %v869 = vpop.f32.mrf.mxu0
      %v870 = vadd.f32 %v831, %v869
      %871 = vmatmul.bf16.gmra.mxu0 %v856
      %v872 = vpop.f32.mrf.mxu0
      %v873 = vadd.f32 %v836, %v872
      %v874 = vpop.f32.mrf.mxu0
      %875 = vdwg.mxu0
      %vm876 = vcmp.ge.f32.partialorder %v868, 0.0
      %vm877 = vcmp.ge.f32.partialorder %v870, 0.0
      %vm878 = vcmp.ge.f32.partialorder %v873, 0.0
      %v879 = vmul.f32 %v868, 0.01
      %v880 = vmul.f32 %v870, 0.01
      %v881 = vmul.f32 %v873, 0.01
      %v882 = vsel %vm876, %v868, %v879
      %v883 = vsel %vm877, %v870, %v880
      %v884 = vsel %vm878, %v873, %v881
      %v885 = vld [vmem:[%s2] sm:$0xff]
      %v886 = vld [vmem:[%s2 + $0x8] sm:$0xff]
      %v887 = vld [vmem:[%s2 + $0x10] sm:$0xff]
      %v888 = vld [vmem:[%s2 + $0x18] sm:$0xff]
      %v889 = vld [vmem:[%s2 + $0x20] sm:$0xff]
      %v890 = vld [vmem:[%s2 + $0x28] sm:$0xff]
      %v891 = vld [vmem:[%s2 + $0x30] sm:$0xff]
      %v892 = vld [vmem:[%s2 + $0x38] sm:$0xff]
      %v893 = vld [vmem:[%s2 + $0x40] sm:$0xff]
      %v894 = vld [vmem:[%s2 + $0x48] sm:$0xff]
      %v895 = vld [vmem:[%s2 + $0x50] sm:$0xff]
      %v896 = vld [vmem:[%s2 + $0x58] sm:$0xff]
      %v897 = vld [vmem:[%s2 + $0x60] sm:$0xff]
      %v898 = vld [vmem:[%s2 + $0x68] sm:$0xff]
      %v899 = vld [vmem:[%s2 + $0x70] sm:$0xff]
      %v901 = vsel %vm540, %v882, 0
      %v904 = vsel %vm540, %v883, 0
      %v907 = vsel %vm540, %v884, 0
      %909 = vmatpush.msra.mxu0 0.0
      %910 = vmatpush.msra.mxu0 %v899
      %911 = vmatpush.msra.mxu0 %v898
      %912 = vmatpush.msra.mxu0 %v897
      %913 = vmatpush.msra.mxu0 %v896
      %914 = vmatpush.msra.mxu0 %v895
      %915 = vmatpush.msra.mxu0 %v894
      %916 = vmatpush.msra.mxu0 %v893
      %917 = vmatpush.msra.mxu0 %v892
      %918 = vmatpush.msra.mxu0 %v891
      %919 = vmatpush.msra.mxu0 %v890
      %920 = vmatpush.msra.mxu0 %v889
      %921 = vmatpush.msra.mxu0 %v888
      %922 = vmatpush.msra.mxu0 %v887
      %923 = vmatpush.msra.mxu0 %v886
      %924 = vmatpush.msra.mxu0 %v885
      %925 = vmatmul.f32.gmra.mxu0 %v901
      %v926 = vpop.f32.mrf.mxu0
      %v927 = vadd.f32 0.0, %v926
      %928 = vmatmul.f32.gmra.mxu0 %v904
      %v929 = vpop.f32.mrf.mxu0
      %v930 = vadd.f32 0.0, %v929
      %931 = vmatmul.f32.gmra.mxu0 %v907
      %v932 = vpop.f32.mrf.mxu0
      %v933 = vadd.f32 0.0, %v932
      %934 = vdwg.mxu0
      %v935 = vld [vmem:[%s4] sm:$0xff]
      %v936 = vld [vmem:[%s4 + $0x8] sm:$0xff]
      %v937 = vld [vmem:[%s4 + $0x10] sm:$0xff]
      %939 = vset.pattern.permute.xlu0 0
      %940 = vperm.xlu0 %939, %v935
      %v941 = vpop.permute.xlu0 %940
      %944 = vset.pattern.permute.xlu0 0
      %945 = vperm.xlu0 %944, %v936
      %v946 = vpop.permute.xlu0 %945
      %949 = vset.pattern.permute.xlu0 0
      %950 = vperm.xlu0 %949, %v937
      %v951 = vpop.permute.xlu0 %950
      %v953 = vmul.f32 %v927, %v941
      %v954 = vmul.f32 %v930, %v946
      %v955 = vmul.f32 %v933, %v951
      %v956 = vld [vmem:[%s5] sm:$0xff]
      %v957 = vld [vmem:[%s5 + $0x8] sm:$0xff]
      %v958 = vld [vmem:[%s5 + $0x10] sm:$0xff]
      %960 = vset.pattern.permute.xlu0 0
      %961 = vperm.xlu0 %960, %v956
      %v962 = vpop.permute.xlu0 %961
      %965 = vset.pattern.permute.xlu0 0
      %966 = vperm.xlu0 %965, %v957
      %v967 = vpop.permute.xlu0 %966
      %970 = vset.pattern.permute.xlu0 0
      %971 = vperm.xlu0 %970, %v958
      %v972 = vpop.permute.xlu0 %971
      %v974 = vadd.f32 %v953, %v962
      %v975 = vadd.f32 %v954, %v967
      %v976 = vadd.f32 %v955, %v972
      %v977 = vpack.c.bf16 %v974, %v974
      %978 = vst.msk [vmem:[%s251 + $0x4] sm:$0xf] %vm619, %v977
      %v979 = vpack.c.bf16 %v975, %v975
      %981 = vrot.lane.b32.xlu0 %v979, 14
      %v982 = vpop.permute.xlu0 %981
      %984 = vst.msk [vmem:[%s251 + $0x4] sm:$0xf] %vm626, %v982
      %v985 = vpack.c.bf16 %v976, %v976
      %987 = vrot.lane.b32.xlu0 %v985, 29
      %v988 = vpop.permute.xlu0 %987
      %990 = vst.msk [vmem:[%s251 + $0x4] sm:$0xf] %vm633, %v988
      %991 = vst [vmem:[#allocation1] ss:$2 sm:$0xff] %v253
      %v992 = vld.sshfl [vmem:[#allocation1] sm:$0xff pattern:$0x75643120]
      %v994 = vrot.slane %v992, 5
      %v995 = vrot.slane %v994, 4
      %v997 = vld [vmem:[#allocation2] sm:$0x1]
      %v998 = vsel %vm256, %v995, %v997
      %999 = vst [vmem:[#allocation2] sm:$0x1] %v998
      %1000 = vst [vmem:[#allocation1] ss:$2 sm:$0xff] %v253
      %v1001 = vld.sshfl [vmem:[#allocation1] sm:$0xff pattern:$0x75643120]
      %v1002 = vshll.u32 %v1001, 16
      %v1004 = vrot.slane %v1002, 5
      %v1005 = vrot.slane %v1004, 4
      %1006 = vrot.lane.b32.xlu0 %v1005, 127
      %v1007 = vpop.permute.xlu0 %1006
      %v1009 = vld [vmem:[#allocation2] sm:$0x1]
      %v1010 = vsel %vm269, %v1007, %v1009
      %1011 = vst [vmem:[#allocation2] sm:$0x1] %v1010
      %1012 = vst [vmem:[#allocation1] ss:$2 sm:$0xff] %v253
      %v1013 = vld.sshfl [vmem:[#allocation1] sm:$0xff pattern:$0x75643120]
      %1015 = vrot.lane.b32.xlu0 %v1013, 126
      %v1016 = vpop.permute.xlu0 %1015
      %v1018 = vld [vmem:[#allocation2] sm:$0x2]
      %v1019 = vsel %vm282, %v1016, %v1018
      %1020 = vst [vmem:[#allocation2] sm:$0x2] %v1019
      %1021 = vst [vmem:[#allocation1] ss:$2 sm:$0xff] %v253
      %v1022 = vld.sshfl [vmem:[#allocation1] sm:$0xff pattern:$0x75643120]
      %v1023 = vshll.u32 %v1022, 16
      %1025 = vrot.lane.b32.xlu0 %v1023, 125
      %v1026 = vpop.permute.xlu0 %1025
      %v1028 = vld [vmem:[#allocation2] sm:$0x2]
      %v1029 = vsel %vm295, %v1026, %v1028
      %1030 = vst [vmem:[#allocation2] sm:$0x2] %v1029
      %1031 = vst [vmem:[#allocation1] ss:$2 sm:$0xff] %v253
      %v1032 = vld.sshfl [vmem:[#allocation1] sm:$0xff pattern:$0x75643120]
      %v1034 = vrot.slane %v1032, 7
      %1035 = vrot.lane.b32.xlu0 %v1034, 124
      %v1036 = vpop.permute.xlu0 %1035
      %v1038 = vld [vmem:[#allocation2] sm:$0x4]
      %v1039 = vsel %vm308, %v1036, %v1038
      %1040 = vst [vmem:[#allocation2] sm:$0x4] %v1039
      %1041 = vst [vmem:[#allocation1] ss:$2 sm:$0xff] %v253
      %v1042 = vld.sshfl [vmem:[#allocation1] sm:$0xff pattern:$0x75643120]
      %v1043 = vshll.u32 %v1042, 16
      %v1045 = vrot.slane %v1043, 7
      %1046 = vrot.lane.b32.xlu0 %v1045, 123
      %v1047 = vpop.permute.xlu0 %1046
      %v1049 = vld [vmem:[#allocation2] sm:$0x4]
      %v1050 = vsel %vm321, %v1047, %v1049
      %1051 = vst [vmem:[#allocation2] sm:$0x4] %v1050
      %s1052 = scalar_lea.vmem [#allocation1], 1
      %1053 = vst [vmem:[%s1052] ss:$2 sm:$0xff] %v253
      %v1054 = vld.sshfl [vmem:[#allocation1] sm:$0xff pattern:$0x75643120]
      %1056 = vrot.lane.b32.xlu0 %v1054, 122
      %v1057 = vpop.permute.xlu0 %1056
      %v1059 = vld [vmem:[#allocation2] sm:$0x8]
      %v1060 = vsel %vm334, %v1057, %v1059
      %1061 = vst [vmem:[#allocation2] sm:$0x8] %v1060
      %1062 = vst [vmem:[#allocation1] ss:$2 sm:$0xff] %v253
      %v1063 = vld.sshfl [vmem:[#allocation1] sm:$0xff pattern:$0x75643120]
      %v1064 = vshll.u32 %v1063, 16
      %v1066 = vrot.slane %v1064, 6
      %1067 = vrot.lane.b32.xlu0 %v1066, 121
      %v1068 = vpop.permute.xlu0 %1067
      %v1070 = vld [vmem:[#allocation2] sm:$0x8]
      %v1071 = vsel %vm347, %v1068, %v1070
      %1072 = vst [vmem:[#allocation2] sm:$0x8] %v1071
      %1073 = vst [vmem:[#allocation1] ss:$2 sm:$0xff] %v253
      %v1074 = vld.sshfl [vmem:[#allocation1] sm:$0xff pattern:$0x75643120]
      %v1076 = vrot.slane %v1074, 5
      %v1077 = vrot.slane %v1076, 4
      %1078 = vrot.lane.b32.xlu0 %v1077, 120
      %v1079 = vpop.permute.xlu0 %1078
      %v1081 = vld [vmem:[#allocation2 + $0x4] sm:$0x1]
      %v1082 = vsel %vm256, %v1079, %v1081
      %1083 = vst [vmem:[#allocation2 + $0x4] sm:$0x1] %v1082
      %1084 = vst [vmem:[#allocation1] ss:$2 sm:$0xff] %v253
      %v1085 = vld.sshfl [vmem:[#allocation1] sm:$0xff pattern:$0x75643120]
      %v1086 = vshll.u32 %v1085, 16
      %v1088 = vrot.slane %v1086, 5
      %v1089 = vrot.slane %v1088, 4
      %1090 = vrot.lane.b32.xlu0 %v1089, 119
      %v1091 = vpop.permute.xlu0 %1090
      %v1092 = vrot.slane %v1091, 4
      %v1093 = vsel %vm367, %v1091, %v1092
      %v1095 = vld [vmem:[#allocation2 + $0x4] sm:$0x1]
      %v1096 = vsel %vm269, %v1093, %v1095
      %1097 = vst [vmem:[#allocation2 + $0x4] sm:$0x1] %v1096
      %1098 = vst [vmem:[#allocation1] ss:$2 sm:$0xff] %v253
      %v1099 = vld.sshfl [vmem:[#allocation1] sm:$0xff pattern:$0x75643120]
      %1101 = vrot.lane.b32.xlu0 %v1099, 118
      %v1102 = vpop.permute.xlu0 %1101
      %v1103 = vrot.slane %v1102, 4
      %v1104 = vsel %vm380, %v1102, %v1103
      %v1106 = vld [vmem:[#allocation2 + $0x4] sm:$0x2]
      %v1107 = vsel %vm282, %v1104, %v1106
      %1108 = vst [vmem:[#allocation2 + $0x4] sm:$0x2] %v1107
      %1109 = vst [vmem:[#allocation1] ss:$2 sm:$0xff] %v253
      %v1110 = vld.sshfl [vmem:[#allocation1] sm:$0xff pattern:$0x75643120]
      %v1111 = vshll.u32 %v1110, 16
      %1113 = vrot.lane.b32.xlu0 %v1111, 117
      %v1114 = vpop.permute.xlu0 %1113
      %v1115 = vrot.slane %v1114, 4
      %v1116 = vsel %vm394, %v1114, %v1115
      %v1118 = vld [vmem:[#allocation2 + $0x4] sm:$0x2]
      %v1119 = vsel %vm295, %v1116, %v1118
      %1120 = vst [vmem:[#allocation2 + $0x4] sm:$0x2] %v1119
      %1121 = vst [vmem:[#allocation1] ss:$2 sm:$0xff] %v253
      %v1122 = vld.sshfl [vmem:[#allocation1] sm:$0xff pattern:$0x75643120]
      %v1124 = vrot.slane %v1122, 7
      %1125 = vrot.lane.b32.xlu0 %v1124, 116
      %v1126 = vpop.permute.xlu0 %1125
      %v1127 = vrot.slane %v1126, 4
      %v1128 = vsel %vm407, %v1126, %v1127
      %v1130 = vld [vmem:[#allocation2 + $0x4] sm:$0x4]
      %v1131 = vsel %vm308, %v1128, %v1130
      %1132 = vst [vmem:[#allocation2 + $0x4] sm:$0x4] %v1131
      %1133 = vst [vmem:[#allocation1] ss:$2 sm:$0xff] %v253
      %v1134 = vld.sshfl [vmem:[#allocation1] sm:$0xff pattern:$0x75643120]
      %v1135 = vshll.u32 %v1134, 16
      %v1137 = vrot.slane %v1135, 7
      %1138 = vrot.lane.b32.xlu0 %v1137, 115
      %v1139 = vpop.permute.xlu0 %1138
      %v1140 = vrot.slane %v1139, 4
      %v1141 = vsel %vm421, %v1139, %v1140
      %v1143 = vld [vmem:[#allocation2 + $0x4] sm:$0x4]
      %v1144 = vsel %vm321, %v1141, %v1143
      %1145 = vst [vmem:[#allocation2 + $0x4] sm:$0x4] %v1144
      %s1146 = scalar_lea.vmem [#allocation1], 1
      %1147 = vst [vmem:[%s1146] ss:$2 sm:$0xff] %v253
      %v1148 = vld.sshfl [vmem:[#allocation1] sm:$0xff pattern:$0x75643120]
      %1150 = vrot.lane.b32.xlu0 %v1148, 114
      %v1151 = vpop.permute.xlu0 %1150
      %v1152 = vrot.slane %v1151, 4
      %v1153 = vsel %vm434, %v1151, %v1152
      %v1155 = vld [vmem:[#allocation2 + $0x4] sm:$0x8]
      %v1156 = vsel %vm334, %v1153, %v1155
      %1157 = vst [vmem:[#allocation2 + $0x4] sm:$0x8] %v1156
      %1158 = vst [vmem:[#allocation1] ss:$2 sm:$0xff] %v253
      %v1159 = vld.sshfl [vmem:[#allocation1] sm:$0xff pattern:$0x75643120]
      %v1160 = vshll.u32 %v1159, 16
      %v1162 = vrot.slane %v1160, 6
      %1163 = vrot.lane.b32.xlu0 %v1162, 113
      %v1164 = vpop.permute.xlu0 %1163
      %v1165 = vrot.slane %v1164, 4
      %v1166 = vsel %vm448, %v1164, %v1165
      %v1168 = vld [vmem:[#allocation2 + $0x4] sm:$0x8]
      %v1169 = vsel %vm347, %v1166, %v1168
      %1170 = vst [vmem:[#allocation2 + $0x4] sm:$0x8] %v1169
      %v1171 = vld [vmem:[%s1] sm:$0xf]
      %v1172 = vld [vmem:[%s1 + $0x4] sm:$0xf]
      %v1173 = vld [vmem:[%s1 + $0x8] sm:$0xf]
      %v1174 = vld [vmem:[#allocation2] sm:$0xf]
      %v1175 = vld [vmem:[#allocation2 + $0x4] sm:$0xf]
      %v1176 = vld [vmem:[%s3] sm:$0xff]
      %v1177 = vld [vmem:[%s3 + $0x8] sm:$0xff]
      %v1178 = vld [vmem:[%s3 + $0x10] sm:$0xff]
      %1180 = vset.pattern.permute.xlu0 0
      %1181 = vperm.xlu0 %1180, %v1176
      %v1182 = vpop.permute.xlu0 %1181
      %1185 = vset.pattern.permute.xlu0 0
      %1186 = vperm.xlu0 %1185, %v1177
      %v1187 = vpop.permute.xlu0 %1186
      %1190 = vset.pattern.permute.xlu0 0
      %1191 = vperm.xlu0 %1190, %v1178
      %v1192 = vpop.permute.xlu0 %1191
      %v1197 = vunpack.c.l.b16 %v1171
      %v1198 = vunpack.c.l.b16 %v1172
      %v1199 = vunpack.c.l.b16 %v1173
      %v1200 = vpack.c.b16 %v1198, %v1197
      %v1201 = vpack.c.b16 %v1199, %v1199
      %v1204 = vunpack.c.l.b16 %v1174
      %v1205 = vunpack.c.l.b16 %v1175
      %v1206 = vpack.c.b16 %v1205, %v1204
      %v1209 = vsel %vm491, %v1200, 0
      %v1212 = vsel %vm491, %v1201, 0
      %1214 = vmatpush.bf16.msra.mxu0 0
      %1215 = vmatpush.bf16.msra.mxu0 0
      %1216 = vmatpush.bf16.msra.mxu0 0
      %1217 = vmatpush.bf16.msra.mxu0 0
      %1218 = vmatpush.bf16.msra.mxu0 0
      %1219 = vmatpush.bf16.msra.mxu0 0
      %1220 = vmatpush.bf16.msra.mxu0 0
      %1221 = vmatpush.bf16.msra.mxu0 %v1206
      %1222 = vmatmul.bf16.gmra.mxu0 %v1209
      %v1223 = vpop.f32.mrf.mxu0
      %v1224 = vadd.f32 %v1182, %v1223
      %v1225 = vpop.f32.mrf.mxu0
      %v1226 = vadd.f32 %v1187, %v1225
      %1227 = vmatmul.bf16.gmra.mxu0 %v1212
      %v1228 = vpop.f32.mrf.mxu0
      %v1229 = vadd.f32 %v1192, %v1228
      %v1230 = vpop.f32.mrf.mxu0
      %1231 = vdwg.mxu0
      %vm1232 = vcmp.ge.f32.partialorder %v1224, 0.0
      %vm1233 = vcmp.ge.f32.partialorder %v1226, 0.0
      %vm1234 = vcmp.ge.f32.partialorder %v1229, 0.0
      %v1235 = vmul.f32 %v1224, 0.01
      %v1236 = vmul.f32 %v1226, 0.01
      %v1237 = vmul.f32 %v1229, 0.01
      %v1238 = vsel %vm1232, %v1224, %v1235
      %v1239 = vsel %vm1233, %v1226, %v1236
      %v1240 = vsel %vm1234, %v1229, %v1237
      %v1241 = vld [vmem:[%s2] sm:$0xff]
      %v1242 = vld [vmem:[%s2 + $0x8] sm:$0xff]
      %v1243 = vld [vmem:[%s2 + $0x10] sm:$0xff]
      %v1244 = vld [vmem:[%s2 + $0x18] sm:$0xff]
      %v1245 = vld [vmem:[%s2 + $0x20] sm:$0xff]
      %v1246 = vld [vmem:[%s2 + $0x28] sm:$0xff]
      %v1247 = vld [vmem:[%s2 + $0x30] sm:$0xff]
      %v1248 = vld [vmem:[%s2 + $0x38] sm:$0xff]
      %v1249 = vld [vmem:[%s2 + $0x40] sm:$0xff]
      %v1250 = vld [vmem:[%s2 + $0x48] sm:$0xff]
      %v1251 = vld [vmem:[%s2 + $0x50] sm:$0xff]
      %v1252 = vld [vmem:[%s2 + $0x58] sm:$0xff]
      %v1253 = vld [vmem:[%s2 + $0x60] sm:$0xff]
      %v1254 = vld [vmem:[%s2 + $0x68] sm:$0xff]
      %v1255 = vld [vmem:[%s2 + $0x70] sm:$0xff]
      %v1257 = vsel %vm540, %v1238, 0
      %v1260 = vsel %vm540, %v1239, 0
      %v1263 = vsel %vm540, %v1240, 0
      %1265 = vmatpush.msra.mxu0 0.0
      %1266 = vmatpush.msra.mxu0 %v1255
      %1267 = vmatpush.msra.mxu0 %v1254
      %1268 = vmatpush.msra.mxu0 %v1253
      %1269 = vmatpush.msra.mxu0 %v1252
      %1270 = vmatpush.msra.mxu0 %v1251
      %1271 = vmatpush.msra.mxu0 %v1250
      %1272 = vmatpush.msra.mxu0 %v1249
      %1273 = vmatpush.msra.mxu0 %v1248
      %1274 = vmatpush.msra.mxu0 %v1247
      %1275 = vmatpush.msra.mxu0 %v1246
      %1276 = vmatpush.msra.mxu0 %v1245
      %1277 = vmatpush.msra.mxu0 %v1244
      %1278 = vmatpush.msra.mxu0 %v1243
      %1279 = vmatpush.msra.mxu0 %v1242
      %1280 = vmatpush.msra.mxu0 %v1241
      %1281 = vmatmul.f32.gmra.mxu0 %v1257
      %v1282 = vpop.f32.mrf.mxu0
      %v1283 = vadd.f32 0.0, %v1282
      %1284 = vmatmul.f32.gmra.mxu0 %v1260
      %v1285 = vpop.f32.mrf.mxu0
      %v1286 = vadd.f32 0.0, %v1285
      %1287 = vmatmul.f32.gmra.mxu0 %v1263
      %v1288 = vpop.f32.mrf.mxu0
      %v1289 = vadd.f32 0.0, %v1288
      %1290 = vdwg.mxu0
      %v1291 = vld [vmem:[%s4] sm:$0xff]
      %v1292 = vld [vmem:[%s4 + $0x8] sm:$0xff]
      %v1293 = vld [vmem:[%s4 + $0x10] sm:$0xff]
      %1295 = vset.pattern.permute.xlu0 0
      %1296 = vperm.xlu0 %1295, %v1291
      %v1297 = vpop.permute.xlu0 %1296
      %1300 = vset.pattern.permute.xlu0 0
      %1301 = vperm.xlu0 %1300, %v1292
      %v1302 = vpop.permute.xlu0 %1301
      %1305 = vset.pattern.permute.xlu0 0
      %1306 = vperm.xlu0 %1305, %v1293
      %v1307 = vpop.permute.xlu0 %1306
      %v1309 = vmul.f32 %v1283, %v1297
      %v1310 = vmul.f32 %v1286, %v1302
      %v1311 = vmul.f32 %v1289, %v1307
      %v1312 = vld [vmem:[%s5] sm:$0xff]
      %v1313 = vld [vmem:[%s5 + $0x8] sm:$0xff]
      %v1314 = vld [vmem:[%s5 + $0x10] sm:$0xff]
      %1316 = vset.pattern.permute.xlu0 0
      %1317 = vperm.xlu0 %1316, %v1312
      %v1318 = vpop.permute.xlu0 %1317
      %1321 = vset.pattern.permute.xlu0 0
      %1322 = vperm.xlu0 %1321, %v1313
      %v1323 = vpop.permute.xlu0 %1322
      %1326 = vset.pattern.permute.xlu0 0
      %1327 = vperm.xlu0 %1326, %v1314
      %v1328 = vpop.permute.xlu0 %1327
      %v1330 = vadd.f32 %v1309, %v1318
      %v1331 = vadd.f32 %v1310, %v1323
      %v1332 = vadd.f32 %v1311, %v1328
      %v1333 = vpack.c.bf16 %v1330, %v1330
      %1334 = vst.msk [vmem:[%s251 + $0x8] sm:$0xf] %vm619, %v1333
      %v1335 = vpack.c.bf16 %v1331, %v1331
      %1337 = vrot.lane.b32.xlu0 %v1335, 14
      %v1338 = vpop.permute.xlu0 %1337
      %1340 = vst.msk [vmem:[%s251 + $0x8] sm:$0xf] %vm626, %v1338
      %v1341 = vpack.c.bf16 %v1332, %v1332
      %1343 = vrot.lane.b32.xlu0 %v1341, 29
      %v1344 = vpop.permute.xlu0 %1343
      %1346 = vst.msk [vmem:[%s251 + $0x8] sm:$0xf] %vm633, %v1344
      %1347 = vst [vmem:[#allocation1] ss:$2 sm:$0xff] %v253
      %v1348 = vld.sshfl [vmem:[#allocation1] sm:$0xff pattern:$0x75643120]
      %v1349 = vshrl.u32 %v1348, 16
      %v1351 = vrot.slane %v1349, 5
      %v1352 = vrot.slane %v1351, 4
      %v1354 = vld [vmem:[#allocation2] sm:$0x1]
      %v1355 = vsel %vm256, %v1352, %v1354
      %1356 = vst [vmem:[#allocation2] sm:$0x1] %v1355
      %1357 = vst [vmem:[#allocation1] ss:$2 sm:$0xff] %v253
      %v1358 = vld.sshfl [vmem:[#allocation1] sm:$0xff pattern:$0x75643120]
      %v1360 = vrot.slane %v1358, 5
      %v1361 = vrot.slane %v1360, 4
      %1362 = vrot.lane.b32.xlu0 %v1361, 127
      %v1363 = vpop.permute.xlu0 %1362
      %v1365 = vld [vmem:[#allocation2] sm:$0x1]
      %v1366 = vsel %vm269, %v1363, %v1365
      %1367 = vst [vmem:[#allocation2] sm:$0x1] %v1366
      %1368 = vst [vmem:[#allocation1] ss:$2 sm:$0xff] %v253
      %v1369 = vld.sshfl [vmem:[#allocation1] sm:$0xff pattern:$0x75643120]
      %v1370 = vshrl.u32 %v1369, 16
      %v1372 = vrot.slane %v1370, 4
      %v1373 = vrot.slane %v1372, 4
      %1374 = vrot.lane.b32.xlu0 %v1373, 126
      %v1375 = vpop.permute.xlu0 %1374
      %v1377 = vld [vmem:[#allocation2] sm:$0x2]
      %v1378 = vsel %vm282, %v1375, %v1377
      %1379 = vst [vmem:[#allocation2] sm:$0x2] %v1378
      %1380 = vst [vmem:[#allocation1] ss:$2 sm:$0xff] %v253
      %v1381 = vld.sshfl [vmem:[#allocation1] sm:$0xff pattern:$0x75643120]
      %1383 = vrot.lane.b32.xlu0 %v1381, 125
      %v1384 = vpop.permute.xlu0 %1383
      %v1386 = vld [vmem:[#allocation2] sm:$0x2]
      %v1387 = vsel %vm295, %v1384, %v1386
      %1388 = vst [vmem:[#allocation2] sm:$0x2] %v1387
      %1389 = vst [vmem:[#allocation1] ss:$2 sm:$0xff] %v253
      %v1390 = vld.sshfl [vmem:[#allocation1] sm:$0xff pattern:$0x75643120]
      %v1391 = vshrl.u32 %v1390, 16
      %v1393 = vrot.slane %v1391, 7
      %1394 = vrot.lane.b32.xlu0 %v1393, 124
      %v1395 = vpop.permute.xlu0 %1394
      %v1397 = vld [vmem:[#allocation2] sm:$0x4]
      %v1398 = vsel %vm308, %v1395, %v1397
      %1399 = vst [vmem:[#allocation2] sm:$0x4] %v1398
      %1400 = vst [vmem:[#allocation1] ss:$2 sm:$0xff] %v253
      %v1401 = vld.sshfl [vmem:[#allocation1] sm:$0xff pattern:$0x75643120]
      %v1403 = vrot.slane %v1401, 7
      %1404 = vrot.lane.b32.xlu0 %v1403, 123
      %v1405 = vpop.permute.xlu0 %1404
      %v1407 = vld [vmem:[#allocation2] sm:$0x4]
      %v1408 = vsel %vm321, %v1405, %v1407
      %1409 = vst [vmem:[#allocation2] sm:$0x4] %v1408
      %1410 = vst [vmem:[#allocation1] ss:$2 sm:$0xff] %v253
      %v1411 = vld.sshfl [vmem:[#allocation1] sm:$0xff pattern:$0x75643120]
      %v1412 = vshrl.u32 %v1411, 16
      %v1414 = vrot.slane %v1412, 6
      %1415 = vrot.lane.b32.xlu0 %v1414, 122
      %v1416 = vpop.permute.xlu0 %1415
      %v1418 = vld [vmem:[#allocation2] sm:$0x8]
      %v1419 = vsel %vm334, %v1416, %v1418
      %1420 = vst [vmem:[#allocation2] sm:$0x8] %v1419
      %s1421 = scalar_lea.vmem [#allocation1], 1
      %1422 = vst [vmem:[%s1421] ss:$2 sm:$0xff] %v253
      %v1423 = vld.sshfl [vmem:[#allocation1] sm:$0xff pattern:$0x75643120]
      %1425 = vrot.lane.b32.xlu0 %v1423, 121
      %v1426 = vpop.permute.xlu0 %1425
      %v1428 = vld [vmem:[#allocation2] sm:$0x8]
      %v1429 = vsel %vm347, %v1426, %v1428
      %1430 = vst [vmem:[#allocation2] sm:$0x8] %v1429
      %1431 = vst [vmem:[#allocation1] ss:$2 sm:$0xff] %v253
      %v1432 = vld.sshfl [vmem:[#allocation1] sm:$0xff pattern:$0x75643120]
      %v1433 = vshrl.u32 %v1432, 16
      %v1435 = vrot.slane %v1433, 5
      %v1436 = vrot.slane %v1435, 4
      %1437 = vrot.lane.b32.xlu0 %v1436, 120
      %v1438 = vpop.permute.xlu0 %1437
      %v1440 = vld [vmem:[#allocation2 + $0x4] sm:$0x1]
      %v1441 = vsel %vm256, %v1438, %v1440
      %1442 = vst [vmem:[#allocation2 + $0x4] sm:$0x1] %v1441
      %1443 = vst [vmem:[#allocation1] ss:$2 sm:$0xff] %v253
      %v1444 = vld.sshfl [vmem:[#allocation1] sm:$0xff pattern:$0x75643120]
      %v1446 = vrot.slane %v1444, 5
      %v1447 = vrot.slane %v1446, 4
      %1448 = vrot.lane.b32.xlu0 %v1447, 119
      %v1449 = vpop.permute.xlu0 %1448
      %v1450 = vrot.slane %v1449, 4
      %v1451 = vsel %vm367, %v1449, %v1450
      %v1453 = vld [vmem:[#allocation2 + $0x4] sm:$0x1]
      %v1454 = vsel %vm269, %v1451, %v1453
      %1455 = vst [vmem:[#allocation2 + $0x4] sm:$0x1] %v1454
      %1456 = vst [vmem:[#allocation1] ss:$2 sm:$0xff] %v253
      %v1457 = vld.sshfl [vmem:[#allocation1] sm:$0xff pattern:$0x75643120]
      %v1458 = vshrl.u32 %v1457, 16
      %v1460 = vrot.slane %v1458, 4
      %v1461 = vrot.slane %v1460, 4
      %1462 = vrot.lane.b32.xlu0 %v1461, 118
      %v1463 = vpop.permute.xlu0 %1462
      %v1464 = vrot.slane %v1463, 4
      %v1465 = vsel %vm380, %v1463, %v1464
      %v1467 = vld [vmem:[#allocation2 + $0x4] sm:$0x2]
      %v1468 = vsel %vm282, %v1465, %v1467
      %1469 = vst [vmem:[#allocation2 + $0x4] sm:$0x2] %v1468
      %1470 = vst [vmem:[#allocation1] ss:$2 sm:$0xff] %v253
      %v1471 = vld.sshfl [vmem:[#allocation1] sm:$0xff pattern:$0x75643120]
      %1473 = vrot.lane.b32.xlu0 %v1471, 117
      %v1474 = vpop.permute.xlu0 %1473
      %v1475 = vrot.slane %v1474, 4
      %v1476 = vsel %vm394, %v1474, %v1475
      %v1478 = vld [vmem:[#allocation2 + $0x4] sm:$0x2]
      %v1479 = vsel %vm295, %v1476, %v1478
      %1480 = vst [vmem:[#allocation2 + $0x4] sm:$0x2] %v1479
      %1481 = vst [vmem:[#allocation1] ss:$2 sm:$0xff] %v253
      %v1482 = vld.sshfl [vmem:[#allocation1] sm:$0xff pattern:$0x75643120]
      %v1483 = vshrl.u32 %v1482, 16
      %v1485 = vrot.slane %v1483, 7
      %1486 = vrot.lane.b32.xlu0 %v1485, 116
      %v1487 = vpop.permute.xlu0 %1486
      %v1488 = vrot.slane %v1487, 4
      %v1489 = vsel %vm407, %v1487, %v1488
      %v1491 = vld [vmem:[#allocation2 + $0x4] sm:$0x4]
      %v1492 = vsel %vm308, %v1489, %v1491
      %1493 = vst [vmem:[#allocation2 + $0x4] sm:$0x4] %v1492
      %1494 = vst [vmem:[#allocation1] ss:$2 sm:$0xff] %v253
      %v1495 = vld.sshfl [vmem:[#allocation1] sm:$0xff pattern:$0x75643120]
      %v1497 = vrot.slane %v1495, 7
      %1498 = vrot.lane.b32.xlu0 %v1497, 115
      %v1499 = vpop.permute.xlu0 %1498
      %v1500 = vrot.slane %v1499, 4
      %v1501 = vsel %vm421, %v1499, %v1500
      %v1503 = vld [vmem:[#allocation2 + $0x4] sm:$0x4]
      %v1504 = vsel %vm321, %v1501, %v1503
      %1505 = vst [vmem:[#allocation2 + $0x4] sm:$0x4] %v1504
      %1506 = vst [vmem:[#allocation1] ss:$2 sm:$0xff] %v253
      %v1507 = vld.sshfl [vmem:[#allocation1] sm:$0xff pattern:$0x75643120]
      %v1508 = vshrl.u32 %v1507, 16
      %v1510 = vrot.slane %v1508, 6
      %1511 = vrot.lane.b32.xlu0 %v1510, 114
      %v1512 = vpop.permute.xlu0 %1511
      %v1513 = vrot.slane %v1512, 4
      %v1514 = vsel %vm434, %v1512, %v1513
      %v1516 = vld [vmem:[#allocation2 + $0x4] sm:$0x8]
      %v1517 = vsel %vm334, %v1514, %v1516
      %1518 = vst [vmem:[#allocation2 + $0x4] sm:$0x8] %v1517
      %s1519 = scalar_lea.vmem [#allocation1], 1
      %1520 = vst [vmem:[%s1519] ss:$2 sm:$0xff] %v253
      %v1521 = vld.sshfl [vmem:[#allocation1] sm:$0xff pattern:$0x75643120]
      %1523 = vrot.lane.b32.xlu0 %v1521, 113
      %v1524 = vpop.permute.xlu0 %1523
      %v1525 = vrot.slane %v1524, 4
      %v1526 = vsel %vm448, %v1524, %v1525
      %v1528 = vld [vmem:[#allocation2 + $0x4] sm:$0x8]
      %v1529 = vsel %vm347, %v1526, %v1528
      %1530 = vst [vmem:[#allocation2 + $0x4] sm:$0x8] %v1529
      %v1531 = vld [vmem:[%s1] sm:$0xf]
      %v1532 = vld [vmem:[%s1 + $0x4] sm:$0xf]
      %v1533 = vld [vmem:[%s1 + $0x8] sm:$0xf]
      %v1534 = vld [vmem:[#allocation2] sm:$0xf]
      %v1535 = vld [vmem:[#allocation2 + $0x4] sm:$0xf]
      %v1536 = vld [vmem:[%s3] sm:$0xff]
      %v1537 = vld [vmem:[%s3 + $0x8] sm:$0xff]
      %v1538 = vld [vmem:[%s3 + $0x10] sm:$0xff]
      %1540 = vset.pattern.permute.xlu0 0
      %1541 = vperm.xlu0 %1540, %v1536
      %v1542 = vpop.permute.xlu0 %1541
      %1545 = vset.pattern.permute.xlu0 0
      %1546 = vperm.xlu0 %1545, %v1537
      %v1547 = vpop.permute.xlu0 %1546
      %1550 = vset.pattern.permute.xlu0 0
      %1551 = vperm.xlu0 %1550, %v1538
      %v1552 = vpop.permute.xlu0 %1551
      %v1557 = vunpack.c.l.b16 %v1531
      %v1558 = vunpack.c.l.b16 %v1532
      %v1559 = vunpack.c.l.b16 %v1533
      %v1560 = vpack.c.b16 %v1558, %v1557
      %v1561 = vpack.c.b16 %v1559, %v1559
      %v1564 = vunpack.c.l.b16 %v1534
      %v1565 = vunpack.c.l.b16 %v1535
      %v1566 = vpack.c.b16 %v1565, %v1564
      %v1569 = vsel %vm491, %v1560, 0
      %v1572 = vsel %vm491, %v1561, 0
      %1574 = vmatpush.bf16.msra.mxu0 0
      %1575 = vmatpush.bf16.msra.mxu0 0
      %1576 = vmatpush.bf16.msra.mxu0 0
      %1577 = vmatpush.bf16.msra.mxu0 0
      %1578 = vmatpush.bf16.msra.mxu0 0
      %1579 = vmatpush.bf16.msra.mxu0 0
      %1580 = vmatpush.bf16.msra.mxu0 0
      %1581 = vmatpush.bf16.msra.mxu0 %v1566
      %1582 = vmatmul.bf16.gmra.mxu0 %v1569
      %v1583 = vpop.f32.mrf.mxu0
      %v1584 = vadd.f32 %v1542, %v1583
      %v1585 = vpop.f32.mrf.mxu0
      %v1586 = vadd.f32 %v1547, %v1585
      %1587 = vmatmul.bf16.gmra.mxu0 %v1572
      %v1588 = vpop.f32.mrf.mxu0
      %v1589 = vadd.f32 %v1552, %v1588
      %v1590 = vpop.f32.mrf.mxu0
      %1591 = vdwg.mxu0
      %vm1592 = vcmp.ge.f32.partialorder %v1584, 0.0
      %vm1593 = vcmp.ge.f32.partialorder %v1586, 0.0
      %vm1594 = vcmp.ge.f32.partialorder %v1589, 0.0
      %v1595 = vmul.f32 %v1584, 0.01
      %v1596 = vmul.f32 %v1586, 0.01
      %v1597 = vmul.f32 %v1589, 0.01
      %v1598 = vsel %vm1592, %v1584, %v1595
      %v1599 = vsel %vm1593, %v1586, %v1596
      %v1600 = vsel %vm1594, %v1589, %v1597
      %v1601 = vld [vmem:[%s2] sm:$0xff]
      %v1602 = vld [vmem:[%s2 + $0x8] sm:$0xff]
      %v1603 = vld [vmem:[%s2 + $0x10] sm:$0xff]
      %v1604 = vld [vmem:[%s2 + $0x18] sm:$0xff]
      %v1605 = vld [vmem:[%s2 + $0x20] sm:$0xff]
      %v1606 = vld [vmem:[%s2 + $0x28] sm:$0xff]
      %v1607 = vld [vmem:[%s2 + $0x30] sm:$0xff]
      %v1608 = vld [vmem:[%s2 + $0x38] sm:$0xff]
      %v1609 = vld [vmem:[%s2 + $0x40] sm:$0xff]
      %v1610 = vld [vmem:[%s2 + $0x48] sm:$0xff]
      %v1611 = vld [vmem:[%s2 + $0x50] sm:$0xff]
      %v1612 = vld [vmem:[%s2 + $0x58] sm:$0xff]
      %v1613 = vld [vmem:[%s2 + $0x60] sm:$0xff]
      %v1614 = vld [vmem:[%s2 + $0x68] sm:$0xff]
      %v1615 = vld [vmem:[%s2 + $0x70] sm:$0xff]
      %v1617 = vsel %vm540, %v1598, 0
      %v1620 = vsel %vm540, %v1599, 0
      %v1623 = vsel %vm540, %v1600, 0
      %1625 = vmatpush.msra.mxu0 0.0
      %1626 = vmatpush.msra.mxu0 %v1615
      %1627 = vmatpush.msra.mxu0 %v1614
      %1628 = vmatpush.msra.mxu0 %v1613
      %1629 = vmatpush.msra.mxu0 %v1612
      %1630 = vmatpush.msra.mxu0 %v1611
      %1631 = vmatpush.msra.mxu0 %v1610
      %1632 = vmatpush.msra.mxu0 %v1609
      %1633 = vmatpush.msra.mxu0 %v1608
      %1634 = vmatpush.msra.mxu0 %v1607
      %1635 = vmatpush.msra.mxu0 %v1606
      %1636 = vmatpush.msra.mxu0 %v1605
      %1637 = vmatpush.msra.mxu0 %v1604
      %1638 = vmatpush.msra.mxu0 %v1603
      %1639 = vmatpush.msra.mxu0 %v1602
      %1640 = vmatpush.msra.mxu0 %v1601
      %1641 = vmatmul.f32.gmra.mxu0 %v1617
      %v1642 = vpop.f32.mrf.mxu0
      %v1643 = vadd.f32 0.0, %v1642
      %1644 = vmatmul.f32.gmra.mxu0 %v1620
      %v1645 = vpop.f32.mrf.mxu0
      %v1646 = vadd.f32 0.0, %v1645
      %1647 = vmatmul.f32.gmra.mxu0 %v1623
      %v1648 = vpop.f32.mrf.mxu0
      %v1649 = vadd.f32 0.0, %v1648
      %1650 = vdwg.mxu0
      %v1651 = vld [vmem:[%s4] sm:$0xff]
      %v1652 = vld [vmem:[%s4 + $0x8] sm:$0xff]
      %v1653 = vld [vmem:[%s4 + $0x10] sm:$0xff]
      %1655 = vset.pattern.permute.xlu0 0
      %1656 = vperm.xlu0 %1655, %v1651
      %v1657 = vpop.permute.xlu0 %1656
      %1660 = vset.pattern.permute.xlu0 0
      %1661 = vperm.xlu0 %1660, %v1652
      %v1662 = vpop.permute.xlu0 %1661
      %1665 = vset.pattern.permute.xlu0 0
      %1666 = vperm.xlu0 %1665, %v1653
      %v1667 = vpop.permute.xlu0 %1666
      %v1669 = vmul.f32 %v1643, %v1657
      %v1670 = vmul.f32 %v1646, %v1662
      %v1671 = vmul.f32 %v1649, %v1667
      %v1672 = vld [vmem:[%s5] sm:$0xff]
      %v1673 = vld [vmem:[%s5 + $0x8] sm:$0xff]
      %v1674 = vld [vmem:[%s5 + $0x10] sm:$0xff]
      %1676 = vset.pattern.permute.xlu0 0
      %1677 = vperm.xlu0 %1676, %v1672
      %v1678 = vpop.permute.xlu0 %1677
      %1681 = vset.pattern.permute.xlu0 0
      %1682 = vperm.xlu0 %1681, %v1673
      %v1683 = vpop.permute.xlu0 %1682
      %1686 = vset.pattern.permute.xlu0 0
      %1687 = vperm.xlu0 %1686, %v1674
      %v1688 = vpop.permute.xlu0 %1687
      %v1690 = vadd.f32 %v1669, %v1678
      %v1691 = vadd.f32 %v1670, %v1683
      %v1692 = vadd.f32 %v1671, %v1688
      %v1693 = vpack.c.bf16 %v1690, %v1690
      %1694 = vst.msk [vmem:[%s251 + $0xc] sm:$0xf] %vm619, %v1693
      %v1695 = vpack.c.bf16 %v1691, %v1691
      %1697 = vrot.lane.b32.xlu0 %v1695, 14
      %v1698 = vpop.permute.xlu0 %1697
      %1700 = vst.msk [vmem:[%s251 + $0xc] sm:$0xf] %vm626, %v1698
      %v1701 = vpack.c.bf16 %v1692, %v1692
      %1703 = vrot.lane.b32.xlu0 %v1701, 29
      %v1704 = vpop.permute.xlu0 %1703
      %1706 = vst.msk [vmem:[%s251 + $0xc] sm:$0xf] %vm633, %v1704
      %p1707 = scmp.lt.s32.totalorder %s17, 1
      %s1708 = scalar_select %p1707, %s17, 1
      %s1709 = smul.addr %s1708, 4
      %s1710 = smul.addr %s1709, 4
      %s1711 = scalar_lea.vmem %s6, %s1710
      // Predicated region
      $region45: #{tsception_forward.2} parent=43 // pred_check
        %p1712 = pneg %p166
      $region46: #{tsception_forward.2} parent=43 // pred_check_branch
        %1714 = sbr.rel (%p1712) target = $region48
      $region47: #{tsception_forward.2} parent=43 // pred_region
        _
      $region48: #{tsception_forward.2} parent=43 // pred_fallthru
        _
    $region44: #{tsception_forward.2} parent=5 // pred_fallthru
      _
    %p1715 = scmp.le.s32.totalorder 2, %s12
    // Predicated region
    $region49: #{tsception_forward.2} parent=5 // pred_check
      %p1716 = pneg %p1715
    $region50: #{tsception_forward.2} parent=5 // pred_check_branch
      %1718 = sbr.rel (%p1716) target = $region52
    $region51: #{tsception_forward.2} parent=5 // pred_region
      %s1719 = ssub.s32 %s12, 2
      // Predicated region
      $region53: #{tsception_forward.2} parent=51 // pred_check
        %p1720 = pneg %p172
      $region54: #{tsception_forward.2} parent=51 // pred_check_branch
        %1722 = sbr.rel (%p1720) target = $region56
      $region55: #{tsception_forward.2} parent=51 // pred_region
        %p1723 = scmp.lt.s32.totalorder %s18, 1
        %s1724 = scalar_select %p1723, %s18, 1
        %s1725 = smul.addr %s1724, 4
        %s1726 = smul.addr %s1725, 4
        %s1727 = scalar_lea.vmem %s6, %s1726
      $region56: #{tsception_forward.2} parent=51 // pred_fallthru
        _
    $region52: #{tsception_forward.2} parent=5 // pred_fallthru
      _
  $region6: #{tsception_forward.2} parent=0 // loop_footer
    %s16 = sadd.s32 1, %s12
  $region7: #{tsception_forward.2} parent=0 // loop_footer_branch
    %11 = sbr.rel target = $region3
  $region8: #{tsception_forward.2} parent=0 // loop_exit
    _

</llo_original>
